<compile_context>
chip_gen: v7x
topology: tpu7x:2x2x1
jax: 0.10.0
libtpu: 0.0.40
codegen_flags: <defaults>
</compile_context>

<pallas_src>
import jax
import jax.numpy as jnp
from jax.experimental import pallas as pl
from jax.experimental.pallas import tpu as pltpu

# ----------------------------- config (small) --------------------------------
B = 2            # batch
SEQ_LEN = 16     # configs.seq_len
PRED_LEN = 8     # configs.pred_len
ENC_IN = 8       # configs.enc_in  (N, number of variate tokens)
D_MODEL = 32     # configs.d_model
N_HEADS = 4      # configs.n_heads
D_FF = 64        # configs.d_ff
E_LAYERS = 2     # configs.e_layers
HIPPO_DIM = 512  # hard-coded in nn.Linear(512 + d_model, d_model)
EPS = 1e-5       # revin eps and LayerNorm eps (PyTorch defaults)
DH = D_MODEL // N_HEADS


def _layernorm(x, gamma, beta):
    mu = jnp.mean(x, axis=-1, keepdims=True)
    var = jnp.mean((x - mu) ** 2, axis=-1, keepdims=True)
    return (x - mu) * jax.lax.rsqrt(var + EPS) * gamma + beta


# ------------------------------ fused kernel ----------------------------------
def fused_forward_kernel(x_raw_ref, x_t_ref, hippo_ref,
                         w_enc_ref, emb_b_ref, w_emb_e_ref, w_emb_h_ref, w_ch_ref,
                         w_qkv_ref, b_qkv_ref, wo_ref, w1_ref, b1_ref, w2_ref,
                         vecs_ref, fin_ref, w_proj_t_ref, b_proj_ref,
                         out_ref):
    f32 = jnp.float32
    D, N, dh = D_MODEL, ENC_IN, DH
    scale = 1.0 / (float(dh) ** 0.5)

    b_enc = emb_b_ref[0:1, :]                               # [1, D]
    b_emb = emb_b_ref[1:2, :]                               # [1, D]
    w_enc = w_enc_ref[...]
    w_emb_e = w_emb_e_ref[...]
    w_emb_h = w_emb_h_ref[...]
    w_ch = w_ch_ref[...]

    # ---- RevIN stats (statically unrolled over batch) ----
    xn_rows = []
    denorm = []                                             # (mean_row, std_row), each [1, N]
    for b in range(B):
        # variate-major view [N, L]: per-token stats on lanes -> normalization.
        xv = x_t_ref[b]                                     # [N, L]
        mean_c = jnp.mean(xv, axis=-1, keepdims=True)       # [N, 1]
        xc = xv - mean_c
        mu2 = jnp.mean(xc, axis=-1, keepdims=True)
        var_c = jnp.mean((xc - mu2) ** 2, axis=-1, keepdims=True)
        xn_rows.append(xc / jnp.sqrt(var_c + EPS))          # [N, L]

        # time-major view [L, N]: same stats with variates on lanes (sublane
        # reduce, XLU) — used for the [P, N]-layout de-normalization at the end.
        xr = x_raw_ref[b]                                   # [L, N]
        mean_r = jnp.mean(xr, axis=0, keepdims=True)        # [1, N]
        xcr = xr - mean_r
        mu2r = jnp.mean(xcr, axis=0, keepdims=True)
        var_r = jnp.mean((xcr - mu2r) ** 2, axis=0, keepdims=True)
        denorm.append((mean_r, jnp.sqrt(var_r + EPS)))

    # ---- inverted embedding, batch folded into matmul rows ----
    xn_all = jnp.concatenate(xn_rows, axis=0)               # [B*N, L]
    enc = jnp.dot(xn_all, w_enc, preferred_element_type=f32) + b_enc          # [BN, D]
    # embed(cat([enc, hippo], -1)) == enc @ We + hippo @ Wh + b
    emb = (jnp.dot(enc, w_emb_e, preferred_element_type=f32)
           + jnp.dot(hippo_ref[...], w_emb_h, preferred_element_type=f32)
           + b_emb)                                         # [BN, D]
    x = emb + jnp.concatenate([w_ch] * B, axis=0)           # + W_channels (per batch copy)

    # ---- encoder layers (weights stacked along a leading E_LAYERS axis) ----
    for l in range(E_LAYERS):
        wqkv = w_qkv_ref[l]                                 # [D, 3D]
        bqkv = b_qkv_ref[l]                                 # [1, 3D]
        wo = wo_ref[l]                                      # [D, D]
        w1 = w1_ref[l]                                      # [D, F]
        b1 = b1_ref[l]                                      # [1, F]
        w2 = w2_ref[l]                                      # [F, D]
        vl = vecs_ref[l]                                    # [6, D]: bo,g1,be1,b2,g2,be2
        bo, g1, be1 = vl[0:1], vl[1:2], vl[2:3]
        b2, g2, be2 = vl[3:4], vl[4:5], vl[5:6]

        qkv = jnp.dot(x, wqkv, preferred_element_type=f32) + bqkv             # [BN, 3D]
        q = qkv[:, :D] * scale                              # 1/sqrt(dh) folded once
        k = qkv[:, D:2 * D]
        v = qkv[:, 2 * D:]

        attn = jnp.zeros_like(x)                            # [BN, D]
        for h in range(N_HEADS):                            # static unroll
            c0, c1 = h * dh, (h + 1) * dh
            oh_rows = []
            for b in range(B):                              # static unroll
                r0, r1 = b * N, (b + 1) * N
                qh = q[r0:r1, c0:c1]
                kh = k[r0:r1, c0:c1]
                vh = v[r0:r1, c0:c1]
                s = jax.lax.dot_general(qh, kh, (((1,), (1,)), ((), ())),
                                        preferred_element_type=f32)           # [N, N]
                s = s - jnp.max(s, axis=-1, keepdims=True)
                p = jnp.exp(s)
                p = p * pl.reciprocal(jnp.sum(p, axis=-1, keepdims=True),
                                      approx=True)
                oh_rows.append(jnp.dot(p, vh, preferred_element_type=f32))    # [N, dh]
            oh = jnp.concatenate(oh_rows, axis=0)           # [BN, dh] (sublane concat)
            # per-head slice of the output projection == concat-then-matmul
            attn = attn + jnp.dot(oh, wo[c0:c1, :], preferred_element_type=f32)
        attn = attn + bo

        x1 = _layernorm(x + attn, g1, be1)
        y = jnp.dot(x1, w1, preferred_element_type=f32) + b1                  # conv1 (k=1)
        y = jnp.maximum(y, 0.0)                             # relu
        y = jnp.dot(y, w2, preferred_element_type=f32) + b2                   # conv2 (k=1)
        x = _layernorm(x1 + y, g2, be2)

    # ---- final encoder norm + projector, written directly in [P, N] layout ----
    hfin = _layernorm(x, fin_ref[0:1, :], fin_ref[1:2, :])  # [BN, D]
    w_proj_t = w_proj_t_ref[...]                            # [P, D]
    b_proj = b_proj_ref[...]                                # [P, 1]
    for b in range(B):
        hb = hfin[b * N:(b + 1) * N]                        # [N, D]
        out_t = jax.lax.dot_general(w_proj_t, hb, (((1,), (1,)), ((), ())),
                                    preferred_element_type=f32)               # [P, N]
        out_t = out_t + b_proj
        mean_r, std_r = denorm[b]
        out_ref[b] = out_t * std_r + mean_r                 # de-normalization


# --------------------------- pallas_call wrapper -------------------------------
def _full_spec(shape):
    nd = len(shape)
    return pl.BlockSpec(shape, lambda i, nd=nd: (0,) * nd)


@jax.jit
def model_forward(x_enc, hippo, params):
    # x_mark_enc / x_dec / x_mark_dec are unused by this module's forward.
    x_t = jnp.transpose(x_enc, (0, 2, 1))                   # [B, N, L]   (wrapper glue)
    hippo2d = jnp.reshape(hippo, (B * ENC_IN, HIPPO_DIM))   # contiguous reshape, free

    in_specs = [
        _full_spec((B, SEQ_LEN, ENC_IN)),                   # x_enc (time-major)
        _full_spec((B, ENC_IN, SEQ_LEN)),                   # x_enc (variate-major)
        _full_spec((B * ENC_IN, HIPPO_DIM)),                # hippo (batch-folded)
        _full_spec((SEQ_LEN, D_MODEL)),                     # w_enc
        _full_spec((2, D_MODEL)),                           # [b_enc; b_emb]
        _full_spec((D_MODEL, D_MODEL)),                     # w_emb_e
        _full_spec((HIPPO_DIM, D_MODEL)),                   # w_emb_h
        _full_spec((ENC_IN, D_MODEL)),                      # W_channels
        _full_spec((E_LAYERS, D_MODEL, 3 * D_MODEL)),       # stacked Wq|Wk|Wv
        _full_spec((E_LAYERS, 1, 3 * D_MODEL)),             # stacked bq|bk|bv
        _full_spec((E_LAYERS, D_MODEL, D_MODEL)),           # stacked Wo
        _full_spec((E_LAYERS, D_MODEL, D_FF)),              # stacked W1
        _full_spec((E_LAYERS, 1, D_FF)),                    # stacked b1
        _full_spec((E_LAYERS, D_FF, D_MODEL)),              # stacked W2
        _full_spec((E_LAYERS, 6, D_MODEL)),                 # stacked [bo,g1,be1,b2,g2,be2]
        _full_spec((2, D_MODEL)),                           # [g_final; b_final]
        _full_spec((PRED_LEN, D_MODEL)),                    # projector weight (PyTorch [out,in])
        _full_spec((PRED_LEN, 1)),                          # projector bias
    ]

    dec_out = pl.pallas_call(
        fused_forward_kernel,
        out_shape=jax.ShapeDtypeStruct((B, PRED_LEN, ENC_IN), jnp.float32),
        grid=(1,),
        in_specs=in_specs,
        out_specs=_full_spec((B, PRED_LEN, ENC_IN)),
        compiler_params=pltpu.CompilerParams(dimension_semantics=("arbitrary",)),
    )(x_enc, x_t, hippo2d,
      params["w_enc"], params["emb_b"], params["w_emb_e"], params["w_emb_h"],
      params["w_ch"], params["w_qkv"], params["b_qkv"], params["wo"],
      params["w1"], params["b1"], params["w2"], params["vecs"],
      params["final_norm"], params["w_proj_t"], params["b_proj"])

    attns = [None] * E_LAYERS                               # output_attention=False
    return dec_out, attns


# ------------------------------ parameters -------------------------------------
def init_params(key):
    keys = iter(jax.random.split(key, 32))

    def u(shape, scale=0.05):
        return jax.random.uniform(next(keys), shape, jnp.float32, -scale, scale)

    def layer_vecs():
        ones = jnp.ones((D_MODEL,), jnp.float32)
        zeros = jnp.zeros((D_MODEL,), jnp.float32)
        # rows: bo, gamma1, beta1, b2, gamma2, beta2
        return jnp.stack([u((D_MODEL,)), ones, zeros, u((D_MODEL,)), ones, zeros])

    params = {
        "w_enc": u((SEQ_LEN, D_MODEL)),                     # enc_embedding (in->out layout)
        "emb_b": u((2, D_MODEL)),                           # row0: b_enc, row1: b_emb
        "w_emb_e": u((D_MODEL, D_MODEL)),                   # embed weight, enc_out slice
        "w_emb_h": u((HIPPO_DIM, D_MODEL)),                 # embed weight, hippo slice
        "w_ch": u((ENC_IN, D_MODEL), 0.02),                 # W_channels
        "w_qkv": u((E_LAYERS, D_MODEL, 3 * D_MODEL)),
        "b_qkv": u((E_LAYERS, 1, 3 * D_MODEL)),
        "wo": u((E_LAYERS, D_MODEL, D_MODEL)),
        "w1": u((E_LAYERS, D_MODEL, D_FF)),
        "b1": u((E_LAYERS, 1, D_FF)),
        "w2": u((E_LAYERS, D_FF, D_MODEL)),
        "vecs": jnp.stack([layer_vecs() for _ in range(E_LAYERS)]),   # [E, 6, D]
        "final_norm": jnp.stack([jnp.ones((D_MODEL,), jnp.float32),
                                 jnp.zeros((D_MODEL,), jnp.float32)]),  # [2, D]
        "w_proj_t": u((PRED_LEN, D_MODEL)),                 # projector weight [out, in]
        "b_proj": u((PRED_LEN, 1)),
    }
    return params


# -------------------------- pure-JAX reference ----------------------------------
def _ref_ln(x, g, b):
    mu = jnp.mean(x, axis=-1, keepdims=True)
    var = jnp.mean((x - mu) ** 2, axis=-1, keepdims=True)
    return (x - mu) / jnp.sqrt(var + EPS) * g + b


def reference_forward(x_enc, hippo, params):
    hp = jax.lax.Precision.HIGHEST
    D, dh = D_MODEL, DH
    mean = jnp.mean(x_enc, axis=1, keepdims=True)
    xc = x_enc - mean
    std = jnp.sqrt(jnp.var(xc, axis=1, keepdims=True) + EPS)
    xn = xc / std
    xt = jnp.transpose(xn, (0, 2, 1))                                   # [B,N,L]
    enc = jnp.einsum("bnl,ld->bnd", xt, params["w_enc"], precision=hp) + params["emb_b"][0]
    enc = (jnp.einsum("bnd,de->bne", enc, params["w_emb_e"], precision=hp)
           + jnp.einsum("bnh,hd->bnd", hippo, params["w_emb_h"], precision=hp)
           + params["emb_b"][1])
    x = enc + params["w_ch"][None]
    for l in range(E_LAYERS):
        qkv = jnp.einsum("bnd,de->bne", x, params["w_qkv"][l], precision=hp) + params["b_qkv"][l][0]
        q = qkv[..., :D].reshape(B, ENC_IN, N_HEADS, dh)
        k = qkv[..., D:2 * D].reshape(B, ENC_IN, N_HEADS, dh)
        v = qkv[..., 2 * D:].reshape(B, ENC_IN, N_HEADS, dh)
        s = jnp.einsum("bnhd,bmhd->bhnm", q, k, precision=hp) / (float(dh) ** 0.5)
        a = jax.nn.softmax(s, axis=-1)
        o = jnp.einsum("bhnm,bmhd->bnhd", a, v, precision=hp).reshape(B, ENC_IN, D)
        vl = params["vecs"][l]
        o = jnp.einsum("bnd,de->bne", o, params["wo"][l], precision=hp) + vl[0]
        x1 = _ref_ln(x + o, vl[1], vl[2])
        y = jax.nn.relu(jnp.einsum("bnd,df->bnf", x1, params["w1"][l], precision=hp)
                        + params["b1"][l][0])
        y = jnp.einsum("bnf,fd->bnd", y, params["w2"][l], precision=hp) + vl[3]
        x = _ref_ln(x1 + y, vl[4], vl[5])
    x = _ref_ln(x, params["final_norm"][0], params["final_norm"][1])
    out = jnp.einsum("bnd,pd->bnp", x, params["w_proj_t"], precision=hp) + params["b_proj"][:, 0]
    dec = jnp.transpose(out, (0, 2, 1))                                 # [B,P,N]
    return dec * std + mean


# ------------------------------------ main --------------------------------------
if __name__ == "__main__":
    key = jax.random.PRNGKey(0)
    kx, kh, kp = jax.random.split(key, 3)
    x_enc = jax.random.normal(kx, (B, SEQ_LEN, ENC_IN), jnp.float32)
    hippo = jax.random.normal(kh, (B, ENC_IN, HIPPO_DIM), jnp.float32) * 0.1
    params = init_params(kp)

    dec_out, attns = model_forward(x_enc, hippo, params)
    dec_out = jax.block_until_ready(dec_out)

    assert dec_out.shape == (B, PRED_LEN, ENC_IN)
    assert bool(jnp.all(jnp.isfinite(dec_out)))

    ref = reference_forward(x_enc, hippo, params)
    max_err = float(jnp.max(jnp.abs(dec_out - ref)))
    assert max_err < 5e-3, f"mismatch vs reference: {max_err}"

    print("KERNEL_OK")
</pallas_src>

<mosaic_0001>
module attributes {stable_mosaic.version = 11 : i64} {
  func.func @fused_forward_kernel(%arg0: i32, %arg1: memref<2x16x8xf32, #tpu.memory_space<vmem>>, %arg2: memref<2x8x16xf32, #tpu.memory_space<vmem>>, %arg3: memref<16x512xf32, #tpu.memory_space<vmem>>, %arg4: memref<16x32xf32, #tpu.memory_space<vmem>>, %arg5: memref<2x32xf32, #tpu.memory_space<vmem>>, %arg6: memref<32x32xf32, #tpu.memory_space<vmem>>, %arg7: memref<512x32xf32, #tpu.memory_space<vmem>>, %arg8: memref<8x32xf32, #tpu.memory_space<vmem>>, %arg9: memref<2x32x96xf32, #tpu.memory_space<vmem>>, %arg10: memref<2x1x96xf32, #tpu.memory_space<vmem>>, %arg11: memref<2x32x32xf32, #tpu.memory_space<vmem>>, %arg12: memref<2x32x64xf32, #tpu.memory_space<vmem>>, %arg13: memref<2x1x64xf32, #tpu.memory_space<vmem>>, %arg14: memref<2x64x32xf32, #tpu.memory_space<vmem>>, %arg15: memref<2x6x32xf32, #tpu.memory_space<vmem>>, %arg16: memref<2x32xf32, #tpu.memory_space<vmem>>, %arg17: memref<8x32xf32, #tpu.memory_space<vmem>>, %arg18: memref<8x1xf32, #tpu.memory_space<vmem>>, %arg19: memref<2x8x8xf32, #tpu.memory_space<vmem>>) attributes {dimension_semantics = [#tpu.dimension_semantics<arbitrary>], iteration_bounds = array<i64: 1>, scalar_prefetch = 0 : i64, scratch_operands = 0 : i64, tpu.core_type = #tpu.core_type<tc>, window_params = [{pipeline_mode = #tpu.pipeline_mode<synchronous>, transform_indices = @transform_0, window_bounds = array<i64: 2, 16, 8>}, {pipeline_mode = #tpu.pipeline_mode<synchronous>, transform_indices = @transform_1, window_bounds = array<i64: 2, 8, 16>}, {pipeline_mode = #tpu.pipeline_mode<synchronous>, transform_indices = @transform_2, window_bounds = array<i64: 16, 512>}, {pipeline_mode = #tpu.pipeline_mode<synchronous>, transform_indices = @transform_3, window_bounds = array<i64: 16, 32>}, {pipeline_mode = #tpu.pipeline_mode<synchronous>, transform_indices = @transform_4, window_bounds = array<i64: 2, 32>}, {pipeline_mode = #tpu.pipeline_mode<synchronous>, transform_indices = @transform_5, window_bounds = array<i64: 32, 32>}, {pipeline_mode = #tpu.pipeline_mode<synchronous>, transform_indices = @transform_6, window_bounds = array<i64: 512, 32>}, {pipeline_mode = #tpu.pipeline_mode<synchronous>, transform_indices = @transform_7, window_bounds = array<i64: 8, 32>}, {pipeline_mode = #tpu.pipeline_mode<synchronous>, transform_indices = @transform_8, window_bounds = array<i64: 2, 32, 96>}, {pipeline_mode = #tpu.pipeline_mode<synchronous>, transform_indices = @transform_9, window_bounds = array<i64: 2, 1, 96>}, {pipeline_mode = #tpu.pipeline_mode<synchronous>, transform_indices = @transform_10, window_bounds = array<i64: 2, 32, 32>}, {pipeline_mode = #tpu.pipeline_mode<synchronous>, transform_indices = @transform_11, window_bounds = array<i64: 2, 32, 64>}, {pipeline_mode = #tpu.pipeline_mode<synchronous>, transform_indices = @transform_12, window_bounds = array<i64: 2, 1, 64>}, {pipeline_mode = #tpu.pipeline_mode<synchronous>, transform_indices = @transform_13, window_bounds = array<i64: 2, 64, 32>}, {pipeline_mode = #tpu.pipeline_mode<synchronous>, transform_indices = @transform_14, window_bounds = array<i64: 2, 6, 32>}, {pipeline_mode = #tpu.pipeline_mode<synchronous>, transform_indices = @transform_15, window_bounds = array<i64: 2, 32>}, {pipeline_mode = #tpu.pipeline_mode<synchronous>, transform_indices = @transform_16, window_bounds = array<i64: 8, 32>}, {pipeline_mode = #tpu.pipeline_mode<synchronous>, transform_indices = @transform_17, window_bounds = array<i64: 8, 1>}, {pipeline_mode = #tpu.pipeline_mode<synchronous>, transform_indices = @transform_18, window_bounds = array<i64: 2, 8, 8>}]} {
    %c0 = arith.constant 0 : index
    %c0_0 = arith.constant 0 : index
    %0 = vector.load %arg5[%c0, %c0_0] : memref<2x32xf32, #tpu.memory_space<vmem>>, vector<1x32xf32>
    %c1 = arith.constant 1 : index
    %c0_1 = arith.constant 0 : index
    %1 = vector.load %arg5[%c1, %c0_1] : memref<2x32xf32, #tpu.memory_space<vmem>>, vector<1x32xf32>
    %c0_2 = arith.constant 0 : index
    %c0_3 = arith.constant 0 : index
    %2 = vector.load %arg4[%c0_2, %c0_3] : memref<16x32xf32, #tpu.memory_space<vmem>>, vector<16x32xf32>
    %c0_4 = arith.constant 0 : index
    %c0_5 = arith.constant 0 : index
    %3 = vector.load %arg6[%c0_4, %c0_5] : memref<32x32xf32, #tpu.memory_space<vmem>>, vector<32x32xf32>
    %c0_6 = arith.constant 0 : index
    %c0_7 = arith.constant 0 : index
    %4 = vector.load %arg7[%c0_6, %c0_7] : memref<512x32xf32, #tpu.memory_space<vmem>>, vector<512x32xf32>
    %c0_8 = arith.constant 0 : index
    %c0_9 = arith.constant 0 : index
    %5 = vector.load %arg8[%c0_8, %c0_9] : memref<8x32xf32, #tpu.memory_space<vmem>>, vector<8x32xf32>
    %c0_10 = arith.constant 0 : index
    %c0_11 = arith.constant 0 : index
    %c0_12 = arith.constant 0 : index
    %6 = vector.load %arg2[%c0_10, %c0_11, %c0_12] : memref<2x8x16xf32, #tpu.memory_space<vmem>>, vector<1x8x16xf32>
    %7 = vector.shape_cast %6 : vector<1x8x16xf32> to vector<8x16xf32>
    %cst = arith.constant dense<0.000000e+00> : vector<8xf32>
    %8 = vector.multi_reduction <add>, %7, %cst [1] : vector<8x16xf32> to vector<8xf32>
    %9 = vector.shape_cast %8 : vector<8xf32> to vector<8x1xf32>
    %cst_13 = arith.constant 1.600000e+01 : f32
    %10 = vector.broadcast %cst_13 : f32 to vector<8x1xf32>
    %11 = arith.divf %9, %10 : vector<8x1xf32>
    %12 = vector.broadcast %11 : vector<8x1xf32> to vector<8x16xf32>
    %13 = arith.subf %7, %12 : vector<8x16xf32>
    %cst_14 = arith.constant dense<0.000000e+00> : vector<8xf32>
    %14 = vector.multi_reduction <add>, %13, %cst_14 [1] : vector<8x16xf32> to vector<8xf32>
    %15 = vector.shape_cast %14 : vector<8xf32> to vector<8x1xf32>
    %cst_15 = arith.constant 1.600000e+01 : f32
    %16 = vector.broadcast %cst_15 : f32 to vector<8x1xf32>
    %17 = arith.divf %15, %16 : vector<8x1xf32>
    %18 = vector.broadcast %17 : vector<8x1xf32> to vector<8x16xf32>
    %19 = arith.subf %13, %18 : vector<8x16xf32>
    %20 = arith.mulf %19, %19 : vector<8x16xf32>
    %cst_16 = arith.constant dense<0.000000e+00> : vector<8xf32>
    %21 = vector.multi_reduction <add>, %20, %cst_16 [1] : vector<8x16xf32> to vector<8xf32>
    %22 = vector.shape_cast %21 : vector<8xf32> to vector<8x1xf32>
    %cst_17 = arith.constant 1.600000e+01 : f32
    %23 = vector.broadcast %cst_17 : f32 to vector<8x1xf32>
    %24 = arith.divf %22, %23 : vector<8x1xf32>
    %cst_18 = arith.constant 9.99999974E-6 : f32
    %25 = vector.broadcast %cst_18 : f32 to vector<8x1xf32>
    %26 = arith.addf %24, %25 : vector<8x1xf32>
    %27 = math.sqrt %26 : vector<8x1xf32>
    %28 = vector.broadcast %27 : vector<8x1xf32> to vector<8x16xf32>
    %29 = arith.divf %13, %28 : vector<8x16xf32>
    %c0_19 = arith.constant 0 : index
    %c0_20 = arith.constant 0 : index
    %c0_21 = arith.constant 0 : index
    %30 = vector.load %arg1[%c0_19, %c0_20, %c0_21] : memref<2x16x8xf32, #tpu.memory_space<vmem>>, vector<1x16x8xf32>
    %31 = vector.shape_cast %30 : vector<1x16x8xf32> to vector<16x8xf32>
    %cst_22 = arith.constant dense<0.000000e+00> : vector<8xf32>
    %32 = vector.multi_reduction <add>, %31, %cst_22 [0] : vector<16x8xf32> to vector<8xf32>
    %33 = vector.shape_cast %32 : vector<8xf32> to vector<1x8xf32>
    %cst_23 = arith.constant 1.600000e+01 : f32
    %34 = vector.broadcast %cst_23 : f32 to vector<1x8xf32>
    %35 = arith.divf %33, %34 : vector<1x8xf32>
    %36 = vector.broadcast %35 : vector<1x8xf32> to vector<16x8xf32>
    %37 = arith.subf %31, %36 : vector<16x8xf32>
    %cst_24 = arith.constant dense<0.000000e+00> : vector<8xf32>
    %38 = vector.multi_reduction <add>, %37, %cst_24 [0] : vector<16x8xf32> to vector<8xf32>
    %39 = vector.shape_cast %38 : vector<8xf32> to vector<1x8xf32>
    %cst_25 = arith.constant 1.600000e+01 : f32
    %40 = vector.broadcast %cst_25 : f32 to vector<1x8xf32>
    %41 = arith.divf %39, %40 : vector<1x8xf32>
    %42 = vector.broadcast %41 : vector<1x8xf32> to vector<16x8xf32>
    %43 = arith.subf %37, %42 : vector<16x8xf32>
    %44 = arith.mulf %43, %43 : vector<16x8xf32>
    %cst_26 = arith.constant dense<0.000000e+00> : vector<8xf32>
    %45 = vector.multi_reduction <add>, %44, %cst_26 [0] : vector<16x8xf32> to vector<8xf32>
    %46 = vector.shape_cast %45 : vector<8xf32> to vector<1x8xf32>
    %cst_27 = arith.constant 1.600000e+01 : f32
    %47 = vector.broadcast %cst_27 : f32 to vector<1x8xf32>
    %48 = arith.divf %46, %47 : vector<1x8xf32>
    %cst_28 = arith.constant 9.99999974E-6 : f32
    %49 = vector.broadcast %cst_28 : f32 to vector<1x8xf32>
    %50 = arith.addf %48, %49 : vector<1x8xf32>
    %51 = math.sqrt %50 : vector<1x8xf32>
    %c1_29 = arith.constant 1 : index
    %c0_30 = arith.constant 0 : index
    %c0_31 = arith.constant 0 : index
    %52 = vector.load %arg2[%c1_29, %c0_30, %c0_31] : memref<2x8x16xf32, #tpu.memory_space<vmem>>, vector<1x8x16xf32>
    %53 = vector.shape_cast %52 : vector<1x8x16xf32> to vector<8x16xf32>
    %cst_32 = arith.constant dense<0.000000e+00> : vector<8xf32>
    %54 = vector.multi_reduction <add>, %53, %cst_32 [1] : vector<8x16xf32> to vector<8xf32>
    %55 = vector.shape_cast %54 : vector<8xf32> to vector<8x1xf32>
    %cst_33 = arith.constant 1.600000e+01 : f32
    %56 = vector.broadcast %cst_33 : f32 to vector<8x1xf32>
    %57 = arith.divf %55, %56 : vector<8x1xf32>
    %58 = vector.broadcast %57 : vector<8x1xf32> to vector<8x16xf32>
    %59 = arith.subf %53, %58 : vector<8x16xf32>
    %cst_34 = arith.constant dense<0.000000e+00> : vector<8xf32>
    %60 = vector.multi_reduction <add>, %59, %cst_34 [1] : vector<8x16xf32> to vector<8xf32>
    %61 = vector.shape_cast %60 : vector<8xf32> to vector<8x1xf32>
    %cst_35 = arith.constant 1.600000e+01 : f32
    %62 = vector.broadcast %cst_35 : f32 to vector<8x1xf32>
    %63 = arith.divf %61, %62 : vector<8x1xf32>
    %64 = vector.broadcast %63 : vector<8x1xf32> to vector<8x16xf32>
    %65 = arith.subf %59, %64 : vector<8x16xf32>
    %66 = arith.mulf %65, %65 : vector<8x16xf32>
    %cst_36 = arith.constant dense<0.000000e+00> : vector<8xf32>
    %67 = vector.multi_reduction <add>, %66, %cst_36 [1] : vector<8x16xf32> to vector<8xf32>
    %68 = vector.shape_cast %67 : vector<8xf32> to vector<8x1xf32>
    %cst_37 = arith.constant 1.600000e+01 : f32
    %69 = vector.broadcast %cst_37 : f32 to vector<8x1xf32>
    %70 = arith.divf %68, %69 : vector<8x1xf32>
    %cst_38 = arith.constant 9.99999974E-6 : f32
    %71 = vector.broadcast %cst_38 : f32 to vector<8x1xf32>
    %72 = arith.addf %70, %71 : vector<8x1xf32>
    %73 = math.sqrt %72 : vector<8x1xf32>
    %74 = vector.broadcast %73 : vector<8x1xf32> to vector<8x16xf32>
    %75 = arith.divf %59, %74 : vector<8x16xf32>
    %c1_39 = arith.constant 1 : index
    %c0_40 = arith.constant 0 : index
    %c0_41 = arith.constant 0 : index
    %76 = vector.load %arg1[%c1_39, %c0_40, %c0_41] : memref<2x16x8xf32, #tpu.memory_space<vmem>>, vector<1x16x8xf32>
    %77 = vector.shape_cast %76 : vector<1x16x8xf32> to vector<16x8xf32>
    %cst_42 = arith.constant dense<0.000000e+00> : vector<8xf32>
    %78 = vector.multi_reduction <add>, %77, %cst_42 [0] : vector<16x8xf32> to vector<8xf32>
    %79 = vector.shape_cast %78 : vector<8xf32> to vector<1x8xf32>
    %cst_43 = arith.constant 1.600000e+01 : f32
    %80 = vector.broadcast %cst_43 : f32 to vector<1x8xf32>
    %81 = arith.divf %79, %80 : vector<1x8xf32>
    %82 = vector.broadcast %81 : vector<1x8xf32> to vector<16x8xf32>
    %83 = arith.subf %77, %82 : vector<16x8xf32>
    %cst_44 = arith.constant dense<0.000000e+00> : vector<8xf32>
    %84 = vector.multi_reduction <add>, %83, %cst_44 [0] : vector<16x8xf32> to vector<8xf32>
    %85 = vector.shape_cast %84 : vector<8xf32> to vector<1x8xf32>
    %cst_45 = arith.constant 1.600000e+01 : f32
    %86 = vector.broadcast %cst_45 : f32 to vector<1x8xf32>
    %87 = arith.divf %85, %86 : vector<1x8xf32>
    %88 = vector.broadcast %87 : vector<1x8xf32> to vector<16x8xf32>
    %89 = arith.subf %83, %88 : vector<16x8xf32>
    %90 = arith.mulf %89, %89 : vector<16x8xf32>
    %cst_46 = arith.constant dense<0.000000e+00> : vector<8xf32>
    %91 = vector.multi_reduction <add>, %90, %cst_46 [0] : vector<16x8xf32> to vector<8xf32>
    %92 = vector.shape_cast %91 : vector<8xf32> to vector<1x8xf32>
    %cst_47 = arith.constant 1.600000e+01 : f32
    %93 = vector.broadcast %cst_47 : f32 to vector<1x8xf32>
    %94 = arith.divf %92, %93 : vector<1x8xf32>
    %cst_48 = arith.constant 9.99999974E-6 : f32
    %95 = vector.broadcast %cst_48 : f32 to vector<1x8xf32>
    %96 = arith.addf %94, %95 : vector<1x8xf32>
    %97 = math.sqrt %96 : vector<1x8xf32>
    %98 = tpu.concatenate %29, %75 in 0 : vector<8x16xf32>, vector<8x16xf32> -> vector<16x16xf32>
    %cst_49 = arith.constant dense<0.000000e+00> : vector<16x32xf32>
    %99 = tpu.matmul %98, %2, %cst_49 {dimension_numbers = #tpu.dot_dimension_numbers<[1], [0], [0], [1], [0, 0, 1, 1], [], []>} : vector<16x16xf32>, vector<16x32xf32>, vector<16x32xf32> -> vector<16x32xf32>
    %100 = vector.broadcast %0 : vector<1x32xf32> to vector<16x32xf32>
    %101 = arith.addf %99, %100 : vector<16x32xf32>
    %cst_50 = arith.constant dense<0.000000e+00> : vector<16x32xf32>
    %102 = tpu.matmul %101, %3, %cst_50 {dimension_numbers = #tpu.dot_dimension_numbers<[1], [0], [0], [1], [0, 0, 1, 1], [], []>} : vector<16x32xf32>, vector<32x32xf32>, vector<16x32xf32> -> vector<16x32xf32>
    %c0_51 = arith.constant 0 : index
    %c0_52 = arith.constant 0 : index
    %103 = vector.load %arg3[%c0_51, %c0_52] : memref<16x512xf32, #tpu.memory_space<vmem>>, vector<16x512xf32>
    %cst_53 = arith.constant dense<0.000000e+00> : vector<16x32xf32>
    %104 = tpu.matmul %103, %4, %cst_53 {dimension_numbers = #tpu.dot_dimension_numbers<[1], [0], [0], [1], [0, 0, 1, 1], [], []>} : vector<16x512xf32>, vector<512x32xf32>, vector<16x32xf32> -> vector<16x32xf32>
    %105 = arith.addf %102, %104 : vector<16x32xf32>
    %106 = vector.broadcast %1 : vector<1x32xf32> to vector<16x32xf32>
    %107 = arith.addf %105, %106 : vector<16x32xf32>
    %108 = tpu.concatenate %5, %5 in 0 : vector<8x32xf32>, vector<8x32xf32> -> vector<16x32xf32>
    %109 = arith.addf %107, %108 : vector<16x32xf32>
    %c0_54 = arith.constant 0 : index
    %c0_55 = arith.constant 0 : index
    %c0_56 = arith.constant 0 : index
    %110 = vector.load %arg9[%c0_54, %c0_55, %c0_56] : memref<2x32x96xf32, #tpu.memory_space<vmem>>, vector<1x32x96xf32>
    %111 = vector.shape_cast %110 : vector<1x32x96xf32> to vector<32x96xf32>
    %c0_57 = arith.constant 0 : index
    %c0_58 = arith.constant 0 : index
    %c0_59 = arith.constant 0 : index
    %112 = vector.load %arg10[%c0_57, %c0_58, %c0_59] : memref<2x1x96xf32, #tpu.memory_space<vmem>>, vector<1x1x96xf32>
    %113 = vector.shape_cast %112 : vector<1x1x96xf32> to vector<1x96xf32>
    %c0_60 = arith.constant 0 : index
    %c0_61 = arith.constant 0 : index
    %c0_62 = arith.constant 0 : index
    %114 = vector.load %arg11[%c0_60, %c0_61, %c0_62] : memref<2x32x32xf32, #tpu.memory_space<vmem>>, vector<1x32x32xf32>
    %115 = vector.shape_cast %114 : vector<1x32x32xf32> to vector<32x32xf32>
    %c0_63 = arith.constant 0 : index
    %c0_64 = arith.constant 0 : index
    %c0_65 = arith.constant 0 : index
    %116 = vector.load %arg12[%c0_63, %c0_64, %c0_65] : memref<2x32x64xf32, #tpu.memory_space<vmem>>, vector<1x32x64xf32>
    %117 = vector.shape_cast %116 : vector<1x32x64xf32> to vector<32x64xf32>
    %c0_66 = arith.constant 0 : index
    %c0_67 = arith.constant 0 : index
    %c0_68 = arith.constant 0 : index
    %118 = vector.load %arg13[%c0_66, %c0_67, %c0_68] : memref<2x1x64xf32, #tpu.memory_space<vmem>>, vector<1x1x64xf32>
    %119 = vector.shape_cast %118 : vector<1x1x64xf32> to vector<1x64xf32>
    %c0_69 = arith.constant 0 : index
    %c0_70 = arith.constant 0 : index
    %c0_71 = arith.constant 0 : index
    %120 = vector.load %arg14[%c0_69, %c0_70, %c0_71] : memref<2x64x32xf32, #tpu.memory_space<vmem>>, vector<1x64x32xf32>
    %121 = vector.shape_cast %120 : vector<1x64x32xf32> to vector<64x32xf32>
    %c0_72 = arith.constant 0 : index
    %c0_73 = arith.constant 0 : index
    %c0_74 = arith.constant 0 : index
    %122 = vector.load %arg15[%c0_72, %c0_73, %c0_74] : memref<2x6x32xf32, #tpu.memory_space<vmem>>, vector<1x6x32xf32>
    %123 = vector.shape_cast %122 : vector<1x6x32xf32> to vector<6x32xf32>
    %124 = vector.extract_strided_slice %123 {offsets = [0, 0], sizes = [1, 32], strides = [1, 1]} : vector<6x32xf32> to vector<1x32xf32>
    %125 = vector.extract_strided_slice %123 {offsets = [1, 0], sizes = [1, 32], strides = [1, 1]} : vector<6x32xf32> to vector<1x32xf32>
    %126 = vector.extract_strided_slice %123 {offsets = [2, 0], sizes = [1, 32], strides = [1, 1]} : vector<6x32xf32> to vector<1x32xf32>
    %127 = vector.extract_strided_slice %123 {offsets = [3, 0], sizes = [1, 32], strides = [1, 1]} : vector<6x32xf32> to vector<1x32xf32>
    %128 = vector.extract_strided_slice %123 {offsets = [4, 0], sizes = [1, 32], strides = [1, 1]} : vector<6x32xf32> to vector<1x32xf32>
    %129 = vector.extract_strided_slice %123 {offsets = [5, 0], sizes = [1, 32], strides = [1, 1]} : vector<6x32xf32> to vector<1x32xf32>
    %cst_75 = arith.constant dense<0.000000e+00> : vector<16x96xf32>
    %130 = tpu.matmul %109, %111, %cst_75 {dimension_numbers = #tpu.dot_dimension_numbers<[1], [0], [0], [1], [0, 0, 1, 1], [], []>} : vector<16x32xf32>, vector<32x96xf32>, vector<16x96xf32> -> vector<16x96xf32>
    %131 = vector.broadcast %113 : vector<1x96xf32> to vector<16x96xf32>
    %132 = arith.addf %130, %131 : vector<16x96xf32>
    %133 = vector.extract_strided_slice %132 {offsets = [0, 0], sizes = [16, 32], strides = [1, 1]} : vector<16x96xf32> to vector<16x32xf32>
    %cst_76 = arith.constant 0.353553385 : f32
    %134 = vector.broadcast %cst_76 : f32 to vector<16x32xf32>
    %135 = arith.mulf %133, %134 : vector<16x32xf32>
    %136 = vector.extract_strided_slice %132 {offsets = [0, 32], sizes = [16, 32], strides = [1, 1]} : vector<16x96xf32> to vector<16x32xf32>
    %137 = vector.extract_strided_slice %132 {offsets = [0, 64], sizes = [16, 32], strides = [1, 1]} : vector<16x96xf32> to vector<16x32xf32>
    %cst_77 = arith.constant 0.000000e+00 : f32
    %138 = vector.broadcast %cst_77 : f32 to vector<16x32xf32>
    %139 = vector.extract_strided_slice %135 {offsets = [0, 0], sizes = [8, 8], strides = [1, 1]} : vector<16x32xf32> to vector<8x8xf32>
    %140 = vector.extract_strided_slice %136 {offsets = [0, 0], sizes = [8, 8], strides = [1, 1]} : vector<16x32xf32> to vector<8x8xf32>
    %141 = vector.extract_strided_slice %137 {offsets = [0, 0], sizes = [8, 8], strides = [1, 1]} : vector<16x32xf32> to vector<8x8xf32>
    %cst_78 = arith.constant dense<0.000000e+00> : vector<8x8xf32>
    %142 = tpu.matmul %139, %140, %cst_78 {dimension_numbers = #tpu.dot_dimension_numbers<[1], [1], [0], [0], [0, 0, 1, 0], [], []>} : vector<8x8xf32>, vector<8x8xf32>, vector<8x8xf32> -> vector<8x8xf32>
    %cst_79 = arith.constant dense<0xFF800000> : vector<8xf32>
    %143 = vector.multi_reduction <maximumf>, %142, %cst_79 [1] : vector<8x8xf32> to vector<8xf32>
    %144 = vector.shape_cast %143 : vector<8xf32> to vector<8x1xf32>
    %145 = vector.broadcast %144 : vector<8x1xf32> to vector<8x8xf32>
    %146 = arith.subf %142, %145 : vector<8x8xf32>
    %147 = math.exp %146 : vector<8x8xf32>
    %cst_80 = arith.constant dense<0.000000e+00> : vector<8xf32>
    %148 = vector.multi_reduction <add>, %147, %cst_80 [1] : vector<8x8xf32> to vector<8xf32>
    %149 = vector.shape_cast %148 : vector<8xf32> to vector<8x1xf32>
    %150 = tpu.reciprocal %149 {approx = true} : vector<8x1xf32> -> vector<8x1xf32>
    %151 = vector.broadcast %150 : vector<8x1xf32> to vector<8x8xf32>
    %152 = arith.mulf %147, %151 : vector<8x8xf32>
    %cst_81 = arith.constant dense<0.000000e+00> : vector<8x8xf32>
    %153 = tpu.matmul %152, %141, %cst_81 {dimension_numbers = #tpu.dot_dimension_numbers<[1], [0], [0], [1], [0, 0, 1, 1], [], []>} : vector<8x8xf32>, vector<8x8xf32>, vector<8x8xf32> -> vector<8x8xf32>
    %154 = vector.extract_strided_slice %135 {offsets = [8, 0], sizes = [8, 8], strides = [1, 1]} : vector<16x32xf32> to vector<8x8xf32>
    %155 = vector.extract_strided_slice %136 {offsets = [8, 0], sizes = [8, 8], strides = [1, 1]} : vector<16x32xf32> to vector<8x8xf32>
    %156 = vector.extract_strided_slice %137 {offsets = [8, 0], sizes = [8, 8], strides = [1, 1]} : vector<16x32xf32> to vector<8x8xf32>
    %cst_82 = arith.constant dense<0.000000e+00> : vector<8x8xf32>
    %157 = tpu.matmul %154, %155, %cst_82 {dimension_numbers = #tpu.dot_dimension_numbers<[1], [1], [0], [0], [0, 0, 1, 0], [], []>} : vector<8x8xf32>, vector<8x8xf32>, vector<8x8xf32> -> vector<8x8xf32>
    %cst_83 = arith.constant dense<0xFF800000> : vector<8xf32>
    %158 = vector.multi_reduction <maximumf>, %157, %cst_83 [1] : vector<8x8xf32> to vector<8xf32>
    %159 = vector.shape_cast %158 : vector<8xf32> to vector<8x1xf32>
    %160 = vector.broadcast %159 : vector<8x1xf32> to vector<8x8xf32>
    %161 = arith.subf %157, %160 : vector<8x8xf32>
    %162 = math.exp %161 : vector<8x8xf32>
    %cst_84 = arith.constant dense<0.000000e+00> : vector<8xf32>
    %163 = vector.multi_reduction <add>, %162, %cst_84 [1] : vector<8x8xf32> to vector<8xf32>
    %164 = vector.shape_cast %163 : vector<8xf32> to vector<8x1xf32>
    %165 = tpu.reciprocal %164 {approx = true} : vector<8x1xf32> -> vector<8x1xf32>
    %166 = vector.broadcast %165 : vector<8x1xf32> to vector<8x8xf32>
    %167 = arith.mulf %162, %166 : vector<8x8xf32>
    %cst_85 = arith.constant dense<0.000000e+00> : vector<8x8xf32>
    %168 = tpu.matmul %167, %156, %cst_85 {dimension_numbers = #tpu.dot_dimension_numbers<[1], [0], [0], [1], [0, 0, 1, 1], [], []>} : vector<8x8xf32>, vector<8x8xf32>, vector<8x8xf32> -> vector<8x8xf32>
    %169 = tpu.concatenate %153, %168 in 0 : vector<8x8xf32>, vector<8x8xf32> -> vector<16x8xf32>
    %170 = vector.extract_strided_slice %115 {offsets = [0, 0], sizes = [8, 32], strides = [1, 1]} : vector<32x32xf32> to vector<8x32xf32>
    %cst_86 = arith.constant dense<0.000000e+00> : vector<16x32xf32>
    %171 = tpu.matmul %169, %170, %cst_86 {dimension_numbers = #tpu.dot_dimension_numbers<[1], [0], [0], [1], [0, 0, 1, 1], [], []>} : vector<16x8xf32>, vector<8x32xf32>, vector<16x32xf32> -> vector<16x32xf32>
    %172 = arith.addf %138, %171 : vector<16x32xf32>
    %173 = vector.extract_strided_slice %135 {offsets = [0, 8], sizes = [8, 8], strides = [1, 1]} : vector<16x32xf32> to vector<8x8xf32>
    %174 = vector.extract_strided_slice %136 {offsets = [0, 8], sizes = [8, 8], strides = [1, 1]} : vector<16x32xf32> to vector<8x8xf32>
    %175 = vector.extract_strided_slice %137 {offsets = [0, 8], sizes = [8, 8], strides = [1, 1]} : vector<16x32xf32> to vector<8x8xf32>
    %cst_87 = arith.constant dense<0.000000e+00> : vector<8x8xf32>
    %176 = tpu.matmul %173, %174, %cst_87 {dimension_numbers = #tpu.dot_dimension_numbers<[1], [1], [0], [0], [0, 0, 1, 0], [], []>} : vector<8x8xf32>, vector<8x8xf32>, vector<8x8xf32> -> vector<8x8xf32>
    %cst_88 = arith.constant dense<0xFF800000> : vector<8xf32>
    %177 = vector.multi_reduction <maximumf>, %176, %cst_88 [1] : vector<8x8xf32> to vector<8xf32>
    %178 = vector.shape_cast %177 : vector<8xf32> to vector<8x1xf32>
    %179 = vector.broadcast %178 : vector<8x1xf32> to vector<8x8xf32>
    %180 = arith.subf %176, %179 : vector<8x8xf32>
    %181 = math.exp %180 : vector<8x8xf32>
    %cst_89 = arith.constant dense<0.000000e+00> : vector<8xf32>
    %182 = vector.multi_reduction <add>, %181, %cst_89 [1] : vector<8x8xf32> to vector<8xf32>
    %183 = vector.shape_cast %182 : vector<8xf32> to vector<8x1xf32>
    %184 = tpu.reciprocal %183 {approx = true} : vector<8x1xf32> -> vector<8x1xf32>
    %185 = vector.broadcast %184 : vector<8x1xf32> to vector<8x8xf32>
    %186 = arith.mulf %181, %185 : vector<8x8xf32>
    %cst_90 = arith.constant dense<0.000000e+00> : vector<8x8xf32>
    %187 = tpu.matmul %186, %175, %cst_90 {dimension_numbers = #tpu.dot_dimension_numbers<[1], [0], [0], [1], [0, 0, 1, 1], [], []>} : vector<8x8xf32>, vector<8x8xf32>, vector<8x8xf32> -> vector<8x8xf32>
    %188 = vector.extract_strided_slice %135 {offsets = [8, 8], sizes = [8, 8], strides = [1, 1]} : vector<16x32xf32> to vector<8x8xf32>
    %189 = vector.extract_strided_slice %136 {offsets = [8, 8], sizes = [8, 8], strides = [1, 1]} : vector<16x32xf32> to vector<8x8xf32>
    %190 = vector.extract_strided_slice %137 {offsets = [8, 8], sizes = [8, 8], strides = [1, 1]} : vector<16x32xf32> to vector<8x8xf32>
    %cst_91 = arith.constant dense<0.000000e+00> : vector<8x8xf32>
    %191 = tpu.matmul %188, %189, %cst_91 {dimension_numbers = #tpu.dot_dimension_numbers<[1], [1], [0], [0], [0, 0, 1, 0], [], []>} : vector<8x8xf32>, vector<8x8xf32>, vector<8x8xf32> -> vector<8x8xf32>
    %cst_92 = arith.constant dense<0xFF800000> : vector<8xf32>
    %192 = vector.multi_reduction <maximumf>, %191, %cst_92 [1] : vector<8x8xf32> to vector<8xf32>
    %193 = vector.shape_cast %192 : vector<8xf32> to vector<8x1xf32>
    %194 = vector.broadcast %193 : vector<8x1xf32> to vector<8x8xf32>
    %195 = arith.subf %191, %194 : vector<8x8xf32>
    %196 = math.exp %195 : vector<8x8xf32>
    %cst_93 = arith.constant dense<0.000000e+00> : vector<8xf32>
    %197 = vector.multi_reduction <add>, %196, %cst_93 [1] : vector<8x8xf32> to vector<8xf32>
    %198 = vector.shape_cast %197 : vector<8xf32> to vector<8x1xf32>
    %199 = tpu.reciprocal %198 {approx = true} : vector<8x1xf32> -> vector<8x1xf32>
    %200 = vector.broadcast %199 : vector<8x1xf32> to vector<8x8xf32>
    %201 = arith.mulf %196, %200 : vector<8x8xf32>
    %cst_94 = arith.constant dense<0.000000e+00> : vector<8x8xf32>
    %202 = tpu.matmul %201, %190, %cst_94 {dimension_numbers = #tpu.dot_dimension_numbers<[1], [0], [0], [1], [0, 0, 1, 1], [], []>} : vector<8x8xf32>, vector<8x8xf32>, vector<8x8xf32> -> vector<8x8xf32>
    %203 = tpu.concatenate %187, %202 in 0 : vector<8x8xf32>, vector<8x8xf32> -> vector<16x8xf32>
    %204 = vector.extract_strided_slice %115 {offsets = [8, 0], sizes = [8, 32], strides = [1, 1]} : vector<32x32xf32> to vector<8x32xf32>
    %cst_95 = arith.constant dense<0.000000e+00> : vector<16x32xf32>
    %205 = tpu.matmul %203, %204, %cst_95 {dimension_numbers = #tpu.dot_dimension_numbers<[1], [0], [0], [1], [0, 0, 1, 1], [], []>} : vector<16x8xf32>, vector<8x32xf32>, vector<16x32xf32> -> vector<16x32xf32>
    %206 = arith.addf %172, %205 : vector<16x32xf32>
    %207 = vector.extract_strided_slice %135 {offsets = [0, 16], sizes = [8, 8], strides = [1, 1]} : vector<16x32xf32> to vector<8x8xf32>
    %208 = vector.extract_strided_slice %136 {offsets = [0, 16], sizes = [8, 8], strides = [1, 1]} : vector<16x32xf32> to vector<8x8xf32>
    %209 = vector.extract_strided_slice %137 {offsets = [0, 16], sizes = [8, 8], strides = [1, 1]} : vector<16x32xf32> to vector<8x8xf32>
    %cst_96 = arith.constant dense<0.000000e+00> : vector<8x8xf32>
    %210 = tpu.matmul %207, %208, %cst_96 {dimension_numbers = #tpu.dot_dimension_numbers<[1], [1], [0], [0], [0, 0, 1, 0], [], []>} : vector<8x8xf32>, vector<8x8xf32>, vector<8x8xf32> -> vector<8x8xf32>
    %cst_97 = arith.constant dense<0xFF800000> : vector<8xf32>
    %211 = vector.multi_reduction <maximumf>, %210, %cst_97 [1] : vector<8x8xf32> to vector<8xf32>
    %212 = vector.shape_cast %211 : vector<8xf32> to vector<8x1xf32>
    %213 = vector.broadcast %212 : vector<8x1xf32> to vector<8x8xf32>
    %214 = arith.subf %210, %213 : vector<8x8xf32>
    %215 = math.exp %214 : vector<8x8xf32>
    %cst_98 = arith.constant dense<0.000000e+00> : vector<8xf32>
    %216 = vector.multi_reduction <add>, %215, %cst_98 [1] : vector<8x8xf32> to vector<8xf32>
    %217 = vector.shape_cast %216 : vector<8xf32> to vector<8x1xf32>
    %218 = tpu.reciprocal %217 {approx = true} : vector<8x1xf32> -> vector<8x1xf32>
    %219 = vector.broadcast %218 : vector<8x1xf32> to vector<8x8xf32>
    %220 = arith.mulf %215, %219 : vector<8x8xf32>
    %cst_99 = arith.constant dense<0.000000e+00> : vector<8x8xf32>
    %221 = tpu.matmul %220, %209, %cst_99 {dimension_numbers = #tpu.dot_dimension_numbers<[1], [0], [0], [1], [0, 0, 1, 1], [], []>} : vector<8x8xf32>, vector<8x8xf32>, vector<8x8xf32> -> vector<8x8xf32>
    %222 = vector.extract_strided_slice %135 {offsets = [8, 16], sizes = [8, 8], strides = [1, 1]} : vector<16x32xf32> to vector<8x8xf32>
    %223 = vector.extract_strided_slice %136 {offsets = [8, 16], sizes = [8, 8], strides = [1, 1]} : vector<16x32xf32> to vector<8x8xf32>
    %224 = vector.extract_strided_slice %137 {offsets = [8, 16], sizes = [8, 8], strides = [1, 1]} : vector<16x32xf32> to vector<8x8xf32>
    %cst_100 = arith.constant dense<0.000000e+00> : vector<8x8xf32>
    %225 = tpu.matmul %222, %223, %cst_100 {dimension_numbers = #tpu.dot_dimension_numbers<[1], [1], [0], [0], [0, 0, 1, 0], [], []>} : vector<8x8xf32>, vector<8x8xf32>, vector<8x8xf32> -> vector<8x8xf32>
    %cst_101 = arith.constant dense<0xFF800000> : vector<8xf32>
    %226 = vector.multi_reduction <maximumf>, %225, %cst_101 [1] : vector<8x8xf32> to vector<8xf32>
    %227 = vector.shape_cast %226 : vector<8xf32> to vector<8x1xf32>
    %228 = vector.broadcast %227 : vector<8x1xf32> to vector<8x8xf32>
    %229 = arith.subf %225, %228 : vector<8x8xf32>
    %230 = math.exp %229 : vector<8x8xf32>
    %cst_102 = arith.constant dense<0.000000e+00> : vector<8xf32>
    %231 = vector.multi_reduction <add>, %230, %cst_102 [1] : vector<8x8xf32> to vector<8xf32>
    %232 = vector.shape_cast %231 : vector<8xf32> to vector<8x1xf32>
    %233 = tpu.reciprocal %232 {approx = true} : vector<8x1xf32> -> vector<8x1xf32>
    %234 = vector.broadcast %233 : vector<8x1xf32> to vector<8x8xf32>
    %235 = arith.mulf %230, %234 : vector<8x8xf32>
    %cst_103 = arith.constant dense<0.000000e+00> : vector<8x8xf32>
    %236 = tpu.matmul %235, %224, %cst_103 {dimension_numbers = #tpu.dot_dimension_numbers<[1], [0], [0], [1], [0, 0, 1, 1], [], []>} : vector<8x8xf32>, vector<8x8xf32>, vector<8x8xf32> -> vector<8x8xf32>
    %237 = tpu.concatenate %221, %236 in 0 : vector<8x8xf32>, vector<8x8xf32> -> vector<16x8xf32>
    %238 = vector.extract_strided_slice %115 {offsets = [16, 0], sizes = [8, 32], strides = [1, 1]} : vector<32x32xf32> to vector<8x32xf32>
    %cst_104 = arith.constant dense<0.000000e+00> : vector<16x32xf32>
    %239 = tpu.matmul %237, %238, %cst_104 {dimension_numbers = #tpu.dot_dimension_numbers<[1], [0], [0], [1], [0, 0, 1, 1], [], []>} : vector<16x8xf32>, vector<8x32xf32>, vector<16x32xf32> -> vector<16x32xf32>
    %240 = arith.addf %206, %239 : vector<16x32xf32>
    %241 = vector.extract_strided_slice %135 {offsets = [0, 24], sizes = [8, 8], strides = [1, 1]} : vector<16x32xf32> to vector<8x8xf32>
    %242 = vector.extract_strided_slice %136 {offsets = [0, 24], sizes = [8, 8], strides = [1, 1]} : vector<16x32xf32> to vector<8x8xf32>
    %243 = vector.extract_strided_slice %137 {offsets = [0, 24], sizes = [8, 8], strides = [1, 1]} : vector<16x32xf32> to vector<8x8xf32>
    %cst_105 = arith.constant dense<0.000000e+00> : vector<8x8xf32>
    %244 = tpu.matmul %241, %242, %cst_105 {dimension_numbers = #tpu.dot_dimension_numbers<[1], [1], [0], [0], [0, 0, 1, 0], [], []>} : vector<8x8xf32>, vector<8x8xf32>, vector<8x8xf32> -> vector<8x8xf32>
    %cst_106 = arith.constant dense<0xFF800000> : vector<8xf32>
    %245 = vector.multi_reduction <maximumf>, %244, %cst_106 [1] : vector<8x8xf32> to vector<8xf32>
    %246 = vector.shape_cast %245 : vector<8xf32> to vector<8x1xf32>
    %247 = vector.broadcast %246 : vector<8x1xf32> to vector<8x8xf32>
    %248 = arith.subf %244, %247 : vector<8x8xf32>
    %249 = math.exp %248 : vector<8x8xf32>
    %cst_107 = arith.constant dense<0.000000e+00> : vector<8xf32>
    %250 = vector.multi_reduction <add>, %249, %cst_107 [1] : vector<8x8xf32> to vector<8xf32>
    %251 = vector.shape_cast %250 : vector<8xf32> to vector<8x1xf32>
    %252 = tpu.reciprocal %251 {approx = true} : vector<8x1xf32> -> vector<8x1xf32>
    %253 = vector.broadcast %252 : vector<8x1xf32> to vector<8x8xf32>
    %254 = arith.mulf %249, %253 : vector<8x8xf32>
    %cst_108 = arith.constant dense<0.000000e+00> : vector<8x8xf32>
    %255 = tpu.matmul %254, %243, %cst_108 {dimension_numbers = #tpu.dot_dimension_numbers<[1], [0], [0], [1], [0, 0, 1, 1], [], []>} : vector<8x8xf32>, vector<8x8xf32>, vector<8x8xf32> -> vector<8x8xf32>
    %256 = vector.extract_strided_slice %135 {offsets = [8, 24], sizes = [8, 8], strides = [1, 1]} : vector<16x32xf32> to vector<8x8xf32>
    %257 = vector.extract_strided_slice %136 {offsets = [8, 24], sizes = [8, 8], strides = [1, 1]} : vector<16x32xf32> to vector<8x8xf32>
    %258 = vector.extract_strided_slice %137 {offsets = [8, 24], sizes = [8, 8], strides = [1, 1]} : vector<16x32xf32> to vector<8x8xf32>
    %cst_109 = arith.constant dense<0.000000e+00> : vector<8x8xf32>
    %259 = tpu.matmul %256, %257, %cst_109 {dimension_numbers = #tpu.dot_dimension_numbers<[1], [1], [0], [0], [0, 0, 1, 0], [], []>} : vector<8x8xf32>, vector<8x8xf32>, vector<8x8xf32> -> vector<8x8xf32>
    %cst_110 = arith.constant dense<0xFF800000> : vector<8xf32>
    %260 = vector.multi_reduction <maximumf>, %259, %cst_110 [1] : vector<8x8xf32> to vector<8xf32>
    %261 = vector.shape_cast %260 : vector<8xf32> to vector<8x1xf32>
    %262 = vector.broadcast %261 : vector<8x1xf32> to vector<8x8xf32>
    %263 = arith.subf %259, %262 : vector<8x8xf32>
    %264 = math.exp %263 : vector<8x8xf32>
    %cst_111 = arith.constant dense<0.000000e+00> : vector<8xf32>
    %265 = vector.multi_reduction <add>, %264, %cst_111 [1] : vector<8x8xf32> to vector<8xf32>
    %266 = vector.shape_cast %265 : vector<8xf32> to vector<8x1xf32>
    %267 = tpu.reciprocal %266 {approx = true} : vector<8x1xf32> -> vector<8x1xf32>
    %268 = vector.broadcast %267 : vector<8x1xf32> to vector<8x8xf32>
    %269 = arith.mulf %264, %268 : vector<8x8xf32>
    %cst_112 = arith.constant dense<0.000000e+00> : vector<8x8xf32>
    %270 = tpu.matmul %269, %258, %cst_112 {dimension_numbers = #tpu.dot_dimension_numbers<[1], [0], [0], [1], [0, 0, 1, 1], [], []>} : vector<8x8xf32>, vector<8x8xf32>, vector<8x8xf32> -> vector<8x8xf32>
    %271 = tpu.concatenate %255, %270 in 0 : vector<8x8xf32>, vector<8x8xf32> -> vector<16x8xf32>
    %272 = vector.extract_strided_slice %115 {offsets = [24, 0], sizes = [8, 32], strides = [1, 1]} : vector<32x32xf32> to vector<8x32xf32>
    %cst_113 = arith.constant dense<0.000000e+00> : vector<16x32xf32>
    %273 = tpu.matmul %271, %272, %cst_113 {dimension_numbers = #tpu.dot_dimension_numbers<[1], [0], [0], [1], [0, 0, 1, 1], [], []>} : vector<16x8xf32>, vector<8x32xf32>, vector<16x32xf32> -> vector<16x32xf32>
    %274 = arith.addf %240, %273 : vector<16x32xf32>
    %275 = vector.broadcast %124 : vector<1x32xf32> to vector<16x32xf32>
    %276 = arith.addf %274, %275 : vector<16x32xf32>
    %277 = arith.addf %109, %276 : vector<16x32xf32>
    %cst_114 = arith.constant dense<0.000000e+00> : vector<16xf32>
    %278 = vector.multi_reduction <add>, %277, %cst_114 [1] : vector<16x32xf32> to vector<16xf32>
    %279 = vector.shape_cast %278 : vector<16xf32> to vector<16x1xf32>
    %cst_115 = arith.constant 3.200000e+01 : f32
    %280 = vector.broadcast %cst_115 : f32 to vector<16x1xf32>
    %281 = arith.divf %279, %280 : vector<16x1xf32>
    %282 = vector.broadcast %281 : vector<16x1xf32> to vector<16x32xf32>
    %283 = arith.subf %277, %282 : vector<16x32xf32>
    %284 = arith.mulf %283, %283 : vector<16x32xf32>
    %cst_116 = arith.constant dense<0.000000e+00> : vector<16xf32>
    %285 = vector.multi_reduction <add>, %284, %cst_116 [1] : vector<16x32xf32> to vector<16xf32>
    %286 = vector.shape_cast %285 : vector<16xf32> to vector<16x1xf32>
    %cst_117 = arith.constant 3.200000e+01 : f32
    %287 = vector.broadcast %cst_117 : f32 to vector<16x1xf32>
    %288 = arith.divf %286, %287 : vector<16x1xf32>
    %289 = vector.broadcast %281 : vector<16x1xf32> to vector<16x32xf32>
    %290 = arith.subf %277, %289 : vector<16x32xf32>
    %cst_118 = arith.constant 9.99999974E-6 : f32
    %291 = vector.broadcast %cst_118 : f32 to vector<16x1xf32>
    %292 = arith.addf %288, %291 : vector<16x1xf32>
    %293 = math.rsqrt %292 : vector<16x1xf32>
    %294 = vector.broadcast %293 : vector<16x1xf32> to vector<16x32xf32>
    %295 = arith.mulf %290, %294 : vector<16x32xf32>
    %296 = vector.broadcast %125 : vector<1x32xf32> to vector<16x32xf32>
    %297 = arith.mulf %295, %296 : vector<16x32xf32>
    %298 = vector.broadcast %126 : vector<1x32xf32> to vector<16x32xf32>
    %299 = arith.addf %297, %298 : vector<16x32xf32>
    %cst_119 = arith.constant dense<0.000000e+00> : vector<16x64xf32>
    %300 = tpu.matmul %299, %117, %cst_119 {dimension_numbers = #tpu.dot_dimension_numbers<[1], [0], [0], [1], [0, 0, 1, 1], [], []>} : vector<16x32xf32>, vector<32x64xf32>, vector<16x64xf32> -> vector<16x64xf32>
    %301 = vector.broadcast %119 : vector<1x64xf32> to vector<16x64xf32>
    %302 = arith.addf %300, %301 : vector<16x64xf32>
    %cst_120 = arith.constant 0.000000e+00 : f32
    %303 = vector.broadcast %cst_120 : f32 to vector<16x64xf32>
    %304 = arith.maximumf %302, %303 : vector<16x64xf32>
    %cst_121 = arith.constant dense<0.000000e+00> : vector<16x32xf32>
    %305 = tpu.matmul %304, %121, %cst_121 {dimension_numbers = #tpu.dot_dimension_numbers<[1], [0], [0], [1], [0, 0, 1, 1], [], []>} : vector<16x64xf32>, vector<64x32xf32>, vector<16x32xf32> -> vector<16x32xf32>
    %306 = vector.broadcast %127 : vector<1x32xf32> to vector<16x32xf32>
    %307 = arith.addf %305, %306 : vector<16x32xf32>
    %308 = arith.addf %299, %307 : vector<16x32xf32>
    %cst_122 = arith.constant dense<0.000000e+00> : vector<16xf32>
    %309 = vector.multi_reduction <add>, %308, %cst_122 [1] : vector<16x32xf32> to vector<16xf32>
    %310 = vector.shape_cast %309 : vector<16xf32> to vector<16x1xf32>
    %cst_123 = arith.constant 3.200000e+01 : f32
    %311 = vector.broadcast %cst_123 : f32 to vector<16x1xf32>
    %312 = arith.divf %310, %311 : vector<16x1xf32>
    %313 = vector.broadcast %312 : vector<16x1xf32> to vector<16x32xf32>
    %314 = arith.subf %308, %313 : vector<16x32xf32>
    %315 = arith.mulf %314, %314 : vector<16x32xf32>
    %cst_124 = arith.constant dense<0.000000e+00> : vector<16xf32>
    %316 = vector.multi_reduction <add>, %315, %cst_124 [1] : vector<16x32xf32> to vector<16xf32>
    %317 = vector.shape_cast %316 : vector<16xf32> to vector<16x1xf32>
    %cst_125 = arith.constant 3.200000e+01 : f32
    %318 = vector.broadcast %cst_125 : f32 to vector<16x1xf32>
    %319 = arith.divf %317, %318 : vector<16x1xf32>
    %320 = vector.broadcast %312 : vector<16x1xf32> to vector<16x32xf32>
    %321 = arith.subf %308, %320 : vector<16x32xf32>
    %cst_126 = arith.constant 9.99999974E-6 : f32
    %322 = vector.broadcast %cst_126 : f32 to vector<16x1xf32>
    %323 = arith.addf %319, %322 : vector<16x1xf32>
    %324 = math.rsqrt %323 : vector<16x1xf32>
    %325 = vector.broadcast %324 : vector<16x1xf32> to vector<16x32xf32>
    %326 = arith.mulf %321, %325 : vector<16x32xf32>
    %327 = vector.broadcast %128 : vector<1x32xf32> to vector<16x32xf32>
    %328 = arith.mulf %326, %327 : vector<16x32xf32>
    %329 = vector.broadcast %129 : vector<1x32xf32> to vector<16x32xf32>
    %330 = arith.addf %328, %329 : vector<16x32xf32>
    %c1_127 = arith.constant 1 : index
    %c0_128 = arith.constant 0 : index
    %c0_129 = arith.constant 0 : index
    %331 = vector.load %arg9[%c1_127, %c0_128, %c0_129] : memref<2x32x96xf32, #tpu.memory_space<vmem>>, vector<1x32x96xf32>
    %332 = vector.shape_cast %331 : vector<1x32x96xf32> to vector<32x96xf32>
    %c1_130 = arith.constant 1 : index
    %c0_131 = arith.constant 0 : index
    %c0_132 = arith.constant 0 : index
    %333 = vector.load %arg10[%c1_130, %c0_131, %c0_132] : memref<2x1x96xf32, #tpu.memory_space<vmem>>, vector<1x1x96xf32>
    %334 = vector.shape_cast %333 : vector<1x1x96xf32> to vector<1x96xf32>
    %c1_133 = arith.constant 1 : index
    %c0_134 = arith.constant 0 : index
    %c0_135 = arith.constant 0 : index
    %335 = vector.load %arg11[%c1_133, %c0_134, %c0_135] : memref<2x32x32xf32, #tpu.memory_space<vmem>>, vector<1x32x32xf32>
    %336 = vector.shape_cast %335 : vector<1x32x32xf32> to vector<32x32xf32>
    %c1_136 = arith.constant 1 : index
    %c0_137 = arith.constant 0 : index
    %c0_138 = arith.constant 0 : index
    %337 = vector.load %arg12[%c1_136, %c0_137, %c0_138] : memref<2x32x64xf32, #tpu.memory_space<vmem>>, vector<1x32x64xf32>
    %338 = vector.shape_cast %337 : vector<1x32x64xf32> to vector<32x64xf32>
    %c1_139 = arith.constant 1 : index
    %c0_140 = arith.constant 0 : index
    %c0_141 = arith.constant 0 : index
    %339 = vector.load %arg13[%c1_139, %c0_140, %c0_141] : memref<2x1x64xf32, #tpu.memory_space<vmem>>, vector<1x1x64xf32>
    %340 = vector.shape_cast %339 : vector<1x1x64xf32> to vector<1x64xf32>
    %c1_142 = arith.constant 1 : index
    %c0_143 = arith.constant 0 : index
    %c0_144 = arith.constant 0 : index
    %341 = vector.load %arg14[%c1_142, %c0_143, %c0_144] : memref<2x64x32xf32, #tpu.memory_space<vmem>>, vector<1x64x32xf32>
    %342 = vector.shape_cast %341 : vector<1x64x32xf32> to vector<64x32xf32>
    %c1_145 = arith.constant 1 : index
    %c0_146 = arith.constant 0 : index
    %c0_147 = arith.constant 0 : index
    %343 = vector.load %arg15[%c1_145, %c0_146, %c0_147] : memref<2x6x32xf32, #tpu.memory_space<vmem>>, vector<1x6x32xf32>
    %344 = vector.shape_cast %343 : vector<1x6x32xf32> to vector<6x32xf32>
    %345 = vector.extract_strided_slice %344 {offsets = [0, 0], sizes = [1, 32], strides = [1, 1]} : vector<6x32xf32> to vector<1x32xf32>
    %346 = vector.extract_strided_slice %344 {offsets = [1, 0], sizes = [1, 32], strides = [1, 1]} : vector<6x32xf32> to vector<1x32xf32>
    %347 = vector.extract_strided_slice %344 {offsets = [2, 0], sizes = [1, 32], strides = [1, 1]} : vector<6x32xf32> to vector<1x32xf32>
    %348 = vector.extract_strided_slice %344 {offsets = [3, 0], sizes = [1, 32], strides = [1, 1]} : vector<6x32xf32> to vector<1x32xf32>
    %349 = vector.extract_strided_slice %344 {offsets = [4, 0], sizes = [1, 32], strides = [1, 1]} : vector<6x32xf32> to vector<1x32xf32>
    %350 = vector.extract_strided_slice %344 {offsets = [5, 0], sizes = [1, 32], strides = [1, 1]} : vector<6x32xf32> to vector<1x32xf32>
    %cst_148 = arith.constant dense<0.000000e+00> : vector<16x96xf32>
    %351 = tpu.matmul %330, %332, %cst_148 {dimension_numbers = #tpu.dot_dimension_numbers<[1], [0], [0], [1], [0, 0, 1, 1], [], []>} : vector<16x32xf32>, vector<32x96xf32>, vector<16x96xf32> -> vector<16x96xf32>
    %352 = vector.broadcast %334 : vector<1x96xf32> to vector<16x96xf32>
    %353 = arith.addf %351, %352 : vector<16x96xf32>
    %354 = vector.extract_strided_slice %353 {offsets = [0, 0], sizes = [16, 32], strides = [1, 1]} : vector<16x96xf32> to vector<16x32xf32>
    %cst_149 = arith.constant 0.353553385 : f32
    %355 = vector.broadcast %cst_149 : f32 to vector<16x32xf32>
    %356 = arith.mulf %354, %355 : vector<16x32xf32>
    %357 = vector.extract_strided_slice %353 {offsets = [0, 32], sizes = [16, 32], strides = [1, 1]} : vector<16x96xf32> to vector<16x32xf32>
    %358 = vector.extract_strided_slice %353 {offsets = [0, 64], sizes = [16, 32], strides = [1, 1]} : vector<16x96xf32> to vector<16x32xf32>
    %cst_150 = arith.constant 0.000000e+00 : f32
    %359 = vector.broadcast %cst_150 : f32 to vector<16x32xf32>
    %360 = vector.extract_strided_slice %356 {offsets = [0, 0], sizes = [8, 8], strides = [1, 1]} : vector<16x32xf32> to vector<8x8xf32>
    %361 = vector.extract_strided_slice %357 {offsets = [0, 0], sizes = [8, 8], strides = [1, 1]} : vector<16x32xf32> to vector<8x8xf32>
    %362 = vector.extract_strided_slice %358 {offsets = [0, 0], sizes = [8, 8], strides = [1, 1]} : vector<16x32xf32> to vector<8x8xf32>
    %cst_151 = arith.constant dense<0.000000e+00> : vector<8x8xf32>
    %363 = tpu.matmul %360, %361, %cst_151 {dimension_numbers = #tpu.dot_dimension_numbers<[1], [1], [0], [0], [0, 0, 1, 0], [], []>} : vector<8x8xf32>, vector<8x8xf32>, vector<8x8xf32> -> vector<8x8xf32>
    %cst_152 = arith.constant dense<0xFF800000> : vector<8xf32>
    %364 = vector.multi_reduction <maximumf>, %363, %cst_152 [1] : vector<8x8xf32> to vector<8xf32>
    %365 = vector.shape_cast %364 : vector<8xf32> to vector<8x1xf32>
    %366 = vector.broadcast %365 : vector<8x1xf32> to vector<8x8xf32>
    %367 = arith.subf %363, %366 : vector<8x8xf32>
    %368 = math.exp %367 : vector<8x8xf32>
    %cst_153 = arith.constant dense<0.000000e+00> : vector<8xf32>
    %369 = vector.multi_reduction <add>, %368, %cst_153 [1] : vector<8x8xf32> to vector<8xf32>
    %370 = vector.shape_cast %369 : vector<8xf32> to vector<8x1xf32>
    %371 = tpu.reciprocal %370 {approx = true} : vector<8x1xf32> -> vector<8x1xf32>
    %372 = vector.broadcast %371 : vector<8x1xf32> to vector<8x8xf32>
    %373 = arith.mulf %368, %372 : vector<8x8xf32>
    %cst_154 = arith.constant dense<0.000000e+00> : vector<8x8xf32>
    %374 = tpu.matmul %373, %362, %cst_154 {dimension_numbers = #tpu.dot_dimension_numbers<[1], [0], [0], [1], [0, 0, 1, 1], [], []>} : vector<8x8xf32>, vector<8x8xf32>, vector<8x8xf32> -> vector<8x8xf32>
    %375 = vector.extract_strided_slice %356 {offsets = [8, 0], sizes = [8, 8], strides = [1, 1]} : vector<16x32xf32> to vector<8x8xf32>
    %376 = vector.extract_strided_slice %357 {offsets = [8, 0], sizes = [8, 8], strides = [1, 1]} : vector<16x32xf32> to vector<8x8xf32>
    %377 = vector.extract_strided_slice %358 {offsets = [8, 0], sizes = [8, 8], strides = [1, 1]} : vector<16x32xf32> to vector<8x8xf32>
    %cst_155 = arith.constant dense<0.000000e+00> : vector<8x8xf32>
    %378 = tpu.matmul %375, %376, %cst_155 {dimension_numbers = #tpu.dot_dimension_numbers<[1], [1], [0], [0], [0, 0, 1, 0], [], []>} : vector<8x8xf32>, vector<8x8xf32>, vector<8x8xf32> -> vector<8x8xf32>
    %cst_156 = arith.constant dense<0xFF800000> : vector<8xf32>
    %379 = vector.multi_reduction <maximumf>, %378, %cst_156 [1] : vector<8x8xf32> to vector<8xf32>
    %380 = vector.shape_cast %379 : vector<8xf32> to vector<8x1xf32>
    %381 = vector.broadcast %380 : vector<8x1xf32> to vector<8x8xf32>
    %382 = arith.subf %378, %381 : vector<8x8xf32>
    %383 = math.exp %382 : vector<8x8xf32>
    %cst_157 = arith.constant dense<0.000000e+00> : vector<8xf32>
    %384 = vector.multi_reduction <add>, %383, %cst_157 [1] : vector<8x8xf32> to vector<8xf32>
    %385 = vector.shape_cast %384 : vector<8xf32> to vector<8x1xf32>
    %386 = tpu.reciprocal %385 {approx = true} : vector<8x1xf32> -> vector<8x1xf32>
    %387 = vector.broadcast %386 : vector<8x1xf32> to vector<8x8xf32>
    %388 = arith.mulf %383, %387 : vector<8x8xf32>
    %cst_158 = arith.constant dense<0.000000e+00> : vector<8x8xf32>
    %389 = tpu.matmul %388, %377, %cst_158 {dimension_numbers = #tpu.dot_dimension_numbers<[1], [0], [0], [1], [0, 0, 1, 1], [], []>} : vector<8x8xf32>, vector<8x8xf32>, vector<8x8xf32> -> vector<8x8xf32>
    %390 = tpu.concatenate %374, %389 in 0 : vector<8x8xf32>, vector<8x8xf32> -> vector<16x8xf32>
    %391 = vector.extract_strided_slice %336 {offsets = [0, 0], sizes = [8, 32], strides = [1, 1]} : vector<32x32xf32> to vector<8x32xf32>
    %cst_159 = arith.constant dense<0.000000e+00> : vector<16x32xf32>
    %392 = tpu.matmul %390, %391, %cst_159 {dimension_numbers = #tpu.dot_dimension_numbers<[1], [0], [0], [1], [0, 0, 1, 1], [], []>} : vector<16x8xf32>, vector<8x32xf32>, vector<16x32xf32> -> vector<16x32xf32>
    %393 = arith.addf %359, %392 : vector<16x32xf32>
    %394 = vector.extract_strided_slice %356 {offsets = [0, 8], sizes = [8, 8], strides = [1, 1]} : vector<16x32xf32> to vector<8x8xf32>
    %395 = vector.extract_strided_slice %357 {offsets = [0, 8], sizes = [8, 8], strides = [1, 1]} : vector<16x32xf32> to vector<8x8xf32>
    %396 = vector.extract_strided_slice %358 {offsets = [0, 8], sizes = [8, 8], strides = [1, 1]} : vector<16x32xf32> to vector<8x8xf32>
    %cst_160 = arith.constant dense<0.000000e+00> : vector<8x8xf32>
    %397 = tpu.matmul %394, %395, %cst_160 {dimension_numbers = #tpu.dot_dimension_numbers<[1], [1], [0], [0], [0, 0, 1, 0], [], []>} : vector<8x8xf32>, vector<8x8xf32>, vector<8x8xf32> -> vector<8x8xf32>
    %cst_161 = arith.constant dense<0xFF800000> : vector<8xf32>
    %398 = vector.multi_reduction <maximumf>, %397, %cst_161 [1] : vector<8x8xf32> to vector<8xf32>
    %399 = vector.shape_cast %398 : vector<8xf32> to vector<8x1xf32>
    %400 = vector.broadcast %399 : vector<8x1xf32> to vector<8x8xf32>
    %401 = arith.subf %397, %400 : vector<8x8xf32>
    %402 = math.exp %401 : vector<8x8xf32>
    %cst_162 = arith.constant dense<0.000000e+00> : vector<8xf32>
    %403 = vector.multi_reduction <add>, %402, %cst_162 [1] : vector<8x8xf32> to vector<8xf32>
    %404 = vector.shape_cast %403 : vector<8xf32> to vector<8x1xf32>
    %405 = tpu.reciprocal %404 {approx = true} : vector<8x1xf32> -> vector<8x1xf32>
    %406 = vector.broadcast %405 : vector<8x1xf32> to vector<8x8xf32>
    %407 = arith.mulf %402, %406 : vector<8x8xf32>
    %cst_163 = arith.constant dense<0.000000e+00> : vector<8x8xf32>
    %408 = tpu.matmul %407, %396, %cst_163 {dimension_numbers = #tpu.dot_dimension_numbers<[1], [0], [0], [1], [0, 0, 1, 1], [], []>} : vector<8x8xf32>, vector<8x8xf32>, vector<8x8xf32> -> vector<8x8xf32>
    %409 = vector.extract_strided_slice %356 {offsets = [8, 8], sizes = [8, 8], strides = [1, 1]} : vector<16x32xf32> to vector<8x8xf32>
    %410 = vector.extract_strided_slice %357 {offsets = [8, 8], sizes = [8, 8], strides = [1, 1]} : vector<16x32xf32> to vector<8x8xf32>
    %411 = vector.extract_strided_slice %358 {offsets = [8, 8], sizes = [8, 8], strides = [1, 1]} : vector<16x32xf32> to vector<8x8xf32>
    %cst_164 = arith.constant dense<0.000000e+00> : vector<8x8xf32>
    %412 = tpu.matmul %409, %410, %cst_164 {dimension_numbers = #tpu.dot_dimension_numbers<[1], [1], [0], [0], [0, 0, 1, 0], [], []>} : vector<8x8xf32>, vector<8x8xf32>, vector<8x8xf32> -> vector<8x8xf32>
    %cst_165 = arith.constant dense<0xFF800000> : vector<8xf32>
    %413 = vector.multi_reduction <maximumf>, %412, %cst_165 [1] : vector<8x8xf32> to vector<8xf32>
    %414 = vector.shape_cast %413 : vector<8xf32> to vector<8x1xf32>
    %415 = vector.broadcast %414 : vector<8x1xf32> to vector<8x8xf32>
    %416 = arith.subf %412, %415 : vector<8x8xf32>
    %417 = math.exp %416 : vector<8x8xf32>
    %cst_166 = arith.constant dense<0.000000e+00> : vector<8xf32>
    %418 = vector.multi_reduction <add>, %417, %cst_166 [1] : vector<8x8xf32> to vector<8xf32>
    %419 = vector.shape_cast %418 : vector<8xf32> to vector<8x1xf32>
    %420 = tpu.reciprocal %419 {approx = true} : vector<8x1xf32> -> vector<8x1xf32>
    %421 = vector.broadcast %420 : vector<8x1xf32> to vector<8x8xf32>
    %422 = arith.mulf %417, %421 : vector<8x8xf32>
    %cst_167 = arith.constant dense<0.000000e+00> : vector<8x8xf32>
    %423 = tpu.matmul %422, %411, %cst_167 {dimension_numbers = #tpu.dot_dimension_numbers<[1], [0], [0], [1], [0, 0, 1, 1], [], []>} : vector<8x8xf32>, vector<8x8xf32>, vector<8x8xf32> -> vector<8x8xf32>
    %424 = tpu.concatenate %408, %423 in 0 : vector<8x8xf32>, vector<8x8xf32> -> vector<16x8xf32>
    %425 = vector.extract_strided_slice %336 {offsets = [8, 0], sizes = [8, 32], strides = [1, 1]} : vector<32x32xf32> to vector<8x32xf32>
    %cst_168 = arith.constant dense<0.000000e+00> : vector<16x32xf32>
    %426 = tpu.matmul %424, %425, %cst_168 {dimension_numbers = #tpu.dot_dimension_numbers<[1], [0], [0], [1], [0, 0, 1, 1], [], []>} : vector<16x8xf32>, vector<8x32xf32>, vector<16x32xf32> -> vector<16x32xf32>
    %427 = arith.addf %393, %426 : vector<16x32xf32>
    %428 = vector.extract_strided_slice %356 {offsets = [0, 16], sizes = [8, 8], strides = [1, 1]} : vector<16x32xf32> to vector<8x8xf32>
    %429 = vector.extract_strided_slice %357 {offsets = [0, 16], sizes = [8, 8], strides = [1, 1]} : vector<16x32xf32> to vector<8x8xf32>
    %430 = vector.extract_strided_slice %358 {offsets = [0, 16], sizes = [8, 8], strides = [1, 1]} : vector<16x32xf32> to vector<8x8xf32>
    %cst_169 = arith.constant dense<0.000000e+00> : vector<8x8xf32>
    %431 = tpu.matmul %428, %429, %cst_169 {dimension_numbers = #tpu.dot_dimension_numbers<[1], [1], [0], [0], [0, 0, 1, 0], [], []>} : vector<8x8xf32>, vector<8x8xf32>, vector<8x8xf32> -> vector<8x8xf32>
    %cst_170 = arith.constant dense<0xFF800000> : vector<8xf32>
    %432 = vector.multi_reduction <maximumf>, %431, %cst_170 [1] : vector<8x8xf32> to vector<8xf32>
    %433 = vector.shape_cast %432 : vector<8xf32> to vector<8x1xf32>
    %434 = vector.broadcast %433 : vector<8x1xf32> to vector<8x8xf32>
    %435 = arith.subf %431, %434 : vector<8x8xf32>
    %436 = math.exp %435 : vector<8x8xf32>
    %cst_171 = arith.constant dense<0.000000e+00> : vector<8xf32>
    %437 = vector.multi_reduction <add>, %436, %cst_171 [1] : vector<8x8xf32> to vector<8xf32>
    %438 = vector.shape_cast %437 : vector<8xf32> to vector<8x1xf32>
    %439 = tpu.reciprocal %438 {approx = true} : vector<8x1xf32> -> vector<8x1xf32>
    %440 = vector.broadcast %439 : vector<8x1xf32> to vector<8x8xf32>
    %441 = arith.mulf %436, %440 : vector<8x8xf32>
    %cst_172 = arith.constant dense<0.000000e+00> : vector<8x8xf32>
    %442 = tpu.matmul %441, %430, %cst_172 {dimension_numbers = #tpu.dot_dimension_numbers<[1], [0], [0], [1], [0, 0, 1, 1], [], []>} : vector<8x8xf32>, vector<8x8xf32>, vector<8x8xf32> -> vector<8x8xf32>
    %443 = vector.extract_strided_slice %356 {offsets = [8, 16], sizes = [8, 8], strides = [1, 1]} : vector<16x32xf32> to vector<8x8xf32>
    %444 = vector.extract_strided_slice %357 {offsets = [8, 16], sizes = [8, 8], strides = [1, 1]} : vector<16x32xf32> to vector<8x8xf32>
    %445 = vector.extract_strided_slice %358 {offsets = [8, 16], sizes = [8, 8], strides = [1, 1]} : vector<16x32xf32> to vector<8x8xf32>
    %cst_173 = arith.constant dense<0.000000e+00> : vector<8x8xf32>
    %446 = tpu.matmul %443, %444, %cst_173 {dimension_numbers = #tpu.dot_dimension_numbers<[1], [1], [0], [0], [0, 0, 1, 0], [], []>} : vector<8x8xf32>, vector<8x8xf32>, vector<8x8xf32> -> vector<8x8xf32>
    %cst_174 = arith.constant dense<0xFF800000> : vector<8xf32>
    %447 = vector.multi_reduction <maximumf>, %446, %cst_174 [1] : vector<8x8xf32> to vector<8xf32>
    %448 = vector.shape_cast %447 : vector<8xf32> to vector<8x1xf32>
    %449 = vector.broadcast %448 : vector<8x1xf32> to vector<8x8xf32>
    %450 = arith.subf %446, %449 : vector<8x8xf32>
    %451 = math.exp %450 : vector<8x8xf32>
    %cst_175 = arith.constant dense<0.000000e+00> : vector<8xf32>
    %452 = vector.multi_reduction <add>, %451, %cst_175 [1] : vector<8x8xf32> to vector<8xf32>
    %453 = vector.shape_cast %452 : vector<8xf32> to vector<8x1xf32>
    %454 = tpu.reciprocal %453 {approx = true} : vector<8x1xf32> -> vector<8x1xf32>
    %455 = vector.broadcast %454 : vector<8x1xf32> to vector<8x8xf32>
    %456 = arith.mulf %451, %455 : vector<8x8xf32>
    %cst_176 = arith.constant dense<0.000000e+00> : vector<8x8xf32>
    %457 = tpu.matmul %456, %445, %cst_176 {dimension_numbers = #tpu.dot_dimension_numbers<[1], [0], [0], [1], [0, 0, 1, 1], [], []>} : vector<8x8xf32>, vector<8x8xf32>, vector<8x8xf32> -> vector<8x8xf32>
    %458 = tpu.concatenate %442, %457 in 0 : vector<8x8xf32>, vector<8x8xf32> -> vector<16x8xf32>
    %459 = vector.extract_strided_slice %336 {offsets = [16, 0], sizes = [8, 32], strides = [1, 1]} : vector<32x32xf32> to vector<8x32xf32>
    %cst_177 = arith.constant dense<0.000000e+00> : vector<16x32xf32>
    %460 = tpu.matmul %458, %459, %cst_177 {dimension_numbers = #tpu.dot_dimension_numbers<[1], [0], [0], [1], [0, 0, 1, 1], [], []>} : vector<16x8xf32>, vector<8x32xf32>, vector<16x32xf32> -> vector<16x32xf32>
    %461 = arith.addf %427, %460 : vector<16x32xf32>
    %462 = vector.extract_strided_slice %356 {offsets = [0, 24], sizes = [8, 8], strides = [1, 1]} : vector<16x32xf32> to vector<8x8xf32>
    %463 = vector.extract_strided_slice %357 {offsets = [0, 24], sizes = [8, 8], strides = [1, 1]} : vector<16x32xf32> to vector<8x8xf32>
    %464 = vector.extract_strided_slice %358 {offsets = [0, 24], sizes = [8, 8], strides = [1, 1]} : vector<16x32xf32> to vector<8x8xf32>
    %cst_178 = arith.constant dense<0.000000e+00> : vector<8x8xf32>
    %465 = tpu.matmul %462, %463, %cst_178 {dimension_numbers = #tpu.dot_dimension_numbers<[1], [1], [0], [0], [0, 0, 1, 0], [], []>} : vector<8x8xf32>, vector<8x8xf32>, vector<8x8xf32> -> vector<8x8xf32>
    %cst_179 = arith.constant dense<0xFF800000> : vector<8xf32>
    %466 = vector.multi_reduction <maximumf>, %465, %cst_179 [1] : vector<8x8xf32> to vector<8xf32>
    %467 = vector.shape_cast %466 : vector<8xf32> to vector<8x1xf32>
    %468 = vector.broadcast %467 : vector<8x1xf32> to vector<8x8xf32>
    %469 = arith.subf %465, %468 : vector<8x8xf32>
    %470 = math.exp %469 : vector<8x8xf32>
    %cst_180 = arith.constant dense<0.000000e+00> : vector<8xf32>
    %471 = vector.multi_reduction <add>, %470, %cst_180 [1] : vector<8x8xf32> to vector<8xf32>
    %472 = vector.shape_cast %471 : vector<8xf32> to vector<8x1xf32>
    %473 = tpu.reciprocal %472 {approx = true} : vector<8x1xf32> -> vector<8x1xf32>
    %474 = vector.broadcast %473 : vector<8x1xf32> to vector<8x8xf32>
    %475 = arith.mulf %470, %474 : vector<8x8xf32>
    %cst_181 = arith.constant dense<0.000000e+00> : vector<8x8xf32>
    %476 = tpu.matmul %475, %464, %cst_181 {dimension_numbers = #tpu.dot_dimension_numbers<[1], [0], [0], [1], [0, 0, 1, 1], [], []>} : vector<8x8xf32>, vector<8x8xf32>, vector<8x8xf32> -> vector<8x8xf32>
    %477 = vector.extract_strided_slice %356 {offsets = [8, 24], sizes = [8, 8], strides = [1, 1]} : vector<16x32xf32> to vector<8x8xf32>
    %478 = vector.extract_strided_slice %357 {offsets = [8, 24], sizes = [8, 8], strides = [1, 1]} : vector<16x32xf32> to vector<8x8xf32>
    %479 = vector.extract_strided_slice %358 {offsets = [8, 24], sizes = [8, 8], strides = [1, 1]} : vector<16x32xf32> to vector<8x8xf32>
    %cst_182 = arith.constant dense<0.000000e+00> : vector<8x8xf32>
    %480 = tpu.matmul %477, %478, %cst_182 {dimension_numbers = #tpu.dot_dimension_numbers<[1], [1], [0], [0], [0, 0, 1, 0], [], []>} : vector<8x8xf32>, vector<8x8xf32>, vector<8x8xf32> -> vector<8x8xf32>
    %cst_183 = arith.constant dense<0xFF800000> : vector<8xf32>
    %481 = vector.multi_reduction <maximumf>, %480, %cst_183 [1] : vector<8x8xf32> to vector<8xf32>
    %482 = vector.shape_cast %481 : vector<8xf32> to vector<8x1xf32>
    %483 = vector.broadcast %482 : vector<8x1xf32> to vector<8x8xf32>
    %484 = arith.subf %480, %483 : vector<8x8xf32>
    %485 = math.exp %484 : vector<8x8xf32>
    %cst_184 = arith.constant dense<0.000000e+00> : vector<8xf32>
    %486 = vector.multi_reduction <add>, %485, %cst_184 [1] : vector<8x8xf32> to vector<8xf32>
    %487 = vector.shape_cast %486 : vector<8xf32> to vector<8x1xf32>
    %488 = tpu.reciprocal %487 {approx = true} : vector<8x1xf32> -> vector<8x1xf32>
    %489 = vector.broadcast %488 : vector<8x1xf32> to vector<8x8xf32>
    %490 = arith.mulf %485, %489 : vector<8x8xf32>
    %cst_185 = arith.constant dense<0.000000e+00> : vector<8x8xf32>
    %491 = tpu.matmul %490, %479, %cst_185 {dimension_numbers = #tpu.dot_dimension_numbers<[1], [0], [0], [1], [0, 0, 1, 1], [], []>} : vector<8x8xf32>, vector<8x8xf32>, vector<8x8xf32> -> vector<8x8xf32>
    %492 = tpu.concatenate %476, %491 in 0 : vector<8x8xf32>, vector<8x8xf32> -> vector<16x8xf32>
    %493 = vector.extract_strided_slice %336 {offsets = [24, 0], sizes = [8, 32], strides = [1, 1]} : vector<32x32xf32> to vector<8x32xf32>
    %cst_186 = arith.constant dense<0.000000e+00> : vector<16x32xf32>
    %494 = tpu.matmul %492, %493, %cst_186 {dimension_numbers = #tpu.dot_dimension_numbers<[1], [0], [0], [1], [0, 0, 1, 1], [], []>} : vector<16x8xf32>, vector<8x32xf32>, vector<16x32xf32> -> vector<16x32xf32>
    %495 = arith.addf %461, %494 : vector<16x32xf32>
    %496 = vector.broadcast %345 : vector<1x32xf32> to vector<16x32xf32>
    %497 = arith.addf %495, %496 : vector<16x32xf32>
    %498 = arith.addf %330, %497 : vector<16x32xf32>
    %cst_187 = arith.constant dense<0.000000e+00> : vector<16xf32>
    %499 = vector.multi_reduction <add>, %498, %cst_187 [1] : vector<16x32xf32> to vector<16xf32>
    %500 = vector.shape_cast %499 : vector<16xf32> to vector<16x1xf32>
    %cst_188 = arith.constant 3.200000e+01 : f32
    %501 = vector.broadcast %cst_188 : f32 to vector<16x1xf32>
    %502 = arith.divf %500, %501 : vector<16x1xf32>
    %503 = vector.broadcast %502 : vector<16x1xf32> to vector<16x32xf32>
    %504 = arith.subf %498, %503 : vector<16x32xf32>
    %505 = arith.mulf %504, %504 : vector<16x32xf32>
    %cst_189 = arith.constant dense<0.000000e+00> : vector<16xf32>
    %506 = vector.multi_reduction <add>, %505, %cst_189 [1] : vector<16x32xf32> to vector<16xf32>
    %507 = vector.shape_cast %506 : vector<16xf32> to vector<16x1xf32>
    %cst_190 = arith.constant 3.200000e+01 : f32
    %508 = vector.broadcast %cst_190 : f32 to vector<16x1xf32>
    %509 = arith.divf %507, %508 : vector<16x1xf32>
    %510 = vector.broadcast %502 : vector<16x1xf32> to vector<16x32xf32>
    %511 = arith.subf %498, %510 : vector<16x32xf32>
    %cst_191 = arith.constant 9.99999974E-6 : f32
    %512 = vector.broadcast %cst_191 : f32 to vector<16x1xf32>
    %513 = arith.addf %509, %512 : vector<16x1xf32>
    %514 = math.rsqrt %513 : vector<16x1xf32>
    %515 = vector.broadcast %514 : vector<16x1xf32> to vector<16x32xf32>
    %516 = arith.mulf %511, %515 : vector<16x32xf32>
    %517 = vector.broadcast %346 : vector<1x32xf32> to vector<16x32xf32>
    %518 = arith.mulf %516, %517 : vector<16x32xf32>
    %519 = vector.broadcast %347 : vector<1x32xf32> to vector<16x32xf32>
    %520 = arith.addf %518, %519 : vector<16x32xf32>
    %cst_192 = arith.constant dense<0.000000e+00> : vector<16x64xf32>
    %521 = tpu.matmul %520, %338, %cst_192 {dimension_numbers = #tpu.dot_dimension_numbers<[1], [0], [0], [1], [0, 0, 1, 1], [], []>} : vector<16x32xf32>, vector<32x64xf32>, vector<16x64xf32> -> vector<16x64xf32>
    %522 = vector.broadcast %340 : vector<1x64xf32> to vector<16x64xf32>
    %523 = arith.addf %521, %522 : vector<16x64xf32>
    %cst_193 = arith.constant 0.000000e+00 : f32
    %524 = vector.broadcast %cst_193 : f32 to vector<16x64xf32>
    %525 = arith.maximumf %523, %524 : vector<16x64xf32>
    %cst_194 = arith.constant dense<0.000000e+00> : vector<16x32xf32>
    %526 = tpu.matmul %525, %342, %cst_194 {dimension_numbers = #tpu.dot_dimension_numbers<[1], [0], [0], [1], [0, 0, 1, 1], [], []>} : vector<16x64xf32>, vector<64x32xf32>, vector<16x32xf32> -> vector<16x32xf32>
    %527 = vector.broadcast %348 : vector<1x32xf32> to vector<16x32xf32>
    %528 = arith.addf %526, %527 : vector<16x32xf32>
    %529 = arith.addf %520, %528 : vector<16x32xf32>
    %cst_195 = arith.constant dense<0.000000e+00> : vector<16xf32>
    %530 = vector.multi_reduction <add>, %529, %cst_195 [1] : vector<16x32xf32> to vector<16xf32>
    %531 = vector.shape_cast %530 : vector<16xf32> to vector<16x1xf32>
    %cst_196 = arith.constant 3.200000e+01 : f32
    %532 = vector.broadcast %cst_196 : f32 to vector<16x1xf32>
    %533 = arith.divf %531, %532 : vector<16x1xf32>
    %534 = vector.broadcast %533 : vector<16x1xf32> to vector<16x32xf32>
    %535 = arith.subf %529, %534 : vector<16x32xf32>
    %536 = arith.mulf %535, %535 : vector<16x32xf32>
    %cst_197 = arith.constant dense<0.000000e+00> : vector<16xf32>
    %537 = vector.multi_reduction <add>, %536, %cst_197 [1] : vector<16x32xf32> to vector<16xf32>
    %538 = vector.shape_cast %537 : vector<16xf32> to vector<16x1xf32>
    %cst_198 = arith.constant 3.200000e+01 : f32
    %539 = vector.broadcast %cst_198 : f32 to vector<16x1xf32>
    %540 = arith.divf %538, %539 : vector<16x1xf32>
    %541 = vector.broadcast %533 : vector<16x1xf32> to vector<16x32xf32>
    %542 = arith.subf %529, %541 : vector<16x32xf32>
    %cst_199 = arith.constant 9.99999974E-6 : f32
    %543 = vector.broadcast %cst_199 : f32 to vector<16x1xf32>
    %544 = arith.addf %540, %543 : vector<16x1xf32>
    %545 = math.rsqrt %544 : vector<16x1xf32>
    %546 = vector.broadcast %545 : vector<16x1xf32> to vector<16x32xf32>
    %547 = arith.mulf %542, %546 : vector<16x32xf32>
    %548 = vector.broadcast %349 : vector<1x32xf32> to vector<16x32xf32>
    %549 = arith.mulf %547, %548 : vector<16x32xf32>
    %550 = vector.broadcast %350 : vector<1x32xf32> to vector<16x32xf32>
    %551 = arith.addf %549, %550 : vector<16x32xf32>
    %c0_200 = arith.constant 0 : index
    %c0_201 = arith.constant 0 : index
    %552 = vector.load %arg16[%c0_200, %c0_201] : memref<2x32xf32, #tpu.memory_space<vmem>>, vector<1x32xf32>
    %c1_202 = arith.constant 1 : index
    %c0_203 = arith.constant 0 : index
    %553 = vector.load %arg16[%c1_202, %c0_203] : memref<2x32xf32, #tpu.memory_space<vmem>>, vector<1x32xf32>
    %cst_204 = arith.constant dense<0.000000e+00> : vector<16xf32>
    %554 = vector.multi_reduction <add>, %551, %cst_204 [1] : vector<16x32xf32> to vector<16xf32>
    %555 = vector.shape_cast %554 : vector<16xf32> to vector<16x1xf32>
    %cst_205 = arith.constant 3.200000e+01 : f32
    %556 = vector.broadcast %cst_205 : f32 to vector<16x1xf32>
    %557 = arith.divf %555, %556 : vector<16x1xf32>
    %558 = vector.broadcast %557 : vector<16x1xf32> to vector<16x32xf32>
    %559 = arith.subf %551, %558 : vector<16x32xf32>
    %560 = arith.mulf %559, %559 : vector<16x32xf32>
    %cst_206 = arith.constant dense<0.000000e+00> : vector<16xf32>
    %561 = vector.multi_reduction <add>, %560, %cst_206 [1] : vector<16x32xf32> to vector<16xf32>
    %562 = vector.shape_cast %561 : vector<16xf32> to vector<16x1xf32>
    %cst_207 = arith.constant 3.200000e+01 : f32
    %563 = vector.broadcast %cst_207 : f32 to vector<16x1xf32>
    %564 = arith.divf %562, %563 : vector<16x1xf32>
    %565 = vector.broadcast %557 : vector<16x1xf32> to vector<16x32xf32>
    %566 = arith.subf %551, %565 : vector<16x32xf32>
    %cst_208 = arith.constant 9.99999974E-6 : f32
    %567 = vector.broadcast %cst_208 : f32 to vector<16x1xf32>
    %568 = arith.addf %564, %567 : vector<16x1xf32>
    %569 = math.rsqrt %568 : vector<16x1xf32>
    %570 = vector.broadcast %569 : vector<16x1xf32> to vector<16x32xf32>
    %571 = arith.mulf %566, %570 : vector<16x32xf32>
    %572 = vector.broadcast %552 : vector<1x32xf32> to vector<16x32xf32>
    %573 = arith.mulf %571, %572 : vector<16x32xf32>
    %574 = vector.broadcast %553 : vector<1x32xf32> to vector<16x32xf32>
    %575 = arith.addf %573, %574 : vector<16x32xf32>
    %c0_209 = arith.constant 0 : index
    %c0_210 = arith.constant 0 : index
    %576 = vector.load %arg17[%c0_209, %c0_210] : memref<8x32xf32, #tpu.memory_space<vmem>>, vector<8x32xf32>
    %c0_211 = arith.constant 0 : index
    %c0_212 = arith.constant 0 : index
    %577 = vector.load %arg18[%c0_211, %c0_212] : memref<8x1xf32, #tpu.memory_space<vmem>>, vector<8x1xf32>
    %578 = vector.extract_strided_slice %575 {offsets = [0, 0], sizes = [8, 32], strides = [1, 1]} : vector<16x32xf32> to vector<8x32xf32>
    %cst_213 = arith.constant dense<0.000000e+00> : vector<8x8xf32>
    %579 = tpu.matmul %576, %578, %cst_213 {dimension_numbers = #tpu.dot_dimension_numbers<[1], [1], [0], [0], [0, 0, 1, 0], [], []>} : vector<8x32xf32>, vector<8x32xf32>, vector<8x8xf32> -> vector<8x8xf32>
    %580 = vector.broadcast %577 : vector<8x1xf32> to vector<8x8xf32>
    %581 = arith.addf %579, %580 : vector<8x8xf32>
    %582 = vector.broadcast %51 : vector<1x8xf32> to vector<8x8xf32>
    %583 = arith.mulf %581, %582 : vector<8x8xf32>
    %584 = vector.broadcast %35 : vector<1x8xf32> to vector<8x8xf32>
    %585 = arith.addf %583, %584 : vector<8x8xf32>
    %c0_214 = arith.constant 0 : index
    %c0_215 = arith.constant 0 : index
    %c0_216 = arith.constant 0 : index
    %586 = vector.load %arg19[%c0_214, %c0_215, %c0_216] : memref<2x8x8xf32, #tpu.memory_space<vmem>>, vector<1x8x8xf32>
    %587 = vector.shape_cast %586 : vector<1x8x8xf32> to vector<8x8xf32>
    %588 = vector.shape_cast %585 : vector<8x8xf32> to vector<1x8x8xf32>
    tpu.vector_store %arg19[%c0_214, %c0_215, %c0_216], %588 {strides = array<i32>} : memref<2x8x8xf32, #tpu.memory_space<vmem>>, vector<1x8x8xf32>,
    %589 = vector.extract_strided_slice %575 {offsets = [8, 0], sizes = [8, 32], strides = [1, 1]} : vector<16x32xf32> to vector<8x32xf32>
    %cst_217 = arith.constant dense<0.000000e+00> : vector<8x8xf32>
    %590 = tpu.matmul %576, %589, %cst_217 {dimension_numbers = #tpu.dot_dimension_numbers<[1], [1], [0], [0], [0, 0, 1, 0], [], []>} : vector<8x32xf32>, vector<8x32xf32>, vector<8x8xf32> -> vector<8x8xf32>
    %591 = vector.broadcast %577 : vector<8x1xf32> to vector<8x8xf32>
    %592 = arith.addf %590, %591 : vector<8x8xf32>
    %593 = vector.broadcast %97 : vector<1x8xf32> to vector<8x8xf32>
    %594 = arith.mulf %592, %593 : vector<8x8xf32>
    %595 = vector.broadcast %81 : vector<1x8xf32> to vector<8x8xf32>
    %596 = arith.addf %594, %595 : vector<8x8xf32>
    %c1_218 = arith.constant 1 : index
    %c0_219 = arith.constant 0 : index
    %c0_220 = arith.constant 0 : index
    %597 = vector.load %arg19[%c1_218, %c0_219, %c0_220] : memref<2x8x8xf32, #tpu.memory_space<vmem>>, vector<1x8x8xf32>
    %598 = vector.shape_cast %597 : vector<1x8x8xf32> to vector<8x8xf32>
    %599 = vector.shape_cast %596 : vector<8x8xf32> to vector<1x8x8xf32>
    tpu.vector_store %arg19[%c1_218, %c0_219, %c0_220], %599 {strides = array<i32>} : memref<2x8x8xf32, #tpu.memory_space<vmem>>, vector<1x8x8xf32>,
    return
  }
  func.func @transform_0(%arg0: i32) -> (i32, i32, i32) {
    %c0_i32 = arith.constant 0 : i32
    %c0_i32_0 = arith.constant 0 : i32
    %c0_i32_1 = arith.constant 0 : i32
    %c0_i32_2 = arith.constant 0 : i32
    return %c0_i32, %c0_i32_0, %c0_i32_1 : i32, i32, i32
  }
  func.func @transform_1(%arg0: i32) -> (i32, i32, i32) {
    %c0_i32 = arith.constant 0 : i32
    %c0_i32_0 = arith.constant 0 : i32
    %c0_i32_1 = arith.constant 0 : i32
    %c0_i32_2 = arith.constant 0 : i32
    return %c0_i32, %c0_i32_0, %c0_i32_1 : i32, i32, i32
  }
  func.func @transform_2(%arg0: i32) -> (i32, i32) {
    %c0_i32 = arith.constant 0 : i32
    %c0_i32_0 = arith.constant 0 : i32
    %c0_i32_1 = arith.constant 0 : i32
    return %c0_i32, %c0_i32_0 : i32, i32
  }
  func.func @transform_3(%arg0: i32) -> (i32, i32) {
    %c0_i32 = arith.constant 0 : i32
    %c0_i32_0 = arith.constant 0 : i32
    %c0_i32_1 = arith.constant 0 : i32
    return %c0_i32, %c0_i32_0 : i32, i32
  }
  func.func @transform_4(%arg0: i32) -> (i32, i32) {
    %c0_i32 = arith.constant 0 : i32
    %c0_i32_0 = arith.constant 0 : i32
    %c0_i32_1 = arith.constant 0 : i32
    return %c0_i32, %c0_i32_0 : i32, i32
  }
  func.func @transform_5(%arg0: i32) -> (i32, i32) {
    %c0_i32 = arith.constant 0 : i32
    %c0_i32_0 = arith.constant 0 : i32
    %c0_i32_1 = arith.constant 0 : i32
    return %c0_i32, %c0_i32_0 : i32, i32
  }
  func.func @transform_6(%arg0: i32) -> (i32, i32) {
    %c0_i32 = arith.constant 0 : i32
    %c0_i32_0 = arith.constant 0 : i32
    %c0_i32_1 = arith.constant 0 : i32
    return %c0_i32, %c0_i32_0 : i32, i32
  }
  func.func @transform_7(%arg0: i32) -> (i32, i32) {
    %c0_i32 = arith.constant 0 : i32
    %c0_i32_0 = arith.constant 0 : i32
    %c0_i32_1 = arith.constant 0 : i32
    return %c0_i32, %c0_i32_0 : i32, i32
  }
  func.func @transform_8(%arg0: i32) -> (i32, i32, i32) {
    %c0_i32 = arith.constant 0 : i32
    %c0_i32_0 = arith.constant 0 : i32
    %c0_i32_1 = arith.constant 0 : i32
    %c0_i32_2 = arith.constant 0 : i32
    return %c0_i32, %c0_i32_0, %c0_i32_1 : i32, i32, i32
  }
  func.func @transform_9(%arg0: i32) -> (i32, i32, i32) {
    %c0_i32 = arith.constant 0 : i32
    %c0_i32_0 = arith.constant 0 : i32
    %c0_i32_1 = arith.constant 0 : i32
    %c0_i32_2 = arith.constant 0 : i32
    return %c0_i32, %c0_i32_0, %c0_i32_1 : i32, i32, i32
  }
  func.func @transform_10(%arg0: i32) -> (i32, i32, i32) {
    %c0_i32 = arith.constant 0 : i32
    %c0_i32_0 = arith.constant 0 : i32
    %c0_i32_1 = arith.constant 0 : i32
    %c0_i32_2 = arith.constant 0 : i32
    return %c0_i32, %c0_i32_0, %c0_i32_1 : i32, i32, i32
  }
  func.func @transform_11(%arg0: i32) -> (i32, i32, i32) {
    %c0_i32 = arith.constant 0 : i32
    %c0_i32_0 = arith.constant 0 : i32
    %c0_i32_1 = arith.constant 0 : i32
    %c0_i32_2 = arith.constant 0 : i32
    return %c0_i32, %c0_i32_0, %c0_i32_1 : i32, i32, i32
  }
  func.func @transform_12(%arg0: i32) -> (i32, i32, i32) {
    %c0_i32 = arith.constant 0 : i32
    %c0_i32_0 = arith.constant 0 : i32
    %c0_i32_1 = arith.constant 0 : i32
    %c0_i32_2 = arith.constant 0 : i32
    return %c0_i32, %c0_i32_0, %c0_i32_1 : i32, i32, i32
  }
  func.func @transform_13(%arg0: i32) -> (i32, i32, i32) {
    %c0_i32 = arith.constant 0 : i32
    %c0_i32_0 = arith.constant 0 : i32
    %c0_i32_1 = arith.constant 0 : i32
    %c0_i32_2 = arith.constant 0 : i32
    return %c0_i32, %c0_i32_0, %c0_i32_1 : i32, i32, i32
  }
  func.func @transform_14(%arg0: i32) -> (i32, i32, i32) {
    %c0_i32 = arith.constant 0 : i32
    %c0_i32_0 = arith.constant 0 : i32
    %c0_i32_1 = arith.constant 0 : i32
    %c0_i32_2 = arith.constant 0 : i32
    return %c0_i32, %c0_i32_0, %c0_i32_1 : i32, i32, i32
  }
  func.func @transform_15(%arg0: i32) -> (i32, i32) {
    %c0_i32 = arith.constant 0 : i32
    %c0_i32_0 = arith.constant 0 : i32
    %c0_i32_1 = arith.constant 0 : i32
    return %c0_i32, %c0_i32_0 : i32, i32
  }
  func.func @transform_16(%arg0: i32) -> (i32, i32) {
    %c0_i32 = arith.constant 0 : i32
    %c0_i32_0 = arith.constant 0 : i32
    %c0_i32_1 = arith.constant 0 : i32
    return %c0_i32, %c0_i32_0 : i32, i32
  }
  func.func @transform_17(%arg0: i32) -> (i32, i32) {
    %c0_i32 = arith.constant 0 : i32
    %c0_i32_0 = arith.constant 0 : i32
    %c0_i32_1 = arith.constant 0 : i32
    return %c0_i32, %c0_i32_0 : i32, i32
  }
  func.func @transform_18(%arg0: i32) -> (i32, i32, i32) {
    %c0_i32 = arith.constant 0 : i32
    %c0_i32_0 = arith.constant 0 : i32
    %c0_i32_1 = arith.constant 0 : i32
    %c0_i32_2 = arith.constant 0 : i32
    return %c0_i32, %c0_i32_0, %c0_i32_1 : i32, i32, i32
  }
}

</mosaic_0001>

<llo_original>
// kernel: model_forward.1
$region0: #{model_forward.1}
  #allocation0 [shape = 'u32[]', space=smem, size = 0x4, offset = 0x4, fixed_abs, tag = 'smem constant byte address 0x4 - core index']
  #allocation1 [shape = 'u32[144,128]{1,0:T(1,128)}', space=vmem, size = 0x12000, scoped, tag = 'internal scratch']
  %s0 = inlined_call_operand.vmem [shape: f32[2,16,8], index: 0, kind: input, shape index: {}]
  %s1 = inlined_call_operand.vmem [shape: f32[2,8,16], index: 1, kind: input, shape index: {}]
  %s2 = inlined_call_operand.vmem [shape: f32[16,512], index: 2, kind: input, shape index: {}]
  %s3 = inlined_call_operand.vmem [shape: f32[16,32], index: 3, kind: input, shape index: {}]
  %s4 = inlined_call_operand.vmem [shape: f32[2,32], index: 4, kind: input, shape index: {}]
  %s5 = inlined_call_operand.vmem [shape: f32[32,32], index: 5, kind: input, shape index: {}]
  %s6 = inlined_call_operand.vmem [shape: f32[512,32], index: 6, kind: input, shape index: {}]
  %s7 = inlined_call_operand.vmem [shape: f32[8,32], index: 7, kind: input, shape index: {}]
  %s8 = inlined_call_operand.vmem [shape: f32[2,32,96], index: 8, kind: input, shape index: {}]
  %s9 = inlined_call_operand.vmem [shape: f32[2,1,96], index: 9, kind: input, shape index: {}]
  %s10 = inlined_call_operand.vmem [shape: f32[2,32,32], index: 10, kind: input, shape index: {}]
  %s11 = inlined_call_operand.vmem [shape: f32[2,32,64], index: 11, kind: input, shape index: {}]
  %s12 = inlined_call_operand.vmem [shape: f32[2,1,64], index: 12, kind: input, shape index: {}]
  %s13 = inlined_call_operand.vmem [shape: f32[2,64,32], index: 13, kind: input, shape index: {}]
  %s14 = inlined_call_operand.vmem [shape: f32[2,6,32], index: 14, kind: input, shape index: {}]
  %s15 = inlined_call_operand.vmem [shape: f32[2,32], index: 15, kind: input, shape index: {}]
  %s16 = inlined_call_operand.vmem [shape: f32[8,32], index: 16, kind: input, shape index: {}]
  %s17 = inlined_call_operand.vmem [shape: f32[8,1], index: 17, kind: input, shape index: {}]
  %s18 = inlined_call_operand.hbm [shape: f32[2,8,8], index: 18, kind: output, shape index: {}]
  %s19 = sld [smem:[#allocation0]]
  $region82: #{model_forward.1} parent=0
    _
  %s21 = ssub.s32 1, %s19
  %s22 = scalar_select 0, %s21, %s19
  $region1: #{model_forward.1} parent=0
    #allocation2 [shape = 'u8[8192]{0}', space=vmem, size = 0x2000, scoped, tag = 'output window, operand 0, single buffered']
    #allocation3 [shape = 's32[1]{0}', space=sflag, size = 0x4, scoped, tag = 'scoped memory for model_forward.1']
    %23 = vsyncpa [#allocation3], 0
    // Predicated region
    $region2: #{model_forward.1} parent=1 // pred_check
      _
    $region3: #{model_forward.1} parent=1 // pred_check_branch
      %25 = sbr.rel (0) target = $region5
    $region4: #{model_forward.1} parent=1 // pred_region
      _
    $region5: #{model_forward.1} parent=1 // pred_fallthru
      _
    // Predicated region
    $region6: #{model_forward.1} parent=1 // pred_check
      _
    $region7: #{model_forward.1} parent=1 // pred_check_branch
      %27 = sbr.rel (0) target = $region9
    $region8: #{model_forward.1} parent=1 // pred_region
      _
    $region9: #{model_forward.1} parent=1 // pred_fallthru
      _
    // Predicated region
    $region10: #{model_forward.1} parent=1 // pred_check
      _
    $region11: #{model_forward.1} parent=1 // pred_check_branch
      %29 = sbr.rel (0) target = $region13
    $region12: #{model_forward.1} parent=1 // pred_region
      _
    $region13: #{model_forward.1} parent=1 // pred_fallthru
      _
    // Predicated region
    $region14: #{model_forward.1} parent=1 // pred_check
      _
    $region15: #{model_forward.1} parent=1 // pred_check_branch
      %31 = sbr.rel (0) target = $region17
    $region16: #{model_forward.1} parent=1 // pred_region
      _
    $region17: #{model_forward.1} parent=1 // pred_fallthru
      _
    // Predicated region
    $region18: #{model_forward.1} parent=1 // pred_check
      _
    $region19: #{model_forward.1} parent=1 // pred_check_branch
      %33 = sbr.rel (0) target = $region21
    $region20: #{model_forward.1} parent=1 // pred_region
      _
    $region21: #{model_forward.1} parent=1 // pred_fallthru
      _
    // Predicated region
    $region22: #{model_forward.1} parent=1 // pred_check
      _
    $region23: #{model_forward.1} parent=1 // pred_check_branch
      %35 = sbr.rel (0) target = $region25
    $region24: #{model_forward.1} parent=1 // pred_region
      _
    $region25: #{model_forward.1} parent=1 // pred_fallthru
      _
    // Predicated region
    $region26: #{model_forward.1} parent=1 // pred_check
      _
    $region27: #{model_forward.1} parent=1 // pred_check_branch
      %37 = sbr.rel (0) target = $region29
    $region28: #{model_forward.1} parent=1 // pred_region
      _
    $region29: #{model_forward.1} parent=1 // pred_fallthru
      _
    // Predicated region
    $region30: #{model_forward.1} parent=1 // pred_check
      _
    $region31: #{model_forward.1} parent=1 // pred_check_branch
      %39 = sbr.rel (0) target = $region33
    $region32: #{model_forward.1} parent=1 // pred_region
      _
    $region33: #{model_forward.1} parent=1 // pred_fallthru
      _
    // Predicated region
    $region34: #{model_forward.1} parent=1 // pred_check
      _
    $region35: #{model_forward.1} parent=1 // pred_check_branch
      %41 = sbr.rel (0) target = $region37
    $region36: #{model_forward.1} parent=1 // pred_region
      _
    $region37: #{model_forward.1} parent=1 // pred_fallthru
      _
    // Predicated region
    $region38: #{model_forward.1} parent=1 // pred_check
      _
    $region39: #{model_forward.1} parent=1 // pred_check_branch
      %43 = sbr.rel (0) target = $region41
    $region40: #{model_forward.1} parent=1 // pred_region
      _
    $region41: #{model_forward.1} parent=1 // pred_fallthru
      _
    // Predicated region
    $region42: #{model_forward.1} parent=1 // pred_check
      _
    $region43: #{model_forward.1} parent=1 // pred_check_branch
      %45 = sbr.rel (0) target = $region45
    $region44: #{model_forward.1} parent=1 // pred_region
      _
    $region45: #{model_forward.1} parent=1 // pred_fallthru
      _
    // Predicated region
    $region46: #{model_forward.1} parent=1 // pred_check
      _
    $region47: #{model_forward.1} parent=1 // pred_check_branch
      %47 = sbr.rel (0) target = $region49
    $region48: #{model_forward.1} parent=1 // pred_region
      _
    $region49: #{model_forward.1} parent=1 // pred_fallthru
      _
    // Predicated region
    $region50: #{model_forward.1} parent=1 // pred_check
      _
    $region51: #{model_forward.1} parent=1 // pred_check_branch
      %49 = sbr.rel (0) target = $region53
    $region52: #{model_forward.1} parent=1 // pred_region
      _
    $region53: #{model_forward.1} parent=1 // pred_fallthru
      _
    // Predicated region
    $region54: #{model_forward.1} parent=1 // pred_check
      _
    $region55: #{model_forward.1} parent=1 // pred_check_branch
      %51 = sbr.rel (0) target = $region57
    $region56: #{model_forward.1} parent=1 // pred_region
      _
    $region57: #{model_forward.1} parent=1 // pred_fallthru
      _
    // Predicated region
    $region58: #{model_forward.1} parent=1 // pred_check
      _
    $region59: #{model_forward.1} parent=1 // pred_check_branch
      %53 = sbr.rel (0) target = $region61
    $region60: #{model_forward.1} parent=1 // pred_region
      _
    $region61: #{model_forward.1} parent=1 // pred_fallthru
      _
    // Predicated region
    $region62: #{model_forward.1} parent=1 // pred_check
      _
    $region63: #{model_forward.1} parent=1 // pred_check_branch
      %55 = sbr.rel (0) target = $region65
    $region64: #{model_forward.1} parent=1 // pred_region
      _
    $region65: #{model_forward.1} parent=1 // pred_fallthru
      _
    // Predicated region
    $region66: #{model_forward.1} parent=1 // pred_check
      _
    $region67: #{model_forward.1} parent=1 // pred_check_branch
      %57 = sbr.rel (0) target = $region69
    $region68: #{model_forward.1} parent=1 // pred_region
      _
    $region69: #{model_forward.1} parent=1 // pred_fallthru
      _
    // Predicated region
    $region70: #{model_forward.1} parent=1 // pred_check
      _
    $region71: #{model_forward.1} parent=1 // pred_check_branch
      %59 = sbr.rel (0) target = $region73
    $region72: #{model_forward.1} parent=1 // pred_region
      _
    $region73: #{model_forward.1} parent=1 // pred_fallthru
      _
    %v60 = vld [vmem:[%s4] sm:$0x1]
    %v61 = vld [vmem:[%s4 + $0x1] sm:$0x1]
    %v62 = vld [vmem:[%s3] sm:$0xff]
    %v63 = vld [vmem:[%s3 + $0x8] sm:$0xff]
    %v64 = vld [vmem:[%s5] sm:$0xff]
    %v65 = vld [vmem:[%s5 + $0x8] sm:$0xff]
    %v66 = vld [vmem:[%s5 + $0x10] sm:$0xff]
    %v67 = vld [vmem:[%s5 + $0x18] sm:$0xff]
    %v68 = vld [vmem:[%s6] sm:$0xff]
    %v69 = vld [vmem:[%s6 + $0x8] sm:$0xff]
    %v70 = vld [vmem:[%s6 + $0x10] sm:$0xff]
    %v71 = vld [vmem:[%s6 + $0x18] sm:$0xff]
    %v72 = vld [vmem:[%s6 + $0x20] sm:$0xff]
    %v73 = vld [vmem:[%s6 + $0x28] sm:$0xff]
    %v74 = vld [vmem:[%s6 + $0x30] sm:$0xff]
    %v75 = vld [vmem:[%s6 + $0x38] sm:$0xff]
    %v76 = vld [vmem:[%s6 + $0x40] sm:$0xff]
    %v77 = vld [vmem:[%s6 + $0x48] sm:$0xff]
    %v78 = vld [vmem:[%s6 + $0x50] sm:$0xff]
    %v79 = vld [vmem:[%s6 + $0x58] sm:$0xff]
    %v80 = vld [vmem:[%s6 + $0x60] sm:$0xff]
    %v81 = vld [vmem:[%s6 + $0x68] sm:$0xff]
    %v82 = vld [vmem:[%s6 + $0x70] sm:$0xff]
    %v83 = vld [vmem:[%s6 + $0x78] sm:$0xff]
    %v84 = vld [vmem:[%s6 + $0x80] sm:$0xff]
    %v85 = vld [vmem:[%s6 + $0x88] sm:$0xff]
    %v86 = vld [vmem:[%s6 + $0x90] sm:$0xff]
    %v87 = vld [vmem:[%s6 + $0x98] sm:$0xff]
    %v88 = vld [vmem:[%s6 + $0xa0] sm:$0xff]
    %v89 = vld [vmem:[%s6 + $0xa8] sm:$0xff]
    %v90 = vld [vmem:[%s6 + $0xb0] sm:$0xff]
    %v91 = vld [vmem:[%s6 + $0xb8] sm:$0xff]
    %v92 = vld [vmem:[%s6 + $0xc0] sm:$0xff]
    %v93 = vld [vmem:[%s6 + $0xc8] sm:$0xff]
    %v94 = vld [vmem:[%s6 + $0xd0] sm:$0xff]
    %v95 = vld [vmem:[%s6 + $0xd8] sm:$0xff]
    %v96 = vld [vmem:[%s6 + $0xe0] sm:$0xff]
    %v97 = vld [vmem:[%s6 + $0xe8] sm:$0xff]
    %v98 = vld [vmem:[%s6 + $0xf0] sm:$0xff]
    %v99 = vld [vmem:[%s6 + $0xf8] sm:$0xff]
    %v100 = vld [vmem:[%s6 + $0x100] sm:$0xff]
    %v101 = vld [vmem:[%s6 + $0x108] sm:$0xff]
    %v102 = vld [vmem:[%s6 + $0x110] sm:$0xff]
    %v103 = vld [vmem:[%s6 + $0x118] sm:$0xff]
    %v104 = vld [vmem:[%s6 + $0x120] sm:$0xff]
    %v105 = vld [vmem:[%s6 + $0x128] sm:$0xff]
    %v106 = vld [vmem:[%s6 + $0x130] sm:$0xff]
    %v107 = vld [vmem:[%s6 + $0x138] sm:$0xff]
    %v108 = vld [vmem:[%s6 + $0x140] sm:$0xff]
    %v109 = vld [vmem:[%s6 + $0x148] sm:$0xff]
    %v110 = vld [vmem:[%s6 + $0x150] sm:$0xff]
    %v111 = vld [vmem:[%s6 + $0x158] sm:$0xff]
    %v112 = vld [vmem:[%s6 + $0x160] sm:$0xff]
    %v113 = vld [vmem:[%s6 + $0x168] sm:$0xff]
    %v114 = vld [vmem:[%s6 + $0x170] sm:$0xff]
    %v115 = vld [vmem:[%s6 + $0x178] sm:$0xff]
    %v116 = vld [vmem:[%s6 + $0x180] sm:$0xff]
    %v117 = vld [vmem:[%s6 + $0x188] sm:$0xff]
    %v118 = vld [vmem:[%s6 + $0x190] sm:$0xff]
    %v119 = vld [vmem:[%s6 + $0x198] sm:$0xff]
    %v120 = vld [vmem:[%s6 + $0x1a0] sm:$0xff]
    %v121 = vld [vmem:[%s6 + $0x1a8] sm:$0xff]
    %v122 = vld [vmem:[%s6 + $0x1b0] sm:$0xff]
    %v123 = vld [vmem:[%s6 + $0x1b8] sm:$0xff]
    %v124 = vld [vmem:[%s6 + $0x1c0] sm:$0xff]
    %v125 = vld [vmem:[%s6 + $0x1c8] sm:$0xff]
    %v126 = vld [vmem:[%s6 + $0x1d0] sm:$0xff]
    %v127 = vld [vmem:[%s6 + $0x1d8] sm:$0xff]
    %v128 = vld [vmem:[%s6 + $0x1e0] sm:$0xff]
    %v129 = vld [vmem:[%s6 + $0x1e8] sm:$0xff]
    %v130 = vld [vmem:[%s6 + $0x1f0] sm:$0xff]
    %v131 = vld [vmem:[%s6 + $0x1f8] sm:$0xff]
    %v132 = vld [vmem:[%s7] sm:$0xff]
    %v133 = vld [vmem:[%s1] sm:$0xff]
    %vm134 = vcmask 130048
    %v135 = vsel %vm134, %v133, 0.0
    %136 = vadd.xlane.f32.xlu0 %v135
    %v137 = vpop.xlane.xlu0 %136
    %v138 = vrcp.pop 16.0
    %v139 = vmul.f32 %v137, %v138
    %v140 = vsub.f32 %v133, %v139
    %v141 = vsel %vm134, %v140, 0.0
    %142 = vadd.xlane.f32.xlu0 %v141
    %v143 = vpop.xlane.xlu0 %142
    %v144 = vmul.f32 %v143, %v138
    %v145 = vsub.f32 %v140, %v144
    %v146 = vmul.f32 %v145, %v145
    %v147 = vsel %vm134, %v146, 0.0
    %148 = vadd.xlane.f32.xlu0 %v147
    %v149 = vpop.xlane.xlu0 %148
    %v150 = vmul.f32 %v149, %v138
    %v151 = vadd.f32 %v150, 1e-05
    %v152 = vrsqrt.pop %v151
    %v153 = vmul.f32 %v151, %v152
    %vm154 = vcmp.eq.f32.partialorder %v151, inf
    %v155 = vsel %vm154, %v151, %v153
    %vm156 = vcmp.eq.f32.partialorder %v151, 0.0
    %v157 = vand.u32 %v151, 2147483648
    %v158 = vsel %vm156, %v157, %v155
    %v159 = vrcp.pop %v158
    %v160 = vmul.f32 %v140, %v159
    %v161 = vld [vmem:[%s0] sm:$0xff]
    %v162 = vld [vmem:[%s0 + $0x8] sm:$0xff]
    %vm163 = vcmask 64512
    %v164 = vsel %vm163, %v161, 0.0
    %v165 = vsel %vm163, %v162, 0.0
    %v166 = vadd.f32 %v164, %v165
    %v167 = vrot.slane %v166, 4
    %v168 = vadd.f32 %v166, %v167
    %v169 = vrot.slane %v168, 2
    %v170 = vadd.f32 %v168, %v169
    %v171 = vrot.slane %v170, 1
    %v172 = vadd.f32 %v170, %v171
    %v173 = vmul.f32 %v172, %v138
    %v174 = vsub.f32 %v161, %v173
    %v175 = vsub.f32 %v162, %v173
    %v176 = vsel %vm163, %v174, 0.0
    %v177 = vsel %vm163, %v175, 0.0
    %v178 = vadd.f32 %v176, %v177
    %v179 = vrot.slane %v178, 4
    %v180 = vadd.f32 %v178, %v179
    %v181 = vrot.slane %v180, 2
    %v182 = vadd.f32 %v180, %v181
    %v183 = vrot.slane %v182, 1
    %v184 = vadd.f32 %v182, %v183
    %v185 = vmul.f32 %v184, %v138
    %v186 = vsub.f32 %v174, %v185
    %v187 = vsub.f32 %v175, %v185
    %v188 = vmul.f32 %v186, %v186
    %v189 = vmul.f32 %v187, %v187
    %v190 = vsel %vm163, %v188, 0.0
    %v191 = vsel %vm163, %v189, 0.0
    %v192 = vadd.f32 %v190, %v191
    %v193 = vrot.slane %v192, 4
    %v194 = vadd.f32 %v192, %v193
    %v195 = vrot.slane %v194, 2
    %v196 = vadd.f32 %v194, %v195
    %v197 = vrot.slane %v196, 1
    %v198 = vadd.f32 %v196, %v197
    %v199 = vmul.f32 %v198, %v138
    %v200 = vadd.f32 %v199, 1e-05
    %v201 = vrsqrt.pop %v200
    %v202 = vmul.f32 %v200, %v201
    %vm203 = vcmp.eq.f32.partialorder %v200, inf
    %v204 = vsel %vm203, %v200, %v202
    %vm205 = vcmp.eq.f32.partialorder %v200, 0.0
    %v206 = vand.u32 %v200, 2147483648
    %v207 = vsel %vm205, %v206, %v204
    %s208 = scalar_lea.vmem %s1, 8
    %v209 = vld [vmem:[%s208] sm:$0xff]
    %v210 = vsel %vm134, %v209, 0.0
    %211 = vadd.xlane.f32.xlu0 %v210
    %v212 = vpop.xlane.xlu0 %211
    %v213 = vmul.f32 %v212, %v138
    %v214 = vsub.f32 %v209, %v213
    %v215 = vsel %vm134, %v214, 0.0
    %216 = vadd.xlane.f32.xlu0 %v215
    %v217 = vpop.xlane.xlu0 %216
    %v218 = vmul.f32 %v217, %v138
    %v219 = vsub.f32 %v214, %v218
    %v220 = vmul.f32 %v219, %v219
    %v221 = vsel %vm134, %v220, 0.0
    %222 = vadd.xlane.f32.xlu0 %v221
    %v223 = vpop.xlane.xlu0 %222
    %v224 = vmul.f32 %v223, %v138
    %v225 = vadd.f32 %v224, 1e-05
    %v226 = vrsqrt.pop %v225
    %v227 = vmul.f32 %v225, %v226
    %vm228 = vcmp.eq.f32.partialorder %v225, inf
    %v229 = vsel %vm228, %v225, %v227
    %vm230 = vcmp.eq.f32.partialorder %v225, 0.0
    %v231 = vand.u32 %v225, 2147483648
    %v232 = vsel %vm230, %v231, %v229
    %v233 = vrcp.pop %v232
    %v234 = vmul.f32 %v214, %v233
    %s235 = scalar_lea.vmem %s0, 16
    %v236 = vld [vmem:[%s235] sm:$0xff]
    %v237 = vld [vmem:[%s235 + $0x8] sm:$0xff]
    %v238 = vsel %vm163, %v236, 0.0
    %v239 = vsel %vm163, %v237, 0.0
    %v240 = vadd.f32 %v238, %v239
    %v241 = vrot.slane %v240, 4
    %v242 = vadd.f32 %v240, %v241
    %v243 = vrot.slane %v242, 2
    %v244 = vadd.f32 %v242, %v243
    %v245 = vrot.slane %v244, 1
    %v246 = vadd.f32 %v244, %v245
    %v247 = vmul.f32 %v246, %v138
    %v248 = vsub.f32 %v236, %v247
    %v249 = vsub.f32 %v237, %v247
    %v250 = vsel %vm163, %v248, 0.0
    %v251 = vsel %vm163, %v249, 0.0
    %v252 = vadd.f32 %v250, %v251
    %v253 = vrot.slane %v252, 4
    %v254 = vadd.f32 %v252, %v253
    %v255 = vrot.slane %v254, 2
    %v256 = vadd.f32 %v254, %v255
    %v257 = vrot.slane %v256, 1
    %v258 = vadd.f32 %v256, %v257
    %v259 = vmul.f32 %v258, %v138
    %v260 = vsub.f32 %v248, %v259
    %v261 = vsub.f32 %v249, %v259
    %v262 = vmul.f32 %v260, %v260
    %v263 = vmul.f32 %v261, %v261
    %v264 = vsel %vm163, %v262, 0.0
    %v265 = vsel %vm163, %v263, 0.0
    %v266 = vadd.f32 %v264, %v265
    %v267 = vrot.slane %v266, 4
    %v268 = vadd.f32 %v266, %v267
    %v269 = vrot.slane %v268, 2
    %v270 = vadd.f32 %v268, %v269
    %v271 = vrot.slane %v270, 1
    %v272 = vadd.f32 %v270, %v271
    %v273 = vmul.f32 %v272, %v138
    %v274 = vadd.f32 %v273, 1e-05
    %v275 = vrsqrt.pop %v274
    %v276 = vmul.f32 %v274, %v275
    %vm277 = vcmp.eq.f32.partialorder %v274, inf
    %v278 = vsel %vm277, %v274, %v276
    %vm279 = vcmp.eq.f32.partialorder %v274, 0.0
    %v280 = vand.u32 %v274, 2147483648
    %v281 = vsel %vm279, %v280, %v278
    %v282 = vlaneseq
    %v283 = vshrl.u32 %v282, 7
    %v284 = vsub.s32 0, %v283
    %v285 = vrot.slane %v60, %v284
    %v287 = vsel %vm134, %v160, 0
    %v290 = vsel %vm134, %v234, 0
    %292 = vmatprep.subr.mxu0 0.0
    %293 = vmatpush1.msra.mxu0 %v62
    %294 = vmatprep.subr.mxu0 0.0
    %295 = vmatpush1.msra.mxu0 %v63
    %296 = vmatprep.subr.mxu0 0.0
    %297 = vmatpush1.msra.mxu0 0.0
    %298 = vmatprep.subr.mxu0 0.0
    %299 = vmatpush1.msra.mxu0 0.0
    %300 = vmatprep.subr.mxu0 0.0
    %301 = vmatpush1.msra.mxu0 0.0
    %302 = vmatprep.subr.mxu0 0.0
    %303 = vmatpush1.msra.mxu0 0.0
    %304 = vmatprep.subr.mxu0 0.0
    %305 = vmatpush1.msra.mxu0 0.0
    %306 = vmatprep.subr.mxu0 0.0
    %307 = vmatpush1.msra.mxu0 0.0
    %308 = vmatprep.subr.mxu0 0.0
    %309 = vmatpush1.msra.mxu0 0.0
    %310 = vmatprep.subr.mxu0 0.0
    %311 = vmatpush1.msra.mxu0 0.0
    %312 = vmatprep.subr.mxu0 0.0
    %313 = vmatpush1.msra.mxu0 0.0
    %314 = vmatprep.subr.mxu0 0.0
    %315 = vmatpush1.msra.mxu0 0.0
    %316 = vmatprep.subr.mxu0 0.0
    %317 = vmatpush1.msra.mxu0 0.0
    %318 = vmatprep.subr.mxu0 0.0
    %319 = vmatpush1.msra.mxu0 0.0
    %320 = vmatprep.subr.mxu0 0.0
    %321 = vmatpush1.msra.mxu0 0.0
    %322 = vmatprep.subr.mxu0 0.0
    %323 = vmatpush1.msra.mxu0 0.0
    %324 = vmatprep.subr.mxu0 0.0
    %325 = vmatpush1.msra.mxu0 0.0
    %326 = vmatprep.subr.mxu0 0.0
    %327 = vmatpush1.msra.mxu0 0.0
    %328 = vmatprep.subr.mxu0 0.0
    %329 = vmatpush1.msra.mxu0 0.0
    %330 = vmatprep.subr.mxu0 0.0
    %331 = vmatpush1.msra.mxu0 0.0
    %332 = vmatprep.subr.mxu0 0.0
    %333 = vmatpush1.msra.mxu0 0.0
    %334 = vmatprep.subr.mxu0 0.0
    %335 = vmatpush1.msra.mxu0 0.0
    %336 = vmatprep.subr.mxu0 0.0
    %337 = vmatpush1.msra.mxu0 0.0
    %338 = vmatprep.subr.mxu0 0.0
    %339 = vmatpush1.msra.mxu0 0.0
    %340 = vmatprep.subr.mxu0 0.0
    %341 = vmatpush1.msra.mxu0 0.0
    %342 = vmatprep.subr.mxu0 0.0
    %343 = vmatpush1.msra.mxu0 0.0
    %344 = vmatprep.subr.mxu0 0.0
    %345 = vmatpush1.msra.mxu0 0.0
    %346 = vmatprep.subr.mxu0 0.0
    %347 = vmatpush1.msra.mxu0 0.0
    %348 = vmatprep.subr.mxu0 0.0
    %349 = vmatpush1.msra.mxu0 0.0
    %350 = vmatprep.subr.mxu0 0.0
    %351 = vmatpush1.msra.mxu0 0.0
    %352 = vmatprep.subr.mxu0 0.0
    %353 = vmatpush1.msra.mxu0 0.0
    %354 = vmatprep.subr.mxu0 0.0
    %355 = vmatpush1.msra.mxu0 0.0
    %356 = vmatprep.mubr.f32.mxu0 0.0
    %357 = vmatmul.mubr.f32.gmra.mrb[0].mxu0 %v287
    %v358 = vpop.f32.mrb[0].mxu0
    %v359 = vadd.f32 %v285, %v358
    %v360 = vpop.f32.mrb[0].mxu0
    %361 = vmatprep.mubr.f32.mxu0 0.0
    %362 = vmatmul.mubr.f32.gmra.mrb[0].mxu0 %v290
    %v363 = vpop.f32.mrb[0].mxu0
    %v364 = vadd.f32 %v285, %v363
    %v365 = vpop.f32.mrb[0].mxu0
    %366 = vdwg.mxu0
    %v367 = vld [vmem:[%s2] sm:$0xff]
    %v368 = vld [vmem:[%s2 + $0x8] sm:$0xff]
    %v369 = vld [vmem:[%s2 + $0x10] sm:$0xff]
    %v370 = vld [vmem:[%s2 + $0x18] sm:$0xff]
    %v371 = vld [vmem:[%s2 + $0x20] sm:$0xff]
    %v372 = vld [vmem:[%s2 + $0x28] sm:$0xff]
    %v373 = vld [vmem:[%s2 + $0x30] sm:$0xff]
    %v374 = vld [vmem:[%s2 + $0x38] sm:$0xff]
    %375 = vmatprep.subr.mxu0 0.0
    %376 = vmatpush1.msra.mxu0 %v68
    %377 = vmatprep.subr.mxu0 0.0
    %378 = vmatpush1.msra.mxu0 %v69
    %379 = vmatprep.subr.mxu0 0.0
    %380 = vmatpush1.msra.mxu0 %v70
    %381 = vmatprep.subr.mxu0 0.0
    %382 = vmatpush1.msra.mxu0 %v71
    %383 = vmatprep.subr.mxu0 0.0
    %384 = vmatpush1.msra.mxu0 %v72
    %385 = vmatprep.subr.mxu0 0.0
    %386 = vmatpush1.msra.mxu0 %v73
    %387 = vmatprep.subr.mxu0 0.0
    %388 = vmatpush1.msra.mxu0 %v74
    %389 = vmatprep.subr.mxu0 0.0
    %390 = vmatpush1.msra.mxu0 %v75
    %391 = vmatprep.subr.mxu0 0.0
    %392 = vmatpush1.msra.mxu0 %v76
    %393 = vmatprep.subr.mxu0 0.0
    %394 = vmatpush1.msra.mxu0 %v77
    %395 = vmatprep.subr.mxu0 0.0
    %396 = vmatpush1.msra.mxu0 %v78
    %397 = vmatprep.subr.mxu0 0.0
    %398 = vmatpush1.msra.mxu0 %v79
    %399 = vmatprep.subr.mxu0 0.0
    %400 = vmatpush1.msra.mxu0 %v80
    %401 = vmatprep.subr.mxu0 0.0
    %402 = vmatpush1.msra.mxu0 %v81
    %403 = vmatprep.subr.mxu0 0.0
    %404 = vmatpush1.msra.mxu0 %v82
    %405 = vmatprep.subr.mxu0 0.0
    %406 = vmatpush1.msra.mxu0 %v83
    %407 = vmatprep.subr.mxu0 0.0
    %408 = vmatpush1.msra.mxu0 %v84
    %409 = vmatprep.subr.mxu0 0.0
    %410 = vmatpush1.msra.mxu0 %v85
    %411 = vmatprep.subr.mxu0 0.0
    %412 = vmatpush1.msra.mxu0 %v86
    %413 = vmatprep.subr.mxu0 0.0
    %414 = vmatpush1.msra.mxu0 %v87
    %415 = vmatprep.subr.mxu0 0.0
    %416 = vmatpush1.msra.mxu0 %v88
    %417 = vmatprep.subr.mxu0 0.0
    %418 = vmatpush1.msra.mxu0 %v89
    %419 = vmatprep.subr.mxu0 0.0
    %420 = vmatpush1.msra.mxu0 %v90
    %421 = vmatprep.subr.mxu0 0.0
    %422 = vmatpush1.msra.mxu0 %v91
    %423 = vmatprep.subr.mxu0 0.0
    %424 = vmatpush1.msra.mxu0 %v92
    %425 = vmatprep.subr.mxu0 0.0
    %426 = vmatpush1.msra.mxu0 %v93
    %427 = vmatprep.subr.mxu0 0.0
    %428 = vmatpush1.msra.mxu0 %v94
    %429 = vmatprep.subr.mxu0 0.0
    %430 = vmatpush1.msra.mxu0 %v95
    %431 = vmatprep.subr.mxu0 0.0
    %432 = vmatpush1.msra.mxu0 %v96
    %433 = vmatprep.subr.mxu0 0.0
    %434 = vmatpush1.msra.mxu0 %v97
    %435 = vmatprep.subr.mxu0 0.0
    %436 = vmatpush1.msra.mxu0 %v98
    %437 = vmatprep.subr.mxu0 0.0
    %438 = vmatpush1.msra.mxu0 %v99
    %439 = vmatprep.mubr.f32.mxu0 %v368
    %440 = vmatmul.mubr.f32.gmra.mrb[0].mxu0 %v367
    %v441 = vpop.f32.mrb[0].mxu0
    %v442 = vadd.f32 0.0, %v441
    %v443 = vpop.f32.mrb[0].mxu0
    %444 = vmatprep.mubr.f32.mxu0 %v372
    %445 = vmatmul.mubr.f32.gmra.mrb[0].mxu0 %v371
    %v446 = vpop.f32.mrb[0].mxu0
    %v447 = vadd.f32 0.0, %v446
    %v448 = vpop.f32.mrb[0].mxu0
    %449 = vdwg.mxu0
    %450 = vmatprep.subr.mxu0 0.0
    %451 = vmatpush1.msra.mxu0 %v100
    %452 = vmatprep.subr.mxu0 0.0
    %453 = vmatpush1.msra.mxu0 %v101
    %454 = vmatprep.subr.mxu0 0.0
    %455 = vmatpush1.msra.mxu0 %v102
    %456 = vmatprep.subr.mxu0 0.0
    %457 = vmatpush1.msra.mxu0 %v103
    %458 = vmatprep.subr.mxu0 0.0
    %459 = vmatpush1.msra.mxu0 %v104
    %460 = vmatprep.subr.mxu0 0.0
    %461 = vmatpush1.msra.mxu0 %v105
    %462 = vmatprep.subr.mxu0 0.0
    %463 = vmatpush1.msra.mxu0 %v106
    %464 = vmatprep.subr.mxu0 0.0
    %465 = vmatpush1.msra.mxu0 %v107
    %466 = vmatprep.subr.mxu0 0.0
    %467 = vmatpush1.msra.mxu0 %v108
    %468 = vmatprep.subr.mxu0 0.0
    %469 = vmatpush1.msra.mxu0 %v109
    %470 = vmatprep.subr.mxu0 0.0
    %471 = vmatpush1.msra.mxu0 %v110
    %472 = vmatprep.subr.mxu0 0.0
    %473 = vmatpush1.msra.mxu0 %v111
    %474 = vmatprep.subr.mxu0 0.0
    %475 = vmatpush1.msra.mxu0 %v112
    %476 = vmatprep.subr.mxu0 0.0
    %477 = vmatpush1.msra.mxu0 %v113
    %478 = vmatprep.subr.mxu0 0.0
    %479 = vmatpush1.msra.mxu0 %v114
    %480 = vmatprep.subr.mxu0 0.0
    %481 = vmatpush1.msra.mxu0 %v115
    %482 = vmatprep.subr.mxu0 0.0
    %483 = vmatpush1.msra.mxu0 %v116
    %484 = vmatprep.subr.mxu0 0.0
    %485 = vmatpush1.msra.mxu0 %v117
    %486 = vmatprep.subr.mxu0 0.0
    %487 = vmatpush1.msra.mxu0 %v118
    %488 = vmatprep.subr.mxu0 0.0
    %489 = vmatpush1.msra.mxu0 %v119
    %490 = vmatprep.subr.mxu0 0.0
    %491 = vmatpush1.msra.mxu0 %v120
    %492 = vmatprep.subr.mxu0 0.0
    %493 = vmatpush1.msra.mxu0 %v121
    %494 = vmatprep.subr.mxu0 0.0
    %495 = vmatpush1.msra.mxu0 %v122
    %496 = vmatprep.subr.mxu0 0.0
    %497 = vmatpush1.msra.mxu0 %v123
    %498 = vmatprep.subr.mxu0 0.0
    %499 = vmatpush1.msra.mxu0 %v124
    %500 = vmatprep.subr.mxu0 0.0
    %501 = vmatpush1.msra.mxu0 %v125
    %502 = vmatprep.subr.mxu0 0.0
    %503 = vmatpush1.msra.mxu0 %v126
    %504 = vmatprep.subr.mxu0 0.0
    %505 = vmatpush1.msra.mxu0 %v127
    %506 = vmatprep.subr.mxu0 0.0
    %507 = vmatpush1.msra.mxu0 %v128
    %508 = vmatprep.subr.mxu0 0.0
    %509 = vmatpush1.msra.mxu0 %v129
    %510 = vmatprep.subr.mxu0 0.0
    %511 = vmatpush1.msra.mxu0 %v130
    %512 = vmatprep.subr.mxu0 0.0
    %513 = vmatpush1.msra.mxu0 %v131
    %514 = vmatprep.mubr.f32.mxu0 %v370
    %515 = vmatmul.mubr.f32.gmra.mrb[0].mxu0 %v369
    %v516 = vpop.f32.mrb[0].mxu0
    %v517 = vadd.f32 %v442, %v516
    %v518 = vpop.f32.mrb[0].mxu0
    %519 = vmatprep.mubr.f32.mxu0 %v374
    %520 = vmatmul.mubr.f32.gmra.mrb[0].mxu0 %v373
    %v521 = vpop.f32.mrb[0].mxu0
    %v522 = vadd.f32 %v447, %v521
    %v523 = vpop.f32.mrb[0].mxu0
    %524 = vdwg.mxu0
    %vm525 = vcmask 261120
    %v527 = vsel %vm525, %v359, 0
    %v530 = vsel %vm525, %v364, 0
    %532 = vmatprep.subr.mxu0 0.0
    %533 = vmatpush1.msra.mxu0 %v64
    %534 = vmatprep.subr.mxu0 0.0
    %535 = vmatpush1.msra.mxu0 %v65
    %536 = vmatprep.subr.mxu0 0.0
    %537 = vmatpush1.msra.mxu0 %v66
    %538 = vmatprep.subr.mxu0 0.0
    %539 = vmatpush1.msra.mxu0 %v67
    %540 = vmatprep.subr.mxu0 0.0
    %541 = vmatpush1.msra.mxu0 0.0
    %542 = vmatprep.subr.mxu0 0.0
    %543 = vmatpush1.msra.mxu0 0.0
    %544 = vmatprep.subr.mxu0 0.0
    %545 = vmatpush1.msra.mxu0 0.0
    %546 = vmatprep.subr.mxu0 0.0
    %547 = vmatpush1.msra.mxu0 0.0
    %548 = vmatprep.subr.mxu0 0.0
    %549 = vmatpush1.msra.mxu0 0.0
    %550 = vmatprep.subr.mxu0 0.0
    %551 = vmatpush1.msra.mxu0 0.0
    %552 = vmatprep.subr.mxu0 0.0
    %553 = vmatpush1.msra.mxu0 0.0
    %554 = vmatprep.subr.mxu0 0.0
    %555 = vmatpush1.msra.mxu0 0.0
    %556 = vmatprep.subr.mxu0 0.0
    %557 = vmatpush1.msra.mxu0 0.0
    %558 = vmatprep.subr.mxu0 0.0
    %559 = vmatpush1.msra.mxu0 0.0
    %560 = vmatprep.subr.mxu0 0.0
    %561 = vmatpush1.msra.mxu0 0.0
    %562 = vmatprep.subr.mxu0 0.0
    %563 = vmatpush1.msra.mxu0 0.0
    %564 = vmatprep.subr.mxu0 0.0
    %565 = vmatpush1.msra.mxu0 0.0
    %566 = vmatprep.subr.mxu0 0.0
    %567 = vmatpush1.msra.mxu0 0.0
    %568 = vmatprep.subr.mxu0 0.0
    %569 = vmatpush1.msra.mxu0 0.0
    %570 = vmatprep.subr.mxu0 0.0
    %571 = vmatpush1.msra.mxu0 0.0
    %572 = vmatprep.subr.mxu0 0.0
    %573 = vmatpush1.msra.mxu0 0.0
    %574 = vmatprep.subr.mxu0 0.0
    %575 = vmatpush1.msra.mxu0 0.0
    %576 = vmatprep.subr.mxu0 0.0
    %577 = vmatpush1.msra.mxu0 0.0
    %578 = vmatprep.subr.mxu0 0.0
    %579 = vmatpush1.msra.mxu0 0.0
    %580 = vmatprep.subr.mxu0 0.0
    %581 = vmatpush1.msra.mxu0 0.0
    %582 = vmatprep.subr.mxu0 0.0
    %583 = vmatpush1.msra.mxu0 0.0
    %584 = vmatprep.subr.mxu0 0.0
    %585 = vmatpush1.msra.mxu0 0.0
    %586 = vmatprep.subr.mxu0 0.0
    %587 = vmatpush1.msra.mxu0 0.0
    %588 = vmatprep.subr.mxu0 0.0
    %589 = vmatpush1.msra.mxu0 0.0
    %590 = vmatprep.subr.mxu0 0.0
    %591 = vmatpush1.msra.mxu0 0.0
    %592 = vmatprep.subr.mxu0 0.0
    %593 = vmatpush1.msra.mxu0 0.0
    %594 = vmatprep.subr.mxu0 0.0
    %595 = vmatpush1.msra.mxu0 0.0
    %596 = vmatprep.mubr.f32.mxu0 0.0
    %597 = vmatmul.mubr.f32.gmra.mrb[0].mxu0 %v527
    %v598 = vpop.f32.mrb[0].mxu0
    %v599 = vadd.f32 %v517, %v598
    %v600 = vpop.f32.mrb[0].mxu0
    %601 = vmatprep.mubr.f32.mxu0 0.0
    %602 = vmatmul.mubr.f32.gmra.mrb[0].mxu0 %v530
    %v603 = vpop.f32.mrb[0].mxu0
    %v604 = vadd.f32 %v522, %v603
    %v605 = vpop.f32.mrb[0].mxu0
    %606 = vdwg.mxu0
    %v607 = vlaneseq
    %v608 = vshrl.u32 %v607, 7
    %v609 = vsub.s32 0, %v608
    %v610 = vrot.slane %v61, %v609
    %v611 = vadd.f32 %v599, %v610
    %v612 = vadd.f32 %v604, %v610
    %v613 = vadd.f32 %v611, %v132
    %v614 = vadd.f32 %v612, %v132
    %v615 = vld [vmem:[%s8] sm:$0xff]
    %v616 = vld [vmem:[%s8 + $0x8] sm:$0xff]
    %v617 = vld [vmem:[%s8 + $0x10] sm:$0xff]
    %v618 = vld [vmem:[%s8 + $0x18] sm:$0xff]
    %v619 = vld [vmem:[%s9] sm:$0x1]
    %v620 = vld [vmem:[%s10] sm:$0xff]
    %v621 = vld [vmem:[%s10 + $0x8] sm:$0xff]
    %v622 = vld [vmem:[%s10 + $0x10] sm:$0xff]
    %v623 = vld [vmem:[%s10 + $0x18] sm:$0xff]
    %v624 = vld [vmem:[%s11] sm:$0xff]
    %v625 = vld [vmem:[%s11 + $0x8] sm:$0xff]
    %v626 = vld [vmem:[%s11 + $0x10] sm:$0xff]
    %v627 = vld [vmem:[%s11 + $0x18] sm:$0xff]
    %v628 = vld [vmem:[%s12] sm:$0x1]
    %v629 = vld [vmem:[%s13] sm:$0xff]
    %v630 = vld [vmem:[%s13 + $0x8] sm:$0xff]
    %v631 = vld [vmem:[%s13 + $0x10] sm:$0xff]
    %v632 = vld [vmem:[%s13 + $0x18] sm:$0xff]
    %v633 = vld [vmem:[%s13 + $0x20] sm:$0xff]
    %v634 = vld [vmem:[%s13 + $0x28] sm:$0xff]
    %v635 = vld [vmem:[%s13 + $0x30] sm:$0xff]
    %v636 = vld [vmem:[%s13 + $0x38] sm:$0xff]
    %v637 = vld [vmem:[%s14] sm:$0x3f]
    %v639 = vlaneseq
    %v640 = vshrl.u32 %v639, 7
    %v641 = vsub.s32 0, %v640
    %v642 = vrot.slane %v619, %v641
    %v645 = vsel %vm525, %v613, 0
    %v648 = vsel %vm525, %v614, 0
    %650 = vmatprep.subr.mxu0 0.0
    %651 = vmatpush1.msra.mxu0 %v615
    %652 = vmatprep.subr.mxu0 0.0
    %653 = vmatpush1.msra.mxu0 %v616
    %654 = vmatprep.subr.mxu0 0.0
    %655 = vmatpush1.msra.mxu0 %v617
    %656 = vmatprep.subr.mxu0 0.0
    %657 = vmatpush1.msra.mxu0 %v618
    %658 = vmatprep.subr.mxu0 0.0
    %659 = vmatpush1.msra.mxu0 0.0
    %660 = vmatprep.subr.mxu0 0.0
    %661 = vmatpush1.msra.mxu0 0.0
    %662 = vmatprep.subr.mxu0 0.0
    %663 = vmatpush1.msra.mxu0 0.0
    %664 = vmatprep.subr.mxu0 0.0
    %665 = vmatpush1.msra.mxu0 0.0
    %666 = vmatprep.subr.mxu0 0.0
    %667 = vmatpush1.msra.mxu0 0.0
    %668 = vmatprep.subr.mxu0 0.0
    %669 = vmatpush1.msra.mxu0 0.0
    %670 = vmatprep.subr.mxu0 0.0
    %671 = vmatpush1.msra.mxu0 0.0
    %672 = vmatprep.subr.mxu0 0.0
    %673 = vmatpush1.msra.mxu0 0.0
    %674 = vmatprep.subr.mxu0 0.0
    %675 = vmatpush1.msra.mxu0 0.0
    %676 = vmatprep.subr.mxu0 0.0
    %677 = vmatpush1.msra.mxu0 0.0
    %678 = vmatprep.subr.mxu0 0.0
    %679 = vmatpush1.msra.mxu0 0.0
    %680 = vmatprep.subr.mxu0 0.0
    %681 = vmatpush1.msra.mxu0 0.0
    %682 = vmatprep.subr.mxu0 0.0
    %683 = vmatpush1.msra.mxu0 0.0
    %684 = vmatprep.subr.mxu0 0.0
    %685 = vmatpush1.msra.mxu0 0.0
    %686 = vmatprep.subr.mxu0 0.0
    %687 = vmatpush1.msra.mxu0 0.0
    %688 = vmatprep.subr.mxu0 0.0
    %689 = vmatpush1.msra.mxu0 0.0
    %690 = vmatprep.subr.mxu0 0.0
    %691 = vmatpush1.msra.mxu0 0.0
    %692 = vmatprep.subr.mxu0 0.0
    %693 = vmatpush1.msra.mxu0 0.0
    %694 = vmatprep.subr.mxu0 0.0
    %695 = vmatpush1.msra.mxu0 0.0
    %696 = vmatprep.subr.mxu0 0.0
    %697 = vmatpush1.msra.mxu0 0.0
    %698 = vmatprep.subr.mxu0 0.0
    %699 = vmatpush1.msra.mxu0 0.0
    %700 = vmatprep.subr.mxu0 0.0
    %701 = vmatpush1.msra.mxu0 0.0
    %702 = vmatprep.subr.mxu0 0.0
    %703 = vmatpush1.msra.mxu0 0.0
    %704 = vmatprep.subr.mxu0 0.0
    %705 = vmatpush1.msra.mxu0 0.0
    %706 = vmatprep.subr.mxu0 0.0
    %707 = vmatpush1.msra.mxu0 0.0
    %708 = vmatprep.subr.mxu0 0.0
    %709 = vmatpush1.msra.mxu0 0.0
    %710 = vmatprep.subr.mxu0 0.0
    %711 = vmatpush1.msra.mxu0 0.0
    %712 = vmatprep.subr.mxu0 0.0
    %713 = vmatpush1.msra.mxu0 0.0
    %714 = vmatprep.mubr.f32.mxu0 0.0
    %715 = vmatmul.mubr.f32.gmra.mrb[0].mxu0 %v645
    %v716 = vpop.f32.mrb[0].mxu0
    %v717 = vadd.f32 %v642, %v716
    %v718 = vpop.f32.mrb[0].mxu0
    %719 = vmatprep.mubr.f32.mxu0 0.0
    %720 = vmatmul.mubr.f32.gmra.mrb[0].mxu0 %v648
    %v721 = vpop.f32.mrb[0].mxu0
    %v722 = vadd.f32 %v642, %v721
    %v723 = vpop.f32.mrb[0].mxu0
    %724 = vdwg.mxu0
    %v725 = vmul.f32 %v717, 0.35355338
    %v726 = vmul.f32 %v722, 0.35355338
    %728 = vrot.lane.b32.xlu0 %v717, 96
    %v729 = vpop.permute.xlu0 %728
    %v731 = vsel %vm163, %v725, 0
    %v733 = vsel %vm163, %v729, 0
    %735 = vmatprep.subr.mxu0 0.0
    %736 = vmatpush1.xpose.msra.mxu0 %v733
    %737 = vmatprep.subr.mxu0 0.0
    %738 = vmatpush1.xpose.msra.mxu0 0.0
    %739 = vmatprep.subr.mxu0 0.0
    %740 = vmatpush1.xpose.msra.mxu0 0.0
    %741 = vmatprep.subr.mxu0 0.0
    %742 = vmatpush1.xpose.msra.mxu0 0.0
    %743 = vmatprep.subr.mxu0 0.0
    %744 = vmatpush1.xpose.msra.mxu0 0.0
    %745 = vmatprep.subr.mxu0 0.0
    %746 = vmatpush1.xpose.msra.mxu0 0.0
    %747 = vmatprep.subr.mxu0 0.0
    %748 = vmatpush1.xpose.msra.mxu0 0.0
    %749 = vmatprep.subr.mxu0 0.0
    %750 = vmatpush1.xpose.msra.mxu0 0.0
    %751 = vmatprep.subr.mxu0 0.0
    %752 = vmatpush1.xpose.msra.mxu0 0.0
    %753 = vmatprep.subr.mxu0 0.0
    %754 = vmatpush1.xpose.msra.mxu0 0.0
    %755 = vmatprep.subr.mxu0 0.0
    %756 = vmatpush1.xpose.msra.mxu0 0.0
    %757 = vmatprep.subr.mxu0 0.0
    %758 = vmatpush1.xpose.msra.mxu0 0.0
    %759 = vmatprep.subr.mxu0 0.0
    %760 = vmatpush1.xpose.msra.mxu0 0.0
    %761 = vmatprep.subr.mxu0 0.0
    %762 = vmatpush1.xpose.msra.mxu0 0.0
    %763 = vmatprep.subr.mxu0 0.0
    %764 = vmatpush1.xpose.msra.mxu0 0.0
    %765 = vmatprep.subr.mxu0 0.0
    %766 = vmatpush1.xpose.msra.mxu0 0.0
    %767 = vmatprep.subr.mxu0 0.0
    %768 = vmatpush1.xpose.msra.mxu0 0.0
    %769 = vmatprep.subr.mxu0 0.0
    %770 = vmatpush1.xpose.msra.mxu0 0.0
    %771 = vmatprep.subr.mxu0 0.0
    %772 = vmatpush1.xpose.msra.mxu0 0.0
    %773 = vmatprep.subr.mxu0 0.0
    %774 = vmatpush1.xpose.msra.mxu0 0.0
    %775 = vmatprep.subr.mxu0 0.0
    %776 = vmatpush1.xpose.msra.mxu0 0.0
    %777 = vmatprep.subr.mxu0 0.0
    %778 = vmatpush1.xpose.msra.mxu0 0.0
    %779 = vmatprep.subr.mxu0 0.0
    %780 = vmatpush1.xpose.msra.mxu0 0.0
    %781 = vmatprep.subr.mxu0 0.0
    %782 = vmatpush1.xpose.msra.mxu0 0.0
    %783 = vmatprep.subr.mxu0 0.0
    %784 = vmatpush1.xpose.msra.mxu0 0.0
    %785 = vmatprep.subr.mxu0 0.0
    %786 = vmatpush1.xpose.msra.mxu0 0.0
    %787 = vmatprep.subr.mxu0 0.0
    %788 = vmatpush1.xpose.msra.mxu0 0.0
    %789 = vmatprep.subr.mxu0 0.0
    %790 = vmatpush1.xpose.msra.mxu0 0.0
    %791 = vmatprep.subr.mxu0 0.0
    %792 = vmatpush1.xpose.msra.mxu0 0.0
    %793 = vmatprep.subr.mxu0 0.0
    %794 = vmatpush1.xpose.msra.mxu0 0.0
    %795 = vmatprep.subr.mxu0 0.0
    %796 = vmatpush1.xpose.msra.mxu0 0.0
    %797 = vmatprep.subr.mxu0 0.0
    %798 = vmatpush1.xpose.msra.mxu0 0.0
    %799 = vmatprep.mubr.f32.mxu0 0.0
    %800 = vmatmul.mubr.f32.gmra.mrb[0].mxu0 %v731
    %v801 = vpop.f32.mrb[0].mxu0
    %v802 = vadd.f32 0.0, %v801
    %v803 = vpop.f32.mrb[0].mxu0
    %804 = vdwg.mxu0
    %v805 = vsel %vm163, %v802, -inf
    %806 = vmax.xlane.f32.xlu0 %v805
    %v807 = vpop.xlane.xlu0 %806
    %v808 = vsub.f32 %v802, %v807
    %v809 = vmul.f32 %v808, 1.442695
    %v810 = vpow.pop %v809
    %v811 = vsel %vm163, %v810, 0.0
    %812 = vadd.xlane.f32.xlu0 %v811
    %v813 = vpop.xlane.xlu0 %812
    %v814 = vrcp.pop %v813
    %v815 = vmul.f32 %v810, %v814
    %816 = vrot.lane.b32.xlu0 %v717, 64
    %v817 = vpop.permute.xlu0 %816
    %v820 = vsel %vm163, %v815, 0
    %822 = vmatprep.subr.mxu0 0.0
    %823 = vmatpush1.msra.mxu0 %v817
    %824 = vmatprep.subr.mxu0 0.0
    %825 = vmatpush1.msra.mxu0 0.0
    %826 = vmatprep.subr.mxu0 0.0
    %827 = vmatpush1.msra.mxu0 0.0
    %828 = vmatprep.subr.mxu0 0.0
    %829 = vmatpush1.msra.mxu0 0.0
    %830 = vmatprep.subr.mxu0 0.0
    %831 = vmatpush1.msra.mxu0 0.0
    %832 = vmatprep.subr.mxu0 0.0
    %833 = vmatpush1.msra.mxu0 0.0
    %834 = vmatprep.subr.mxu0 0.0
    %835 = vmatpush1.msra.mxu0 0.0
    %836 = vmatprep.subr.mxu0 0.0
    %837 = vmatpush1.msra.mxu0 0.0
    %838 = vmatprep.subr.mxu0 0.0
    %839 = vmatpush1.msra.mxu0 0.0
    %840 = vmatprep.subr.mxu0 0.0
    %841 = vmatpush1.msra.mxu0 0.0
    %842 = vmatprep.subr.mxu0 0.0
    %843 = vmatpush1.msra.mxu0 0.0
    %844 = vmatprep.subr.mxu0 0.0
    %845 = vmatpush1.msra.mxu0 0.0
    %846 = vmatprep.subr.mxu0 0.0
    %847 = vmatpush1.msra.mxu0 0.0
    %848 = vmatprep.subr.mxu0 0.0
    %849 = vmatpush1.msra.mxu0 0.0
    %850 = vmatprep.subr.mxu0 0.0
    %851 = vmatpush1.msra.mxu0 0.0
    %852 = vmatprep.subr.mxu0 0.0
    %853 = vmatpush1.msra.mxu0 0.0
    %854 = vmatprep.subr.mxu0 0.0
    %855 = vmatpush1.msra.mxu0 0.0
    %856 = vmatprep.subr.mxu0 0.0
    %857 = vmatpush1.msra.mxu0 0.0
    %858 = vmatprep.subr.mxu0 0.0
    %859 = vmatpush1.msra.mxu0 0.0
    %860 = vmatprep.subr.mxu0 0.0
    %861 = vmatpush1.msra.mxu0 0.0
    %862 = vmatprep.subr.mxu0 0.0
    %863 = vmatpush1.msra.mxu0 0.0
    %864 = vmatprep.subr.mxu0 0.0
    %865 = vmatpush1.msra.mxu0 0.0
    %866 = vmatprep.subr.mxu0 0.0
    %867 = vmatpush1.msra.mxu0 0.0
    %868 = vmatprep.subr.mxu0 0.0
    %869 = vmatpush1.msra.mxu0 0.0
    %870 = vmatprep.subr.mxu0 0.0
    %871 = vmatpush1.msra.mxu0 0.0
    %872 = vmatprep.subr.mxu0 0.0
    %873 = vmatpush1.msra.mxu0 0.0
    %874 = vmatprep.subr.mxu0 0.0
    %875 = vmatpush1.msra.mxu0 0.0
    %876 = vmatprep.subr.mxu0 0.0
    %877 = vmatpush1.msra.mxu0 0.0
    %878 = vmatprep.subr.mxu0 0.0
    %879 = vmatpush1.msra.mxu0 0.0
    %880 = vmatprep.subr.mxu0 0.0
    %881 = vmatpush1.msra.mxu0 0.0
    %882 = vmatprep.subr.mxu0 0.0
    %883 = vmatpush1.msra.mxu0 0.0
    %884 = vmatprep.subr.mxu0 0.0
    %885 = vmatpush1.msra.mxu0 0.0
    %886 = vmatprep.mubr.f32.mxu0 0.0
    %887 = vmatmul.mubr.f32.gmra.mrb[0].mxu0 %v820
    %v888 = vpop.f32.mrb[0].mxu0
    %v889 = vadd.f32 0.0, %v888
    %v890 = vpop.f32.mrb[0].mxu0
    %891 = vdwg.mxu0
    %893 = vrot.lane.b32.xlu0 %v722, 96
    %v894 = vpop.permute.xlu0 %893
    %v896 = vsel %vm163, %v726, 0
    %v898 = vsel %vm163, %v894, 0
    %900 = vmatprep.subr.mxu0 0.0
    %901 = vmatpush1.xpose.msra.mxu0 %v898
    %902 = vmatprep.subr.mxu0 0.0
    %903 = vmatpush1.xpose.msra.mxu0 0.0
    %904 = vmatprep.subr.mxu0 0.0
    %905 = vmatpush1.xpose.msra.mxu0 0.0
    %906 = vmatprep.subr.mxu0 0.0
    %907 = vmatpush1.xpose.msra.mxu0 0.0
    %908 = vmatprep.subr.mxu0 0.0
    %909 = vmatpush1.xpose.msra.mxu0 0.0
    %910 = vmatprep.subr.mxu0 0.0
    %911 = vmatpush1.xpose.msra.mxu0 0.0
    %912 = vmatprep.subr.mxu0 0.0
    %913 = vmatpush1.xpose.msra.mxu0 0.0
    %914 = vmatprep.subr.mxu0 0.0
    %915 = vmatpush1.xpose.msra.mxu0 0.0
    %916 = vmatprep.subr.mxu0 0.0
    %917 = vmatpush1.xpose.msra.mxu0 0.0
    %918 = vmatprep.subr.mxu0 0.0
    %919 = vmatpush1.xpose.msra.mxu0 0.0
    %920 = vmatprep.subr.mxu0 0.0
    %921 = vmatpush1.xpose.msra.mxu0 0.0
    %922 = vmatprep.subr.mxu0 0.0
    %923 = vmatpush1.xpose.msra.mxu0 0.0
    %924 = vmatprep.subr.mxu0 0.0
    %925 = vmatpush1.xpose.msra.mxu0 0.0
    %926 = vmatprep.subr.mxu0 0.0
    %927 = vmatpush1.xpose.msra.mxu0 0.0
    %928 = vmatprep.subr.mxu0 0.0
    %929 = vmatpush1.xpose.msra.mxu0 0.0
    %930 = vmatprep.subr.mxu0 0.0
    %931 = vmatpush1.xpose.msra.mxu0 0.0
    %932 = vmatprep.subr.mxu0 0.0
    %933 = vmatpush1.xpose.msra.mxu0 0.0
    %934 = vmatprep.subr.mxu0 0.0
    %935 = vmatpush1.xpose.msra.mxu0 0.0
    %936 = vmatprep.subr.mxu0 0.0
    %937 = vmatpush1.xpose.msra.mxu0 0.0
    %938 = vmatprep.subr.mxu0 0.0
    %939 = vmatpush1.xpose.msra.mxu0 0.0
    %940 = vmatprep.subr.mxu0 0.0
    %941 = vmatpush1.xpose.msra.mxu0 0.0
    %942 = vmatprep.subr.mxu0 0.0
    %943 = vmatpush1.xpose.msra.mxu0 0.0
    %944 = vmatprep.subr.mxu0 0.0
    %945 = vmatpush1.xpose.msra.mxu0 0.0
    %946 = vmatprep.subr.mxu0 0.0
    %947 = vmatpush1.xpose.msra.mxu0 0.0
    %948 = vmatprep.subr.mxu0 0.0
    %949 = vmatpush1.xpose.msra.mxu0 0.0
    %950 = vmatprep.subr.mxu0 0.0
    %951 = vmatpush1.xpose.msra.mxu0 0.0
    %952 = vmatprep.subr.mxu0 0.0
    %953 = vmatpush1.xpose.msra.mxu0 0.0
    %954 = vmatprep.subr.mxu0 0.0
    %955 = vmatpush1.xpose.msra.mxu0 0.0
    %956 = vmatprep.subr.mxu0 0.0
    %957 = vmatpush1.xpose.msra.mxu0 0.0
    %958 = vmatprep.subr.mxu0 0.0
    %959 = vmatpush1.xpose.msra.mxu0 0.0
    %960 = vmatprep.subr.mxu0 0.0
    %961 = vmatpush1.xpose.msra.mxu0 0.0
    %962 = vmatprep.subr.mxu0 0.0
    %963 = vmatpush1.xpose.msra.mxu0 0.0
    %964 = vmatprep.mubr.f32.mxu0 0.0
    %965 = vmatmul.mubr.f32.gmra.mrb[0].mxu0 %v896
    %v966 = vpop.f32.mrb[0].mxu0
    %v967 = vadd.f32 0.0, %v966
    %v968 = vpop.f32.mrb[0].mxu0
    %969 = vdwg.mxu0
    %v970 = vsel %vm163, %v967, -inf
    %971 = vmax.xlane.f32.xlu0 %v970
    %v972 = vpop.xlane.xlu0 %971
    %v973 = vsub.f32 %v967, %v972
    %v974 = vmul.f32 %v973, 1.442695
    %v975 = vpow.pop %v974
    %v976 = vsel %vm163, %v975, 0.0
    %977 = vadd.xlane.f32.xlu0 %v976
    %v978 = vpop.xlane.xlu0 %977
    %v979 = vrcp.pop %v978
    %v980 = vmul.f32 %v975, %v979
    %981 = vrot.lane.b32.xlu0 %v722, 64
    %v982 = vpop.permute.xlu0 %981
    %v985 = vsel %vm163, %v980, 0
    %987 = vmatprep.subr.mxu0 0.0
    %988 = vmatpush1.msra.mxu0 %v982
    %989 = vmatprep.subr.mxu0 0.0
    %990 = vmatpush1.msra.mxu0 0.0
    %991 = vmatprep.subr.mxu0 0.0
    %992 = vmatpush1.msra.mxu0 0.0
    %993 = vmatprep.subr.mxu0 0.0
    %994 = vmatpush1.msra.mxu0 0.0
    %995 = vmatprep.subr.mxu0 0.0
    %996 = vmatpush1.msra.mxu0 0.0
    %997 = vmatprep.subr.mxu0 0.0
    %998 = vmatpush1.msra.mxu0 0.0
    %999 = vmatprep.subr.mxu0 0.0
    %1000 = vmatpush1.msra.mxu0 0.0
    %1001 = vmatprep.subr.mxu0 0.0
    %1002 = vmatpush1.msra.mxu0 0.0
    %1003 = vmatprep.subr.mxu0 0.0
    %1004 = vmatpush1.msra.mxu0 0.0
    %1005 = vmatprep.subr.mxu0 0.0
    %1006 = vmatpush1.msra.mxu0 0.0
    %1007 = vmatprep.subr.mxu0 0.0
    %1008 = vmatpush1.msra.mxu0 0.0
    %1009 = vmatprep.subr.mxu0 0.0
    %1010 = vmatpush1.msra.mxu0 0.0
    %1011 = vmatprep.subr.mxu0 0.0
    %1012 = vmatpush1.msra.mxu0 0.0
    %1013 = vmatprep.subr.mxu0 0.0
    %1014 = vmatpush1.msra.mxu0 0.0
    %1015 = vmatprep.subr.mxu0 0.0
    %1016 = vmatpush1.msra.mxu0 0.0
    %1017 = vmatprep.subr.mxu0 0.0
    %1018 = vmatpush1.msra.mxu0 0.0
    %1019 = vmatprep.subr.mxu0 0.0
    %1020 = vmatpush1.msra.mxu0 0.0
    %1021 = vmatprep.subr.mxu0 0.0
    %1022 = vmatpush1.msra.mxu0 0.0
    %1023 = vmatprep.subr.mxu0 0.0
    %1024 = vmatpush1.msra.mxu0 0.0
    %1025 = vmatprep.subr.mxu0 0.0
    %1026 = vmatpush1.msra.mxu0 0.0
    %1027 = vmatprep.subr.mxu0 0.0
    %1028 = vmatpush1.msra.mxu0 0.0
    %1029 = vmatprep.subr.mxu0 0.0
    %1030 = vmatpush1.msra.mxu0 0.0
    %1031 = vmatprep.subr.mxu0 0.0
    %1032 = vmatpush1.msra.mxu0 0.0
    %1033 = vmatprep.subr.mxu0 0.0
    %1034 = vmatpush1.msra.mxu0 0.0
    %1035 = vmatprep.subr.mxu0 0.0
    %1036 = vmatpush1.msra.mxu0 0.0
    %1037 = vmatprep.subr.mxu0 0.0
    %1038 = vmatpush1.msra.mxu0 0.0
    %1039 = vmatprep.subr.mxu0 0.0
    %1040 = vmatpush1.msra.mxu0 0.0
    %1041 = vmatprep.subr.mxu0 0.0
    %1042 = vmatpush1.msra.mxu0 0.0
    %1043 = vmatprep.subr.mxu0 0.0
    %1044 = vmatpush1.msra.mxu0 0.0
    %1045 = vmatprep.subr.mxu0 0.0
    %1046 = vmatpush1.msra.mxu0 0.0
    %1047 = vmatprep.subr.mxu0 0.0
    %1048 = vmatpush1.msra.mxu0 0.0
    %1049 = vmatprep.subr.mxu0 0.0
    %1050 = vmatpush1.msra.mxu0 0.0
    %1051 = vmatprep.mubr.f32.mxu0 0.0
    %1052 = vmatmul.mubr.f32.gmra.mrb[0].mxu0 %v985
    %v1053 = vpop.f32.mrb[0].mxu0
    %v1054 = vadd.f32 0.0, %v1053
    %v1055 = vpop.f32.mrb[0].mxu0
    %1056 = vdwg.mxu0
    %1057 = vrot.lane.b32.xlu0 %v725, 120
    %v1058 = vpop.permute.xlu0 %1057
    %1059 = vrot.lane.b32.xlu0 %v717, 88
    %v1060 = vpop.permute.xlu0 %1059
    %v1061 = vsel %vm163, %v1058, 0
    %v1063 = vsel %vm163, %v1060, 0
    %1065 = vmatprep.subr.mxu0 0.0
    %1066 = vmatpush1.xpose.msra.mxu0 %v1063
    %1067 = vmatprep.subr.mxu0 0.0
    %1068 = vmatpush1.xpose.msra.mxu0 0.0
    %1069 = vmatprep.subr.mxu0 0.0
    %1070 = vmatpush1.xpose.msra.mxu0 0.0
    %1071 = vmatprep.subr.mxu0 0.0
    %1072 = vmatpush1.xpose.msra.mxu0 0.0
    %1073 = vmatprep.subr.mxu0 0.0
    %1074 = vmatpush1.xpose.msra.mxu0 0.0
    %1075 = vmatprep.subr.mxu0 0.0
    %1076 = vmatpush1.xpose.msra.mxu0 0.0
    %1077 = vmatprep.subr.mxu0 0.0
    %1078 = vmatpush1.xpose.msra.mxu0 0.0
    %1079 = vmatprep.subr.mxu0 0.0
    %1080 = vmatpush1.xpose.msra.mxu0 0.0
    %1081 = vmatprep.subr.mxu0 0.0
    %1082 = vmatpush1.xpose.msra.mxu0 0.0
    %1083 = vmatprep.subr.mxu0 0.0
    %1084 = vmatpush1.xpose.msra.mxu0 0.0
    %1085 = vmatprep.subr.mxu0 0.0
    %1086 = vmatpush1.xpose.msra.mxu0 0.0
    %1087 = vmatprep.subr.mxu0 0.0
    %1088 = vmatpush1.xpose.msra.mxu0 0.0
    %1089 = vmatprep.subr.mxu0 0.0
    %1090 = vmatpush1.xpose.msra.mxu0 0.0
    %1091 = vmatprep.subr.mxu0 0.0
    %1092 = vmatpush1.xpose.msra.mxu0 0.0
    %1093 = vmatprep.subr.mxu0 0.0
    %1094 = vmatpush1.xpose.msra.mxu0 0.0
    %1095 = vmatprep.subr.mxu0 0.0
    %1096 = vmatpush1.xpose.msra.mxu0 0.0
    %1097 = vmatprep.subr.mxu0 0.0
    %1098 = vmatpush1.xpose.msra.mxu0 0.0
    %1099 = vmatprep.subr.mxu0 0.0
    %1100 = vmatpush1.xpose.msra.mxu0 0.0
    %1101 = vmatprep.subr.mxu0 0.0
    %1102 = vmatpush1.xpose.msra.mxu0 0.0
    %1103 = vmatprep.subr.mxu0 0.0
    %1104 = vmatpush1.xpose.msra.mxu0 0.0
    %1105 = vmatprep.subr.mxu0 0.0
    %1106 = vmatpush1.xpose.msra.mxu0 0.0
    %1107 = vmatprep.subr.mxu0 0.0
    %1108 = vmatpush1.xpose.msra.mxu0 0.0
    %1109 = vmatprep.subr.mxu0 0.0
    %1110 = vmatpush1.xpose.msra.mxu0 0.0
    %1111 = vmatprep.subr.mxu0 0.0
    %1112 = vmatpush1.xpose.msra.mxu0 0.0
    %1113 = vmatprep.subr.mxu0 0.0
    %1114 = vmatpush1.xpose.msra.mxu0 0.0
    %1115 = vmatprep.subr.mxu0 0.0
    %1116 = vmatpush1.xpose.msra.mxu0 0.0
    %1117 = vmatprep.subr.mxu0 0.0
    %1118 = vmatpush1.xpose.msra.mxu0 0.0
    %1119 = vmatprep.subr.mxu0 0.0
    %1120 = vmatpush1.xpose.msra.mxu0 0.0
    %1121 = vmatprep.subr.mxu0 0.0
    %1122 = vmatpush1.xpose.msra.mxu0 0.0
    %1123 = vmatprep.subr.mxu0 0.0
    %1124 = vmatpush1.xpose.msra.mxu0 0.0
    %1125 = vmatprep.subr.mxu0 0.0
    %1126 = vmatpush1.xpose.msra.mxu0 0.0
    %1127 = vmatprep.subr.mxu0 0.0
    %1128 = vmatpush1.xpose.msra.mxu0 0.0
    %1129 = vmatprep.mubr.f32.mxu0 0.0
    %1130 = vmatmul.mubr.f32.gmra.mrb[0].mxu0 %v1061
    %v1131 = vpop.f32.mrb[0].mxu0
    %v1132 = vadd.f32 0.0, %v1131
    %v1133 = vpop.f32.mrb[0].mxu0
    %1134 = vdwg.mxu0
    %v1135 = vsel %vm163, %v1132, -inf
    %1136 = vmax.xlane.f32.xlu0 %v1135
    %v1137 = vpop.xlane.xlu0 %1136
    %v1138 = vsub.f32 %v1132, %v1137
    %v1139 = vmul.f32 %v1138, 1.442695
    %v1140 = vpow.pop %v1139
    %v1141 = vsel %vm163, %v1140, 0.0
    %1142 = vadd.xlane.f32.xlu0 %v1141
    %v1143 = vpop.xlane.xlu0 %1142
    %v1144 = vrcp.pop %v1143
    %v1145 = vmul.f32 %v1140, %v1144
    %1146 = vrot.lane.b32.xlu0 %v717, 56
    %v1147 = vpop.permute.xlu0 %1146
    %v1150 = vsel %vm163, %v1145, 0
    %1152 = vmatprep.subr.mxu0 0.0
    %1153 = vmatpush1.msra.mxu0 %v1147
    %1154 = vmatprep.subr.mxu0 0.0
    %1155 = vmatpush1.msra.mxu0 0.0
    %1156 = vmatprep.subr.mxu0 0.0
    %1157 = vmatpush1.msra.mxu0 0.0
    %1158 = vmatprep.subr.mxu0 0.0
    %1159 = vmatpush1.msra.mxu0 0.0
    %1160 = vmatprep.subr.mxu0 0.0
    %1161 = vmatpush1.msra.mxu0 0.0
    %1162 = vmatprep.subr.mxu0 0.0
    %1163 = vmatpush1.msra.mxu0 0.0
    %1164 = vmatprep.subr.mxu0 0.0
    %1165 = vmatpush1.msra.mxu0 0.0
    %1166 = vmatprep.subr.mxu0 0.0
    %1167 = vmatpush1.msra.mxu0 0.0
    %1168 = vmatprep.subr.mxu0 0.0
    %1169 = vmatpush1.msra.mxu0 0.0
    %1170 = vmatprep.subr.mxu0 0.0
    %1171 = vmatpush1.msra.mxu0 0.0
    %1172 = vmatprep.subr.mxu0 0.0
    %1173 = vmatpush1.msra.mxu0 0.0
    %1174 = vmatprep.subr.mxu0 0.0
    %1175 = vmatpush1.msra.mxu0 0.0
    %1176 = vmatprep.subr.mxu0 0.0
    %1177 = vmatpush1.msra.mxu0 0.0
    %1178 = vmatprep.subr.mxu0 0.0
    %1179 = vmatpush1.msra.mxu0 0.0
    %1180 = vmatprep.subr.mxu0 0.0
    %1181 = vmatpush1.msra.mxu0 0.0
    %1182 = vmatprep.subr.mxu0 0.0
    %1183 = vmatpush1.msra.mxu0 0.0
    %1184 = vmatprep.subr.mxu0 0.0
    %1185 = vmatpush1.msra.mxu0 0.0
    %1186 = vmatprep.subr.mxu0 0.0
    %1187 = vmatpush1.msra.mxu0 0.0
    %1188 = vmatprep.subr.mxu0 0.0
    %1189 = vmatpush1.msra.mxu0 0.0
    %1190 = vmatprep.subr.mxu0 0.0
    %1191 = vmatpush1.msra.mxu0 0.0
    %1192 = vmatprep.subr.mxu0 0.0
    %1193 = vmatpush1.msra.mxu0 0.0
    %1194 = vmatprep.subr.mxu0 0.0
    %1195 = vmatpush1.msra.mxu0 0.0
    %1196 = vmatprep.subr.mxu0 0.0
    %1197 = vmatpush1.msra.mxu0 0.0
    %1198 = vmatprep.subr.mxu0 0.0
    %1199 = vmatpush1.msra.mxu0 0.0
    %1200 = vmatprep.subr.mxu0 0.0
    %1201 = vmatpush1.msra.mxu0 0.0
    %1202 = vmatprep.subr.mxu0 0.0
    %1203 = vmatpush1.msra.mxu0 0.0
    %1204 = vmatprep.subr.mxu0 0.0
    %1205 = vmatpush1.msra.mxu0 0.0
    %1206 = vmatprep.subr.mxu0 0.0
    %1207 = vmatpush1.msra.mxu0 0.0
    %1208 = vmatprep.subr.mxu0 0.0
    %1209 = vmatpush1.msra.mxu0 0.0
    %1210 = vmatprep.subr.mxu0 0.0
    %1211 = vmatpush1.msra.mxu0 0.0
    %1212 = vmatprep.subr.mxu0 0.0
    %1213 = vmatpush1.msra.mxu0 0.0
    %1214 = vmatprep.subr.mxu0 0.0
    %1215 = vmatpush1.msra.mxu0 0.0
    %1216 = vmatprep.mubr.f32.mxu0 0.0
    %1217 = vmatmul.mubr.f32.gmra.mrb[0].mxu0 %v1150
    %v1218 = vpop.f32.mrb[0].mxu0
    %v1219 = vadd.f32 0.0, %v1218
    %v1220 = vpop.f32.mrb[0].mxu0
    %1221 = vdwg.mxu0
    %1222 = vrot.lane.b32.xlu0 %v726, 120
    %v1223 = vpop.permute.xlu0 %1222
    %1224 = vrot.lane.b32.xlu0 %v722, 88
    %v1225 = vpop.permute.xlu0 %1224
    %v1226 = vsel %vm163, %v1223, 0
    %v1228 = vsel %vm163, %v1225, 0
    %1230 = vmatprep.subr.mxu0 0.0
    %1231 = vmatpush1.xpose.msra.mxu0 %v1228
    %1232 = vmatprep.subr.mxu0 0.0
    %1233 = vmatpush1.xpose.msra.mxu0 0.0
    %1234 = vmatprep.subr.mxu0 0.0
    %1235 = vmatpush1.xpose.msra.mxu0 0.0
    %1236 = vmatprep.subr.mxu0 0.0
    %1237 = vmatpush1.xpose.msra.mxu0 0.0
    %1238 = vmatprep.subr.mxu0 0.0
    %1239 = vmatpush1.xpose.msra.mxu0 0.0
    %1240 = vmatprep.subr.mxu0 0.0
    %1241 = vmatpush1.xpose.msra.mxu0 0.0
    %1242 = vmatprep.subr.mxu0 0.0
    %1243 = vmatpush1.xpose.msra.mxu0 0.0
    %1244 = vmatprep.subr.mxu0 0.0
    %1245 = vmatpush1.xpose.msra.mxu0 0.0
    %1246 = vmatprep.subr.mxu0 0.0
    %1247 = vmatpush1.xpose.msra.mxu0 0.0
    %1248 = vmatprep.subr.mxu0 0.0
    %1249 = vmatpush1.xpose.msra.mxu0 0.0
    %1250 = vmatprep.subr.mxu0 0.0
    %1251 = vmatpush1.xpose.msra.mxu0 0.0
    %1252 = vmatprep.subr.mxu0 0.0
    %1253 = vmatpush1.xpose.msra.mxu0 0.0
    %1254 = vmatprep.subr.mxu0 0.0
    %1255 = vmatpush1.xpose.msra.mxu0 0.0
    %1256 = vmatprep.subr.mxu0 0.0
    %1257 = vmatpush1.xpose.msra.mxu0 0.0
    %1258 = vmatprep.subr.mxu0 0.0
    %1259 = vmatpush1.xpose.msra.mxu0 0.0
    %1260 = vmatprep.subr.mxu0 0.0
    %1261 = vmatpush1.xpose.msra.mxu0 0.0
    %1262 = vmatprep.subr.mxu0 0.0
    %1263 = vmatpush1.xpose.msra.mxu0 0.0
    %1264 = vmatprep.subr.mxu0 0.0
    %1265 = vmatpush1.xpose.msra.mxu0 0.0
    %1266 = vmatprep.subr.mxu0 0.0
    %1267 = vmatpush1.xpose.msra.mxu0 0.0
    %1268 = vmatprep.subr.mxu0 0.0
    %1269 = vmatpush1.xpose.msra.mxu0 0.0
    %1270 = vmatprep.subr.mxu0 0.0
    %1271 = vmatpush1.xpose.msra.mxu0 0.0
    %1272 = vmatprep.subr.mxu0 0.0
    %1273 = vmatpush1.xpose.msra.mxu0 0.0
    %1274 = vmatprep.subr.mxu0 0.0
    %1275 = vmatpush1.xpose.msra.mxu0 0.0
    %1276 = vmatprep.subr.mxu0 0.0
    %1277 = vmatpush1.xpose.msra.mxu0 0.0
    %1278 = vmatprep.subr.mxu0 0.0
    %1279 = vmatpush1.xpose.msra.mxu0 0.0
    %1280 = vmatprep.subr.mxu0 0.0
    %1281 = vmatpush1.xpose.msra.mxu0 0.0
    %1282 = vmatprep.subr.mxu0 0.0
    %1283 = vmatpush1.xpose.msra.mxu0 0.0
    %1284 = vmatprep.subr.mxu0 0.0
    %1285 = vmatpush1.xpose.msra.mxu0 0.0
    %1286 = vmatprep.subr.mxu0 0.0
    %1287 = vmatpush1.xpose.msra.mxu0 0.0
    %1288 = vmatprep.subr.mxu0 0.0
    %1289 = vmatpush1.xpose.msra.mxu0 0.0
    %1290 = vmatprep.subr.mxu0 0.0
    %1291 = vmatpush1.xpose.msra.mxu0 0.0
    %1292 = vmatprep.subr.mxu0 0.0
    %1293 = vmatpush1.xpose.msra.mxu0 0.0
    %1294 = vmatprep.mubr.f32.mxu0 0.0
    %1295 = vmatmul.mubr.f32.gmra.mrb[0].mxu0 %v1226
    %v1296 = vpop.f32.mrb[0].mxu0
    %v1297 = vadd.f32 0.0, %v1296
    %v1298 = vpop.f32.mrb[0].mxu0
    %1299 = vdwg.mxu0
    %v1300 = vsel %vm163, %v1297, -inf
    %1301 = vmax.xlane.f32.xlu0 %v1300
    %v1302 = vpop.xlane.xlu0 %1301
    %v1303 = vsub.f32 %v1297, %v1302
    %v1304 = vmul.f32 %v1303, 1.442695
    %v1305 = vpow.pop %v1304
    %v1306 = vsel %vm163, %v1305, 0.0
    %1307 = vadd.xlane.f32.xlu0 %v1306
    %v1308 = vpop.xlane.xlu0 %1307
    %v1309 = vrcp.pop %v1308
    %v1310 = vmul.f32 %v1305, %v1309
    %1311 = vrot.lane.b32.xlu0 %v722, 56
    %v1312 = vpop.permute.xlu0 %1311
    %v1315 = vsel %vm163, %v1310, 0
    %1317 = vmatprep.subr.mxu0 0.0
    %1318 = vmatpush1.msra.mxu0 %v1312
    %1319 = vmatprep.subr.mxu0 0.0
    %1320 = vmatpush1.msra.mxu0 0.0
    %1321 = vmatprep.subr.mxu0 0.0
    %1322 = vmatpush1.msra.mxu0 0.0
    %1323 = vmatprep.subr.mxu0 0.0
    %1324 = vmatpush1.msra.mxu0 0.0
    %1325 = vmatprep.subr.mxu0 0.0
    %1326 = vmatpush1.msra.mxu0 0.0
    %1327 = vmatprep.subr.mxu0 0.0
    %1328 = vmatpush1.msra.mxu0 0.0
    %1329 = vmatprep.subr.mxu0 0.0
    %1330 = vmatpush1.msra.mxu0 0.0
    %1331 = vmatprep.subr.mxu0 0.0
    %1332 = vmatpush1.msra.mxu0 0.0
    %1333 = vmatprep.subr.mxu0 0.0
    %1334 = vmatpush1.msra.mxu0 0.0
    %1335 = vmatprep.subr.mxu0 0.0
    %1336 = vmatpush1.msra.mxu0 0.0
    %1337 = vmatprep.subr.mxu0 0.0
    %1338 = vmatpush1.msra.mxu0 0.0
    %1339 = vmatprep.subr.mxu0 0.0
    %1340 = vmatpush1.msra.mxu0 0.0
    %1341 = vmatprep.subr.mxu0 0.0
    %1342 = vmatpush1.msra.mxu0 0.0
    %1343 = vmatprep.subr.mxu0 0.0
    %1344 = vmatpush1.msra.mxu0 0.0
    %1345 = vmatprep.subr.mxu0 0.0
    %1346 = vmatpush1.msra.mxu0 0.0
    %1347 = vmatprep.subr.mxu0 0.0
    %1348 = vmatpush1.msra.mxu0 0.0
    %1349 = vmatprep.subr.mxu0 0.0
    %1350 = vmatpush1.msra.mxu0 0.0
    %1351 = vmatprep.subr.mxu0 0.0
    %1352 = vmatpush1.msra.mxu0 0.0
    %1353 = vmatprep.subr.mxu0 0.0
    %1354 = vmatpush1.msra.mxu0 0.0
    %1355 = vmatprep.subr.mxu0 0.0
    %1356 = vmatpush1.msra.mxu0 0.0
    %1357 = vmatprep.subr.mxu0 0.0
    %1358 = vmatpush1.msra.mxu0 0.0
    %1359 = vmatprep.subr.mxu0 0.0
    %1360 = vmatpush1.msra.mxu0 0.0
    %1361 = vmatprep.subr.mxu0 0.0
    %1362 = vmatpush1.msra.mxu0 0.0
    %1363 = vmatprep.subr.mxu0 0.0
    %1364 = vmatpush1.msra.mxu0 0.0
    %1365 = vmatprep.subr.mxu0 0.0
    %1366 = vmatpush1.msra.mxu0 0.0
    %1367 = vmatprep.subr.mxu0 0.0
    %1368 = vmatpush1.msra.mxu0 0.0
    %1369 = vmatprep.subr.mxu0 0.0
    %1370 = vmatpush1.msra.mxu0 0.0
    %1371 = vmatprep.subr.mxu0 0.0
    %1372 = vmatpush1.msra.mxu0 0.0
    %1373 = vmatprep.subr.mxu0 0.0
    %1374 = vmatpush1.msra.mxu0 0.0
    %1375 = vmatprep.subr.mxu0 0.0
    %1376 = vmatpush1.msra.mxu0 0.0
    %1377 = vmatprep.subr.mxu0 0.0
    %1378 = vmatpush1.msra.mxu0 0.0
    %1379 = vmatprep.subr.mxu0 0.0
    %1380 = vmatpush1.msra.mxu0 0.0
    %1381 = vmatprep.mubr.f32.mxu0 0.0
    %1382 = vmatmul.mubr.f32.gmra.mrb[0].mxu0 %v1315
    %v1383 = vpop.f32.mrb[0].mxu0
    %v1384 = vadd.f32 0.0, %v1383
    %v1385 = vpop.f32.mrb[0].mxu0
    %1386 = vdwg.mxu0
    %v1388 = vsel %vm163, %v1219, 0
    %v1391 = vsel %vm163, %v1384, 0
    %1393 = vmatprep.subr.mxu0 0.0
    %1394 = vmatpush1.msra.mxu0 %v621
    %1395 = vmatprep.subr.mxu0 0.0
    %1396 = vmatpush1.msra.mxu0 0.0
    %1397 = vmatprep.subr.mxu0 0.0
    %1398 = vmatpush1.msra.mxu0 0.0
    %1399 = vmatprep.subr.mxu0 0.0
    %1400 = vmatpush1.msra.mxu0 0.0
    %1401 = vmatprep.subr.mxu0 0.0
    %1402 = vmatpush1.msra.mxu0 0.0
    %1403 = vmatprep.subr.mxu0 0.0
    %1404 = vmatpush1.msra.mxu0 0.0
    %1405 = vmatprep.subr.mxu0 0.0
    %1406 = vmatpush1.msra.mxu0 0.0
    %1407 = vmatprep.subr.mxu0 0.0
    %1408 = vmatpush1.msra.mxu0 0.0
    %1409 = vmatprep.subr.mxu0 0.0
    %1410 = vmatpush1.msra.mxu0 0.0
    %1411 = vmatprep.subr.mxu0 0.0
    %1412 = vmatpush1.msra.mxu0 0.0
    %1413 = vmatprep.subr.mxu0 0.0
    %1414 = vmatpush1.msra.mxu0 0.0
    %1415 = vmatprep.subr.mxu0 0.0
    %1416 = vmatpush1.msra.mxu0 0.0
    %1417 = vmatprep.subr.mxu0 0.0
    %1418 = vmatpush1.msra.mxu0 0.0
    %1419 = vmatprep.subr.mxu0 0.0
    %1420 = vmatpush1.msra.mxu0 0.0
    %1421 = vmatprep.subr.mxu0 0.0
    %1422 = vmatpush1.msra.mxu0 0.0
    %1423 = vmatprep.subr.mxu0 0.0
    %1424 = vmatpush1.msra.mxu0 0.0
    %1425 = vmatprep.subr.mxu0 0.0
    %1426 = vmatpush1.msra.mxu0 0.0
    %1427 = vmatprep.subr.mxu0 0.0
    %1428 = vmatpush1.msra.mxu0 0.0
    %1429 = vmatprep.subr.mxu0 0.0
    %1430 = vmatpush1.msra.mxu0 0.0
    %1431 = vmatprep.subr.mxu0 0.0
    %1432 = vmatpush1.msra.mxu0 0.0
    %1433 = vmatprep.subr.mxu0 0.0
    %1434 = vmatpush1.msra.mxu0 0.0
    %1435 = vmatprep.subr.mxu0 0.0
    %1436 = vmatpush1.msra.mxu0 0.0
    %1437 = vmatprep.subr.mxu0 0.0
    %1438 = vmatpush1.msra.mxu0 0.0
    %1439 = vmatprep.subr.mxu0 0.0
    %1440 = vmatpush1.msra.mxu0 0.0
    %1441 = vmatprep.subr.mxu0 0.0
    %1442 = vmatpush1.msra.mxu0 0.0
    %1443 = vmatprep.subr.mxu0 0.0
    %1444 = vmatpush1.msra.mxu0 0.0
    %1445 = vmatprep.subr.mxu0 0.0
    %1446 = vmatpush1.msra.mxu0 0.0
    %1447 = vmatprep.subr.mxu0 0.0
    %1448 = vmatpush1.msra.mxu0 0.0
    %1449 = vmatprep.subr.mxu0 0.0
    %1450 = vmatpush1.msra.mxu0 0.0
    %1451 = vmatprep.subr.mxu0 0.0
    %1452 = vmatpush1.msra.mxu0 0.0
    %1453 = vmatprep.subr.mxu0 0.0
    %1454 = vmatpush1.msra.mxu0 0.0
    %1455 = vmatprep.subr.mxu0 0.0
    %1456 = vmatpush1.msra.mxu0 0.0
    %1457 = vmatprep.mubr.f32.mxu0 0.0
    %1458 = vmatmul.mubr.f32.gmra.mrb[0].mxu0 %v1388
    %v1459 = vpop.f32.mrb[0].mxu0
    %v1460 = vadd.f32 0.0, %v1459
    %v1461 = vpop.f32.mrb[0].mxu0
    %1462 = vmatprep.mubr.f32.mxu0 0.0
    %1463 = vmatmul.mubr.f32.gmra.mrb[0].mxu0 %v1391
    %v1464 = vpop.f32.mrb[0].mxu0
    %v1465 = vadd.f32 0.0, %v1464
    %v1466 = vpop.f32.mrb[0].mxu0
    %1467 = vdwg.mxu0
    %v1469 = vsel %vm163, %v889, 0
    %v1472 = vsel %vm163, %v1054, 0
    %1474 = vmatprep.subr.mxu0 0.0
    %1475 = vmatpush1.msra.mxu0 %v620
    %1476 = vmatprep.subr.mxu0 0.0
    %1477 = vmatpush1.msra.mxu0 0.0
    %1478 = vmatprep.subr.mxu0 0.0
    %1479 = vmatpush1.msra.mxu0 0.0
    %1480 = vmatprep.subr.mxu0 0.0
    %1481 = vmatpush1.msra.mxu0 0.0
    %1482 = vmatprep.subr.mxu0 0.0
    %1483 = vmatpush1.msra.mxu0 0.0
    %1484 = vmatprep.subr.mxu0 0.0
    %1485 = vmatpush1.msra.mxu0 0.0
    %1486 = vmatprep.subr.mxu0 0.0
    %1487 = vmatpush1.msra.mxu0 0.0
    %1488 = vmatprep.subr.mxu0 0.0
    %1489 = vmatpush1.msra.mxu0 0.0
    %1490 = vmatprep.subr.mxu0 0.0
    %1491 = vmatpush1.msra.mxu0 0.0
    %1492 = vmatprep.subr.mxu0 0.0
    %1493 = vmatpush1.msra.mxu0 0.0
    %1494 = vmatprep.subr.mxu0 0.0
    %1495 = vmatpush1.msra.mxu0 0.0
    %1496 = vmatprep.subr.mxu0 0.0
    %1497 = vmatpush1.msra.mxu0 0.0
    %1498 = vmatprep.subr.mxu0 0.0
    %1499 = vmatpush1.msra.mxu0 0.0
    %1500 = vmatprep.subr.mxu0 0.0
    %1501 = vmatpush1.msra.mxu0 0.0
    %1502 = vmatprep.subr.mxu0 0.0
    %1503 = vmatpush1.msra.mxu0 0.0
    %1504 = vmatprep.subr.mxu0 0.0
    %1505 = vmatpush1.msra.mxu0 0.0
    %1506 = vmatprep.subr.mxu0 0.0
    %1507 = vmatpush1.msra.mxu0 0.0
    %1508 = vmatprep.subr.mxu0 0.0
    %1509 = vmatpush1.msra.mxu0 0.0
    %1510 = vmatprep.subr.mxu0 0.0
    %1511 = vmatpush1.msra.mxu0 0.0
    %1512 = vmatprep.subr.mxu0 0.0
    %1513 = vmatpush1.msra.mxu0 0.0
    %1514 = vmatprep.subr.mxu0 0.0
    %1515 = vmatpush1.msra.mxu0 0.0
    %1516 = vmatprep.subr.mxu0 0.0
    %1517 = vmatpush1.msra.mxu0 0.0
    %1518 = vmatprep.subr.mxu0 0.0
    %1519 = vmatpush1.msra.mxu0 0.0
    %1520 = vmatprep.subr.mxu0 0.0
    %1521 = vmatpush1.msra.mxu0 0.0
    %1522 = vmatprep.subr.mxu0 0.0
    %1523 = vmatpush1.msra.mxu0 0.0
    %1524 = vmatprep.subr.mxu0 0.0
    %1525 = vmatpush1.msra.mxu0 0.0
    %1526 = vmatprep.subr.mxu0 0.0
    %1527 = vmatpush1.msra.mxu0 0.0
    %1528 = vmatprep.subr.mxu0 0.0
    %1529 = vmatpush1.msra.mxu0 0.0
    %1530 = vmatprep.subr.mxu0 0.0
    %1531 = vmatpush1.msra.mxu0 0.0
    %1532 = vmatprep.subr.mxu0 0.0
    %1533 = vmatpush1.msra.mxu0 0.0
    %1534 = vmatprep.subr.mxu0 0.0
    %1535 = vmatpush1.msra.mxu0 0.0
    %1536 = vmatprep.subr.mxu0 0.0
    %1537 = vmatpush1.msra.mxu0 0.0
    %1538 = vmatprep.mubr.f32.mxu0 0.0
    %1539 = vmatmul.mubr.f32.gmra.mrb[0].mxu0 %v1469
    %v1540 = vpop.f32.mrb[0].mxu0
    %v1541 = vadd.f32 %v1460, %v1540
    %v1542 = vpop.f32.mrb[0].mxu0
    %1543 = vmatprep.mubr.f32.mxu0 0.0
    %1544 = vmatmul.mubr.f32.gmra.mrb[0].mxu0 %v1472
    %v1545 = vpop.f32.mrb[0].mxu0
    %v1546 = vadd.f32 %v1465, %v1545
    %v1547 = vpop.f32.mrb[0].mxu0
    %1548 = vdwg.mxu0
    %1549 = vrot.lane.b32.xlu0 %v725, 112
    %v1550 = vpop.permute.xlu0 %1549
    %1551 = vrot.lane.b32.xlu0 %v717, 80
    %v1552 = vpop.permute.xlu0 %1551
    %v1553 = vsel %vm163, %v1550, 0
    %v1555 = vsel %vm163, %v1552, 0
    %1557 = vmatprep.subr.mxu0 0.0
    %1558 = vmatpush1.xpose.msra.mxu0 %v1555
    %1559 = vmatprep.subr.mxu0 0.0
    %1560 = vmatpush1.xpose.msra.mxu0 0.0
    %1561 = vmatprep.subr.mxu0 0.0
    %1562 = vmatpush1.xpose.msra.mxu0 0.0
    %1563 = vmatprep.subr.mxu0 0.0
    %1564 = vmatpush1.xpose.msra.mxu0 0.0
    %1565 = vmatprep.subr.mxu0 0.0
    %1566 = vmatpush1.xpose.msra.mxu0 0.0
    %1567 = vmatprep.subr.mxu0 0.0
    %1568 = vmatpush1.xpose.msra.mxu0 0.0
    %1569 = vmatprep.subr.mxu0 0.0
    %1570 = vmatpush1.xpose.msra.mxu0 0.0
    %1571 = vmatprep.subr.mxu0 0.0
    %1572 = vmatpush1.xpose.msra.mxu0 0.0
    %1573 = vmatprep.subr.mxu0 0.0
    %1574 = vmatpush1.xpose.msra.mxu0 0.0
    %1575 = vmatprep.subr.mxu0 0.0
    %1576 = vmatpush1.xpose.msra.mxu0 0.0
    %1577 = vmatprep.subr.mxu0 0.0
    %1578 = vmatpush1.xpose.msra.mxu0 0.0
    %1579 = vmatprep.subr.mxu0 0.0
    %1580 = vmatpush1.xpose.msra.mxu0 0.0
    %1581 = vmatprep.subr.mxu0 0.0
    %1582 = vmatpush1.xpose.msra.mxu0 0.0
    %1583 = vmatprep.subr.mxu0 0.0
    %1584 = vmatpush1.xpose.msra.mxu0 0.0
    %1585 = vmatprep.subr.mxu0 0.0
    %1586 = vmatpush1.xpose.msra.mxu0 0.0
    %1587 = vmatprep.subr.mxu0 0.0
    %1588 = vmatpush1.xpose.msra.mxu0 0.0
    %1589 = vmatprep.subr.mxu0 0.0
    %1590 = vmatpush1.xpose.msra.mxu0 0.0
    %1591 = vmatprep.subr.mxu0 0.0
    %1592 = vmatpush1.xpose.msra.mxu0 0.0
    %1593 = vmatprep.subr.mxu0 0.0
    %1594 = vmatpush1.xpose.msra.mxu0 0.0
    %1595 = vmatprep.subr.mxu0 0.0
    %1596 = vmatpush1.xpose.msra.mxu0 0.0
    %1597 = vmatprep.subr.mxu0 0.0
    %1598 = vmatpush1.xpose.msra.mxu0 0.0
    %1599 = vmatprep.subr.mxu0 0.0
    %1600 = vmatpush1.xpose.msra.mxu0 0.0
    %1601 = vmatprep.subr.mxu0 0.0
    %1602 = vmatpush1.xpose.msra.mxu0 0.0
    %1603 = vmatprep.subr.mxu0 0.0
    %1604 = vmatpush1.xpose.msra.mxu0 0.0
    %1605 = vmatprep.subr.mxu0 0.0
    %1606 = vmatpush1.xpose.msra.mxu0 0.0
    %1607 = vmatprep.subr.mxu0 0.0
    %1608 = vmatpush1.xpose.msra.mxu0 0.0
    %1609 = vmatprep.subr.mxu0 0.0
    %1610 = vmatpush1.xpose.msra.mxu0 0.0
    %1611 = vmatprep.subr.mxu0 0.0
    %1612 = vmatpush1.xpose.msra.mxu0 0.0
    %1613 = vmatprep.subr.mxu0 0.0
    %1614 = vmatpush1.xpose.msra.mxu0 0.0
    %1615 = vmatprep.subr.mxu0 0.0
    %1616 = vmatpush1.xpose.msra.mxu0 0.0
    %1617 = vmatprep.subr.mxu0 0.0
    %1618 = vmatpush1.xpose.msra.mxu0 0.0
    %1619 = vmatprep.subr.mxu0 0.0
    %1620 = vmatpush1.xpose.msra.mxu0 0.0
    %1621 = vmatprep.mubr.f32.mxu0 0.0
    %1622 = vmatmul.mubr.f32.gmra.mrb[0].mxu0 %v1553
    %v1623 = vpop.f32.mrb[0].mxu0
    %v1624 = vadd.f32 0.0, %v1623
    %v1625 = vpop.f32.mrb[0].mxu0
    %1626 = vdwg.mxu0
    %v1627 = vsel %vm163, %v1624, -inf
    %1628 = vmax.xlane.f32.xlu0 %v1627
    %v1629 = vpop.xlane.xlu0 %1628
    %v1630 = vsub.f32 %v1624, %v1629
    %v1631 = vmul.f32 %v1630, 1.442695
    %v1632 = vpow.pop %v1631
    %v1633 = vsel %vm163, %v1632, 0.0
    %1634 = vadd.xlane.f32.xlu0 %v1633
    %v1635 = vpop.xlane.xlu0 %1634
    %v1636 = vrcp.pop %v1635
    %v1637 = vmul.f32 %v1632, %v1636
    %1638 = vrot.lane.b32.xlu0 %v717, 48
    %v1639 = vpop.permute.xlu0 %1638
    %v1642 = vsel %vm163, %v1637, 0
    %1644 = vmatprep.subr.mxu0 0.0
    %1645 = vmatpush1.msra.mxu0 %v1639
    %1646 = vmatprep.subr.mxu0 0.0
    %1647 = vmatpush1.msra.mxu0 0.0
    %1648 = vmatprep.subr.mxu0 0.0
    %1649 = vmatpush1.msra.mxu0 0.0
    %1650 = vmatprep.subr.mxu0 0.0
    %1651 = vmatpush1.msra.mxu0 0.0
    %1652 = vmatprep.subr.mxu0 0.0
    %1653 = vmatpush1.msra.mxu0 0.0
    %1654 = vmatprep.subr.mxu0 0.0
    %1655 = vmatpush1.msra.mxu0 0.0
    %1656 = vmatprep.subr.mxu0 0.0
    %1657 = vmatpush1.msra.mxu0 0.0
    %1658 = vmatprep.subr.mxu0 0.0
    %1659 = vmatpush1.msra.mxu0 0.0
    %1660 = vmatprep.subr.mxu0 0.0
    %1661 = vmatpush1.msra.mxu0 0.0
    %1662 = vmatprep.subr.mxu0 0.0
    %1663 = vmatpush1.msra.mxu0 0.0
    %1664 = vmatprep.subr.mxu0 0.0
    %1665 = vmatpush1.msra.mxu0 0.0
    %1666 = vmatprep.subr.mxu0 0.0
    %1667 = vmatpush1.msra.mxu0 0.0
    %1668 = vmatprep.subr.mxu0 0.0
    %1669 = vmatpush1.msra.mxu0 0.0
    %1670 = vmatprep.subr.mxu0 0.0
    %1671 = vmatpush1.msra.mxu0 0.0
    %1672 = vmatprep.subr.mxu0 0.0
    %1673 = vmatpush1.msra.mxu0 0.0
    %1674 = vmatprep.subr.mxu0 0.0
    %1675 = vmatpush1.msra.mxu0 0.0
    %1676 = vmatprep.subr.mxu0 0.0
    %1677 = vmatpush1.msra.mxu0 0.0
    %1678 = vmatprep.subr.mxu0 0.0
    %1679 = vmatpush1.msra.mxu0 0.0
    %1680 = vmatprep.subr.mxu0 0.0
    %1681 = vmatpush1.msra.mxu0 0.0
    %1682 = vmatprep.subr.mxu0 0.0
    %1683 = vmatpush1.msra.mxu0 0.0
    %1684 = vmatprep.subr.mxu0 0.0
    %1685 = vmatpush1.msra.mxu0 0.0
    %1686 = vmatprep.subr.mxu0 0.0
    %1687 = vmatpush1.msra.mxu0 0.0
    %1688 = vmatprep.subr.mxu0 0.0
    %1689 = vmatpush1.msra.mxu0 0.0
    %1690 = vmatprep.subr.mxu0 0.0
    %1691 = vmatpush1.msra.mxu0 0.0
    %1692 = vmatprep.subr.mxu0 0.0
    %1693 = vmatpush1.msra.mxu0 0.0
    %1694 = vmatprep.subr.mxu0 0.0
    %1695 = vmatpush1.msra.mxu0 0.0
    %1696 = vmatprep.subr.mxu0 0.0
    %1697 = vmatpush1.msra.mxu0 0.0
    %1698 = vmatprep.subr.mxu0 0.0
    %1699 = vmatpush1.msra.mxu0 0.0
    %1700 = vmatprep.subr.mxu0 0.0
    %1701 = vmatpush1.msra.mxu0 0.0
    %1702 = vmatprep.subr.mxu0 0.0
    %1703 = vmatpush1.msra.mxu0 0.0
    %1704 = vmatprep.subr.mxu0 0.0
    %1705 = vmatpush1.msra.mxu0 0.0
    %1706 = vmatprep.subr.mxu0 0.0
    %1707 = vmatpush1.msra.mxu0 0.0
    %1708 = vmatprep.mubr.f32.mxu0 0.0
    %1709 = vmatmul.mubr.f32.gmra.mrb[0].mxu0 %v1642
    %v1710 = vpop.f32.mrb[0].mxu0
    %v1711 = vadd.f32 0.0, %v1710
    %v1712 = vpop.f32.mrb[0].mxu0
    %1713 = vdwg.mxu0
    %1714 = vrot.lane.b32.xlu0 %v726, 112
    %v1715 = vpop.permute.xlu0 %1714
    %1716 = vrot.lane.b32.xlu0 %v722, 80
    %v1717 = vpop.permute.xlu0 %1716
    %v1718 = vsel %vm163, %v1715, 0
    %v1720 = vsel %vm163, %v1717, 0
    %1722 = vmatprep.subr.mxu0 0.0
    %1723 = vmatpush1.xpose.msra.mxu0 %v1720
    %1724 = vmatprep.subr.mxu0 0.0
    %1725 = vmatpush1.xpose.msra.mxu0 0.0
    %1726 = vmatprep.subr.mxu0 0.0
    %1727 = vmatpush1.xpose.msra.mxu0 0.0
    %1728 = vmatprep.subr.mxu0 0.0
    %1729 = vmatpush1.xpose.msra.mxu0 0.0
    %1730 = vmatprep.subr.mxu0 0.0
    %1731 = vmatpush1.xpose.msra.mxu0 0.0
    %1732 = vmatprep.subr.mxu0 0.0
    %1733 = vmatpush1.xpose.msra.mxu0 0.0
    %1734 = vmatprep.subr.mxu0 0.0
    %1735 = vmatpush1.xpose.msra.mxu0 0.0
    %1736 = vmatprep.subr.mxu0 0.0
    %1737 = vmatpush1.xpose.msra.mxu0 0.0
    %1738 = vmatprep.subr.mxu0 0.0
    %1739 = vmatpush1.xpose.msra.mxu0 0.0
    %1740 = vmatprep.subr.mxu0 0.0
    %1741 = vmatpush1.xpose.msra.mxu0 0.0
    %1742 = vmatprep.subr.mxu0 0.0
    %1743 = vmatpush1.xpose.msra.mxu0 0.0
    %1744 = vmatprep.subr.mxu0 0.0
    %1745 = vmatpush1.xpose.msra.mxu0 0.0
    %1746 = vmatprep.subr.mxu0 0.0
    %1747 = vmatpush1.xpose.msra.mxu0 0.0
    %1748 = vmatprep.subr.mxu0 0.0
    %1749 = vmatpush1.xpose.msra.mxu0 0.0
    %1750 = vmatprep.subr.mxu0 0.0
    %1751 = vmatpush1.xpose.msra.mxu0 0.0
    %1752 = vmatprep.subr.mxu0 0.0
    %1753 = vmatpush1.xpose.msra.mxu0 0.0
    %1754 = vmatprep.subr.mxu0 0.0
    %1755 = vmatpush1.xpose.msra.mxu0 0.0
    %1756 = vmatprep.subr.mxu0 0.0
    %1757 = vmatpush1.xpose.msra.mxu0 0.0
    %1758 = vmatprep.subr.mxu0 0.0
    %1759 = vmatpush1.xpose.msra.mxu0 0.0
    %1760 = vmatprep.subr.mxu0 0.0
    %1761 = vmatpush1.xpose.msra.mxu0 0.0
    %1762 = vmatprep.subr.mxu0 0.0
    %1763 = vmatpush1.xpose.msra.mxu0 0.0
    %1764 = vmatprep.subr.mxu0 0.0
    %1765 = vmatpush1.xpose.msra.mxu0 0.0
    %1766 = vmatprep.subr.mxu0 0.0
    %1767 = vmatpush1.xpose.msra.mxu0 0.0
    %1768 = vmatprep.subr.mxu0 0.0
    %1769 = vmatpush1.xpose.msra.mxu0 0.0
    %1770 = vmatprep.subr.mxu0 0.0
    %1771 = vmatpush1.xpose.msra.mxu0 0.0
    %1772 = vmatprep.subr.mxu0 0.0
    %1773 = vmatpush1.xpose.msra.mxu0 0.0
    %1774 = vmatprep.subr.mxu0 0.0
    %1775 = vmatpush1.xpose.msra.mxu0 0.0
    %1776 = vmatprep.subr.mxu0 0.0
    %1777 = vmatpush1.xpose.msra.mxu0 0.0
    %1778 = vmatprep.subr.mxu0 0.0
    %1779 = vmatpush1.xpose.msra.mxu0 0.0
    %1780 = vmatprep.subr.mxu0 0.0
    %1781 = vmatpush1.xpose.msra.mxu0 0.0
    %1782 = vmatprep.subr.mxu0 0.0
    %1783 = vmatpush1.xpose.msra.mxu0 0.0
    %1784 = vmatprep.subr.mxu0 0.0
    %1785 = vmatpush1.xpose.msra.mxu0 0.0
    %1786 = vmatprep.mubr.f32.mxu0 0.0
    %1787 = vmatmul.mubr.f32.gmra.mrb[0].mxu0 %v1718
    %v1788 = vpop.f32.mrb[0].mxu0
    %v1789 = vadd.f32 0.0, %v1788
    %v1790 = vpop.f32.mrb[0].mxu0
    %1791 = vdwg.mxu0
    %v1792 = vsel %vm163, %v1789, -inf
    %1793 = vmax.xlane.f32.xlu0 %v1792
    %v1794 = vpop.xlane.xlu0 %1793
    %v1795 = vsub.f32 %v1789, %v1794
    %v1796 = vmul.f32 %v1795, 1.442695
    %v1797 = vpow.pop %v1796
    %v1798 = vsel %vm163, %v1797, 0.0
    %1799 = vadd.xlane.f32.xlu0 %v1798
    %v1800 = vpop.xlane.xlu0 %1799
    %v1801 = vrcp.pop %v1800
    %v1802 = vmul.f32 %v1797, %v1801
    %1803 = vrot.lane.b32.xlu0 %v722, 48
    %v1804 = vpop.permute.xlu0 %1803
    %v1807 = vsel %vm163, %v1802, 0
    %1809 = vmatprep.subr.mxu0 0.0
    %1810 = vmatpush1.msra.mxu0 %v1804
    %1811 = vmatprep.subr.mxu0 0.0
    %1812 = vmatpush1.msra.mxu0 0.0
    %1813 = vmatprep.subr.mxu0 0.0
    %1814 = vmatpush1.msra.mxu0 0.0
    %1815 = vmatprep.subr.mxu0 0.0
    %1816 = vmatpush1.msra.mxu0 0.0
    %1817 = vmatprep.subr.mxu0 0.0
    %1818 = vmatpush1.msra.mxu0 0.0
    %1819 = vmatprep.subr.mxu0 0.0
    %1820 = vmatpush1.msra.mxu0 0.0
    %1821 = vmatprep.subr.mxu0 0.0
    %1822 = vmatpush1.msra.mxu0 0.0
    %1823 = vmatprep.subr.mxu0 0.0
    %1824 = vmatpush1.msra.mxu0 0.0
    %1825 = vmatprep.subr.mxu0 0.0
    %1826 = vmatpush1.msra.mxu0 0.0
    %1827 = vmatprep.subr.mxu0 0.0
    %1828 = vmatpush1.msra.mxu0 0.0
    %1829 = vmatprep.subr.mxu0 0.0
    %1830 = vmatpush1.msra.mxu0 0.0
    %1831 = vmatprep.subr.mxu0 0.0
    %1832 = vmatpush1.msra.mxu0 0.0
    %1833 = vmatprep.subr.mxu0 0.0
    %1834 = vmatpush1.msra.mxu0 0.0
    %1835 = vmatprep.subr.mxu0 0.0
    %1836 = vmatpush1.msra.mxu0 0.0
    %1837 = vmatprep.subr.mxu0 0.0
    %1838 = vmatpush1.msra.mxu0 0.0
    %1839 = vmatprep.subr.mxu0 0.0
    %1840 = vmatpush1.msra.mxu0 0.0
    %1841 = vmatprep.subr.mxu0 0.0
    %1842 = vmatpush1.msra.mxu0 0.0
    %1843 = vmatprep.subr.mxu0 0.0
    %1844 = vmatpush1.msra.mxu0 0.0
    %1845 = vmatprep.subr.mxu0 0.0
    %1846 = vmatpush1.msra.mxu0 0.0
    %1847 = vmatprep.subr.mxu0 0.0
    %1848 = vmatpush1.msra.mxu0 0.0
    %1849 = vmatprep.subr.mxu0 0.0
    %1850 = vmatpush1.msra.mxu0 0.0
    %1851 = vmatprep.subr.mxu0 0.0
    %1852 = vmatpush1.msra.mxu0 0.0
    %1853 = vmatprep.subr.mxu0 0.0
    %1854 = vmatpush1.msra.mxu0 0.0
    %1855 = vmatprep.subr.mxu0 0.0
    %1856 = vmatpush1.msra.mxu0 0.0
    %1857 = vmatprep.subr.mxu0 0.0
    %1858 = vmatpush1.msra.mxu0 0.0
    %1859 = vmatprep.subr.mxu0 0.0
    %1860 = vmatpush1.msra.mxu0 0.0
    %1861 = vmatprep.subr.mxu0 0.0
    %1862 = vmatpush1.msra.mxu0 0.0
    %1863 = vmatprep.subr.mxu0 0.0
    %1864 = vmatpush1.msra.mxu0 0.0
    %1865 = vmatprep.subr.mxu0 0.0
    %1866 = vmatpush1.msra.mxu0 0.0
    %1867 = vmatprep.subr.mxu0 0.0
    %1868 = vmatpush1.msra.mxu0 0.0
    %1869 = vmatprep.subr.mxu0 0.0
    %1870 = vmatpush1.msra.mxu0 0.0
    %1871 = vmatprep.subr.mxu0 0.0
    %1872 = vmatpush1.msra.mxu0 0.0
    %1873 = vmatprep.mubr.f32.mxu0 0.0
    %1874 = vmatmul.mubr.f32.gmra.mrb[0].mxu0 %v1807
    %v1875 = vpop.f32.mrb[0].mxu0
    %v1876 = vadd.f32 0.0, %v1875
    %v1877 = vpop.f32.mrb[0].mxu0
    %1878 = vdwg.mxu0
    %v1880 = vsel %vm163, %v1711, 0
    %v1883 = vsel %vm163, %v1876, 0
    %1885 = vmatprep.subr.mxu0 0.0
    %1886 = vmatpush1.msra.mxu0 %v622
    %1887 = vmatprep.subr.mxu0 0.0
    %1888 = vmatpush1.msra.mxu0 0.0
    %1889 = vmatprep.subr.mxu0 0.0
    %1890 = vmatpush1.msra.mxu0 0.0
    %1891 = vmatprep.subr.mxu0 0.0
    %1892 = vmatpush1.msra.mxu0 0.0
    %1893 = vmatprep.subr.mxu0 0.0
    %1894 = vmatpush1.msra.mxu0 0.0
    %1895 = vmatprep.subr.mxu0 0.0
    %1896 = vmatpush1.msra.mxu0 0.0
    %1897 = vmatprep.subr.mxu0 0.0
    %1898 = vmatpush1.msra.mxu0 0.0
    %1899 = vmatprep.subr.mxu0 0.0
    %1900 = vmatpush1.msra.mxu0 0.0
    %1901 = vmatprep.subr.mxu0 0.0
    %1902 = vmatpush1.msra.mxu0 0.0
    %1903 = vmatprep.subr.mxu0 0.0
    %1904 = vmatpush1.msra.mxu0 0.0
    %1905 = vmatprep.subr.mxu0 0.0
    %1906 = vmatpush1.msra.mxu0 0.0
    %1907 = vmatprep.subr.mxu0 0.0
    %1908 = vmatpush1.msra.mxu0 0.0
    %1909 = vmatprep.subr.mxu0 0.0
    %1910 = vmatpush1.msra.mxu0 0.0
    %1911 = vmatprep.subr.mxu0 0.0
    %1912 = vmatpush1.msra.mxu0 0.0
    %1913 = vmatprep.subr.mxu0 0.0
    %1914 = vmatpush1.msra.mxu0 0.0
    %1915 = vmatprep.subr.mxu0 0.0
    %1916 = vmatpush1.msra.mxu0 0.0
    %1917 = vmatprep.subr.mxu0 0.0
    %1918 = vmatpush1.msra.mxu0 0.0
    %1919 = vmatprep.subr.mxu0 0.0
    %1920 = vmatpush1.msra.mxu0 0.0
    %1921 = vmatprep.subr.mxu0 0.0
    %1922 = vmatpush1.msra.mxu0 0.0
    %1923 = vmatprep.subr.mxu0 0.0
    %1924 = vmatpush1.msra.mxu0 0.0
    %1925 = vmatprep.subr.mxu0 0.0
    %1926 = vmatpush1.msra.mxu0 0.0
    %1927 = vmatprep.subr.mxu0 0.0
    %1928 = vmatpush1.msra.mxu0 0.0
    %1929 = vmatprep.subr.mxu0 0.0
    %1930 = vmatpush1.msra.mxu0 0.0
    %1931 = vmatprep.subr.mxu0 0.0
    %1932 = vmatpush1.msra.mxu0 0.0
    %1933 = vmatprep.subr.mxu0 0.0
    %1934 = vmatpush1.msra.mxu0 0.0
    %1935 = vmatprep.subr.mxu0 0.0
    %1936 = vmatpush1.msra.mxu0 0.0
    %1937 = vmatprep.subr.mxu0 0.0
    %1938 = vmatpush1.msra.mxu0 0.0
    %1939 = vmatprep.subr.mxu0 0.0
    %1940 = vmatpush1.msra.mxu0 0.0
    %1941 = vmatprep.subr.mxu0 0.0
    %1942 = vmatpush1.msra.mxu0 0.0
    %1943 = vmatprep.subr.mxu0 0.0
    %1944 = vmatpush1.msra.mxu0 0.0
    %1945 = vmatprep.subr.mxu0 0.0
    %1946 = vmatpush1.msra.mxu0 0.0
    %1947 = vmatprep.subr.mxu0 0.0
    %1948 = vmatpush1.msra.mxu0 0.0
    %1949 = vmatprep.mubr.f32.mxu0 0.0
    %1950 = vmatmul.mubr.f32.gmra.mrb[0].mxu0 %v1880
    %v1951 = vpop.f32.mrb[0].mxu0
    %v1952 = vadd.f32 0.0, %v1951
    %v1953 = vpop.f32.mrb[0].mxu0
    %1954 = vmatprep.mubr.f32.mxu0 0.0
    %1955 = vmatmul.mubr.f32.gmra.mrb[0].mxu0 %v1883
    %v1956 = vpop.f32.mrb[0].mxu0
    %v1957 = vadd.f32 0.0, %v1956
    %v1958 = vpop.f32.mrb[0].mxu0
    %1959 = vdwg.mxu0
    %v1960 = vadd.f32 %v1541, %v1952
    %v1961 = vadd.f32 %v1546, %v1957
    %1962 = vrot.lane.b32.xlu0 %v725, 104
    %v1963 = vpop.permute.xlu0 %1962
    %1964 = vrot.lane.b32.xlu0 %v717, 72
    %v1965 = vpop.permute.xlu0 %1964
    %v1966 = vsel %vm163, %v1963, 0
    %v1968 = vsel %vm163, %v1965, 0
    %1970 = vmatprep.subr.mxu0 0.0
    %1971 = vmatpush1.xpose.msra.mxu0 %v1968
    %1972 = vmatprep.subr.mxu0 0.0
    %1973 = vmatpush1.xpose.msra.mxu0 0.0
    %1974 = vmatprep.subr.mxu0 0.0
    %1975 = vmatpush1.xpose.msra.mxu0 0.0
    %1976 = vmatprep.subr.mxu0 0.0
    %1977 = vmatpush1.xpose.msra.mxu0 0.0
    %1978 = vmatprep.subr.mxu0 0.0
    %1979 = vmatpush1.xpose.msra.mxu0 0.0
    %1980 = vmatprep.subr.mxu0 0.0
    %1981 = vmatpush1.xpose.msra.mxu0 0.0
    %1982 = vmatprep.subr.mxu0 0.0
    %1983 = vmatpush1.xpose.msra.mxu0 0.0
    %1984 = vmatprep.subr.mxu0 0.0
    %1985 = vmatpush1.xpose.msra.mxu0 0.0
    %1986 = vmatprep.subr.mxu0 0.0
    %1987 = vmatpush1.xpose.msra.mxu0 0.0
    %1988 = vmatprep.subr.mxu0 0.0
    %1989 = vmatpush1.xpose.msra.mxu0 0.0
    %1990 = vmatprep.subr.mxu0 0.0
    %1991 = vmatpush1.xpose.msra.mxu0 0.0
    %1992 = vmatprep.subr.mxu0 0.0
    %1993 = vmatpush1.xpose.msra.mxu0 0.0
    %1994 = vmatprep.subr.mxu0 0.0
    %1995 = vmatpush1.xpose.msra.mxu0 0.0
    %1996 = vmatprep.subr.mxu0 0.0
    %1997 = vmatpush1.xpose.msra.mxu0 0.0
    %1998 = vmatprep.subr.mxu0 0.0
    %1999 = vmatpush1.xpose.msra.mxu0 0.0
    %2000 = vmatprep.subr.mxu0 0.0
    %2001 = vmatpush1.xpose.msra.mxu0 0.0
    %2002 = vmatprep.subr.mxu0 0.0
    %2003 = vmatpush1.xpose.msra.mxu0 0.0
    %2004 = vmatprep.subr.mxu0 0.0
    %2005 = vmatpush1.xpose.msra.mxu0 0.0
    %2006 = vmatprep.subr.mxu0 0.0
    %2007 = vmatpush1.xpose.msra.mxu0 0.0
    %2008 = vmatprep.subr.mxu0 0.0
    %2009 = vmatpush1.xpose.msra.mxu0 0.0
    %2010 = vmatprep.subr.mxu0 0.0
    %2011 = vmatpush1.xpose.msra.mxu0 0.0
    %2012 = vmatprep.subr.mxu0 0.0
    %2013 = vmatpush1.xpose.msra.mxu0 0.0
    %2014 = vmatprep.subr.mxu0 0.0
    %2015 = vmatpush1.xpose.msra.mxu0 0.0
    %2016 = vmatprep.subr.mxu0 0.0
    %2017 = vmatpush1.xpose.msra.mxu0 0.0
    %2018 = vmatprep.subr.mxu0 0.0
    %2019 = vmatpush1.xpose.msra.mxu0 0.0
    %2020 = vmatprep.subr.mxu0 0.0
    %2021 = vmatpush1.xpose.msra.mxu0 0.0
    %2022 = vmatprep.subr.mxu0 0.0
    %2023 = vmatpush1.xpose.msra.mxu0 0.0
    %2024 = vmatprep.subr.mxu0 0.0
    %2025 = vmatpush1.xpose.msra.mxu0 0.0
    %2026 = vmatprep.subr.mxu0 0.0
    %2027 = vmatpush1.xpose.msra.mxu0 0.0
    %2028 = vmatprep.subr.mxu0 0.0
    %2029 = vmatpush1.xpose.msra.mxu0 0.0
    %2030 = vmatprep.subr.mxu0 0.0
    %2031 = vmatpush1.xpose.msra.mxu0 0.0
    %2032 = vmatprep.subr.mxu0 0.0
    %2033 = vmatpush1.xpose.msra.mxu0 0.0
    %2034 = vmatprep.mubr.f32.mxu0 0.0
    %2035 = vmatmul.mubr.f32.gmra.mrb[0].mxu0 %v1966
    %v2036 = vpop.f32.mrb[0].mxu0
    %v2037 = vadd.f32 0.0, %v2036
    %v2038 = vpop.f32.mrb[0].mxu0
    %2039 = vdwg.mxu0
    %v2040 = vsel %vm163, %v2037, -inf
    %2041 = vmax.xlane.f32.xlu0 %v2040
    %v2042 = vpop.xlane.xlu0 %2041
    %v2043 = vsub.f32 %v2037, %v2042
    %v2044 = vmul.f32 %v2043, 1.442695
    %v2045 = vpow.pop %v2044
    %v2046 = vsel %vm163, %v2045, 0.0
    %2047 = vadd.xlane.f32.xlu0 %v2046
    %v2048 = vpop.xlane.xlu0 %2047
    %v2049 = vrcp.pop %v2048
    %v2050 = vmul.f32 %v2045, %v2049
    %2051 = vrot.lane.b32.xlu0 %v717, 40
    %v2052 = vpop.permute.xlu0 %2051
    %v2055 = vsel %vm163, %v2050, 0
    %2057 = vmatprep.subr.mxu0 0.0
    %2058 = vmatpush1.msra.mxu0 %v2052
    %2059 = vmatprep.subr.mxu0 0.0
    %2060 = vmatpush1.msra.mxu0 0.0
    %2061 = vmatprep.subr.mxu0 0.0
    %2062 = vmatpush1.msra.mxu0 0.0
    %2063 = vmatprep.subr.mxu0 0.0
    %2064 = vmatpush1.msra.mxu0 0.0
    %2065 = vmatprep.subr.mxu0 0.0
    %2066 = vmatpush1.msra.mxu0 0.0
    %2067 = vmatprep.subr.mxu0 0.0
    %2068 = vmatpush1.msra.mxu0 0.0
    %2069 = vmatprep.subr.mxu0 0.0
    %2070 = vmatpush1.msra.mxu0 0.0
    %2071 = vmatprep.subr.mxu0 0.0
    %2072 = vmatpush1.msra.mxu0 0.0
    %2073 = vmatprep.subr.mxu0 0.0
    %2074 = vmatpush1.msra.mxu0 0.0
    %2075 = vmatprep.subr.mxu0 0.0
    %2076 = vmatpush1.msra.mxu0 0.0
    %2077 = vmatprep.subr.mxu0 0.0
    %2078 = vmatpush1.msra.mxu0 0.0
    %2079 = vmatprep.subr.mxu0 0.0
    %2080 = vmatpush1.msra.mxu0 0.0
    %2081 = vmatprep.subr.mxu0 0.0
    %2082 = vmatpush1.msra.mxu0 0.0
    %2083 = vmatprep.subr.mxu0 0.0
    %2084 = vmatpush1.msra.mxu0 0.0
    %2085 = vmatprep.subr.mxu0 0.0
    %2086 = vmatpush1.msra.mxu0 0.0
    %2087 = vmatprep.subr.mxu0 0.0
    %2088 = vmatpush1.msra.mxu0 0.0
    %2089 = vmatprep.subr.mxu0 0.0
    %2090 = vmatpush1.msra.mxu0 0.0
    %2091 = vmatprep.subr.mxu0 0.0
    %2092 = vmatpush1.msra.mxu0 0.0
    %2093 = vmatprep.subr.mxu0 0.0
    %2094 = vmatpush1.msra.mxu0 0.0
    %2095 = vmatprep.subr.mxu0 0.0
    %2096 = vmatpush1.msra.mxu0 0.0
    %2097 = vmatprep.subr.mxu0 0.0
    %2098 = vmatpush1.msra.mxu0 0.0
    %2099 = vmatprep.subr.mxu0 0.0
    %2100 = vmatpush1.msra.mxu0 0.0
    %2101 = vmatprep.subr.mxu0 0.0
    %2102 = vmatpush1.msra.mxu0 0.0
    %2103 = vmatprep.subr.mxu0 0.0
    %2104 = vmatpush1.msra.mxu0 0.0
    %2105 = vmatprep.subr.mxu0 0.0
    %2106 = vmatpush1.msra.mxu0 0.0
    %2107 = vmatprep.subr.mxu0 0.0
    %2108 = vmatpush1.msra.mxu0 0.0
    %2109 = vmatprep.subr.mxu0 0.0
    %2110 = vmatpush1.msra.mxu0 0.0
    %2111 = vmatprep.subr.mxu0 0.0
    %2112 = vmatpush1.msra.mxu0 0.0
    %2113 = vmatprep.subr.mxu0 0.0
    %2114 = vmatpush1.msra.mxu0 0.0
    %2115 = vmatprep.subr.mxu0 0.0
    %2116 = vmatpush1.msra.mxu0 0.0
    %2117 = vmatprep.subr.mxu0 0.0
    %2118 = vmatpush1.msra.mxu0 0.0
    %2119 = vmatprep.subr.mxu0 0.0
    %2120 = vmatpush1.msra.mxu0 0.0
    %2121 = vmatprep.mubr.f32.mxu0 0.0
    %2122 = vmatmul.mubr.f32.gmra.mrb[0].mxu0 %v2055
    %v2123 = vpop.f32.mrb[0].mxu0
    %v2124 = vadd.f32 0.0, %v2123
    %v2125 = vpop.f32.mrb[0].mxu0
    %2126 = vdwg.mxu0
    %2127 = vrot.lane.b32.xlu0 %v726, 104
    %v2128 = vpop.permute.xlu0 %2127
    %2129 = vrot.lane.b32.xlu0 %v722, 72
    %v2130 = vpop.permute.xlu0 %2129
    %v2131 = vsel %vm163, %v2128, 0
    %v2133 = vsel %vm163, %v2130, 0
    %2135 = vmatprep.subr.mxu0 0.0
    %2136 = vmatpush1.xpose.msra.mxu0 %v2133
    %2137 = vmatprep.subr.mxu0 0.0
    %2138 = vmatpush1.xpose.msra.mxu0 0.0
    %2139 = vmatprep.subr.mxu0 0.0
    %2140 = vmatpush1.xpose.msra.mxu0 0.0
    %2141 = vmatprep.subr.mxu0 0.0
    %2142 = vmatpush1.xpose.msra.mxu0 0.0
    %2143 = vmatprep.subr.mxu0 0.0
    %2144 = vmatpush1.xpose.msra.mxu0 0.0
    %2145 = vmatprep.subr.mxu0 0.0
    %2146 = vmatpush1.xpose.msra.mxu0 0.0
    %2147 = vmatprep.subr.mxu0 0.0
    %2148 = vmatpush1.xpose.msra.mxu0 0.0
    %2149 = vmatprep.subr.mxu0 0.0
    %2150 = vmatpush1.xpose.msra.mxu0 0.0
    %2151 = vmatprep.subr.mxu0 0.0
    %2152 = vmatpush1.xpose.msra.mxu0 0.0
    %2153 = vmatprep.subr.mxu0 0.0
    %2154 = vmatpush1.xpose.msra.mxu0 0.0
    %2155 = vmatprep.subr.mxu0 0.0
    %2156 = vmatpush1.xpose.msra.mxu0 0.0
    %2157 = vmatprep.subr.mxu0 0.0
    %2158 = vmatpush1.xpose.msra.mxu0 0.0
    %2159 = vmatprep.subr.mxu0 0.0
    %2160 = vmatpush1.xpose.msra.mxu0 0.0
    %2161 = vmatprep.subr.mxu0 0.0
    %2162 = vmatpush1.xpose.msra.mxu0 0.0
    %2163 = vmatprep.subr.mxu0 0.0
    %2164 = vmatpush1.xpose.msra.mxu0 0.0
    %2165 = vmatprep.subr.mxu0 0.0
    %2166 = vmatpush1.xpose.msra.mxu0 0.0
    %2167 = vmatprep.subr.mxu0 0.0
    %2168 = vmatpush1.xpose.msra.mxu0 0.0
    %2169 = vmatprep.subr.mxu0 0.0
    %2170 = vmatpush1.xpose.msra.mxu0 0.0
    %2171 = vmatprep.subr.mxu0 0.0
    %2172 = vmatpush1.xpose.msra.mxu0 0.0
    %2173 = vmatprep.subr.mxu0 0.0
    %2174 = vmatpush1.xpose.msra.mxu0 0.0
    %2175 = vmatprep.subr.mxu0 0.0
    %2176 = vmatpush1.xpose.msra.mxu0 0.0
    %2177 = vmatprep.subr.mxu0 0.0
    %2178 = vmatpush1.xpose.msra.mxu0 0.0
    %2179 = vmatprep.subr.mxu0 0.0
    %2180 = vmatpush1.xpose.msra.mxu0 0.0
    %2181 = vmatprep.subr.mxu0 0.0
    %2182 = vmatpush1.xpose.msra.mxu0 0.0
    %2183 = vmatprep.subr.mxu0 0.0
    %2184 = vmatpush1.xpose.msra.mxu0 0.0
    %2185 = vmatprep.subr.mxu0 0.0
    %2186 = vmatpush1.xpose.msra.mxu0 0.0
    %2187 = vmatprep.subr.mxu0 0.0
    %2188 = vmatpush1.xpose.msra.mxu0 0.0
    %2189 = vmatprep.subr.mxu0 0.0
    %2190 = vmatpush1.xpose.msra.mxu0 0.0
    %2191 = vmatprep.subr.mxu0 0.0
    %2192 = vmatpush1.xpose.msra.mxu0 0.0
    %2193 = vmatprep.subr.mxu0 0.0
    %2194 = vmatpush1.xpose.msra.mxu0 0.0
    %2195 = vmatprep.subr.mxu0 0.0
    %2196 = vmatpush1.xpose.msra.mxu0 0.0
    %2197 = vmatprep.subr.mxu0 0.0
    %2198 = vmatpush1.xpose.msra.mxu0 0.0
    %2199 = vmatprep.mubr.f32.mxu0 0.0
    %2200 = vmatmul.mubr.f32.gmra.mrb[0].mxu0 %v2131
    %v2201 = vpop.f32.mrb[0].mxu0
    %v2202 = vadd.f32 0.0, %v2201
    %v2203 = vpop.f32.mrb[0].mxu0
    %2204 = vdwg.mxu0
    %v2205 = vsel %vm163, %v2202, -inf
    %2206 = vmax.xlane.f32.xlu0 %v2205
    %v2207 = vpop.xlane.xlu0 %2206
    %v2208 = vsub.f32 %v2202, %v2207
    %v2209 = vmul.f32 %v2208, 1.442695
    %v2210 = vpow.pop %v2209
    %v2211 = vsel %vm163, %v2210, 0.0
    %2212 = vadd.xlane.f32.xlu0 %v2211
    %v2213 = vpop.xlane.xlu0 %2212
    %v2214 = vrcp.pop %v2213
    %v2215 = vmul.f32 %v2210, %v2214
    %2216 = vrot.lane.b32.xlu0 %v722, 40
    %v2217 = vpop.permute.xlu0 %2216
    %v2220 = vsel %vm163, %v2215, 0
    %2222 = vmatprep.subr.mxu0 0.0
    %2223 = vmatpush1.msra.mxu0 %v2217
    %2224 = vmatprep.subr.mxu0 0.0
    %2225 = vmatpush1.msra.mxu0 0.0
    %2226 = vmatprep.subr.mxu0 0.0
    %2227 = vmatpush1.msra.mxu0 0.0
    %2228 = vmatprep.subr.mxu0 0.0
    %2229 = vmatpush1.msra.mxu0 0.0
    %2230 = vmatprep.subr.mxu0 0.0
    %2231 = vmatpush1.msra.mxu0 0.0
    %2232 = vmatprep.subr.mxu0 0.0
    %2233 = vmatpush1.msra.mxu0 0.0
    %2234 = vmatprep.subr.mxu0 0.0
    %2235 = vmatpush1.msra.mxu0 0.0
    %2236 = vmatprep.subr.mxu0 0.0
    %2237 = vmatpush1.msra.mxu0 0.0
    %2238 = vmatprep.subr.mxu0 0.0
    %2239 = vmatpush1.msra.mxu0 0.0
    %2240 = vmatprep.subr.mxu0 0.0
    %2241 = vmatpush1.msra.mxu0 0.0
    %2242 = vmatprep.subr.mxu0 0.0
    %2243 = vmatpush1.msra.mxu0 0.0
    %2244 = vmatprep.subr.mxu0 0.0
    %2245 = vmatpush1.msra.mxu0 0.0
    %2246 = vmatprep.subr.mxu0 0.0
    %2247 = vmatpush1.msra.mxu0 0.0
    %2248 = vmatprep.subr.mxu0 0.0
    %2249 = vmatpush1.msra.mxu0 0.0
    %2250 = vmatprep.subr.mxu0 0.0
    %2251 = vmatpush1.msra.mxu0 0.0
    %2252 = vmatprep.subr.mxu0 0.0
    %2253 = vmatpush1.msra.mxu0 0.0
    %2254 = vmatprep.subr.mxu0 0.0
    %2255 = vmatpush1.msra.mxu0 0.0
    %2256 = vmatprep.subr.mxu0 0.0
    %2257 = vmatpush1.msra.mxu0 0.0
    %2258 = vmatprep.subr.mxu0 0.0
    %2259 = vmatpush1.msra.mxu0 0.0
    %2260 = vmatprep.subr.mxu0 0.0
    %2261 = vmatpush1.msra.mxu0 0.0
    %2262 = vmatprep.subr.mxu0 0.0
    %2263 = vmatpush1.msra.mxu0 0.0
    %2264 = vmatprep.subr.mxu0 0.0
    %2265 = vmatpush1.msra.mxu0 0.0
    %2266 = vmatprep.subr.mxu0 0.0
    %2267 = vmatpush1.msra.mxu0 0.0
    %2268 = vmatprep.subr.mxu0 0.0
    %2269 = vmatpush1.msra.mxu0 0.0
    %2270 = vmatprep.subr.mxu0 0.0
    %2271 = vmatpush1.msra.mxu0 0.0
    %2272 = vmatprep.subr.mxu0 0.0
    %2273 = vmatpush1.msra.mxu0 0.0
    %2274 = vmatprep.subr.mxu0 0.0
    %2275 = vmatpush1.msra.mxu0 0.0
    %2276 = vmatprep.subr.mxu0 0.0
    %2277 = vmatpush1.msra.mxu0 0.0
    %2278 = vmatprep.subr.mxu0 0.0
    %2279 = vmatpush1.msra.mxu0 0.0
    %2280 = vmatprep.subr.mxu0 0.0
    %2281 = vmatpush1.msra.mxu0 0.0
    %2282 = vmatprep.subr.mxu0 0.0
    %2283 = vmatpush1.msra.mxu0 0.0
    %2284 = vmatprep.subr.mxu0 0.0
    %2285 = vmatpush1.msra.mxu0 0.0
    %2286 = vmatprep.mubr.f32.mxu0 0.0
    %2287 = vmatmul.mubr.f32.gmra.mrb[0].mxu0 %v2220
    %v2288 = vpop.f32.mrb[0].mxu0
    %v2289 = vadd.f32 0.0, %v2288
    %v2290 = vpop.f32.mrb[0].mxu0
    %2291 = vdwg.mxu0
    %v2293 = vsel %vm163, %v2124, 0
    %v2296 = vsel %vm163, %v2289, 0
    %2298 = vmatprep.subr.mxu0 0.0
    %2299 = vmatpush1.msra.mxu0 %v623
    %2300 = vmatprep.subr.mxu0 0.0
    %2301 = vmatpush1.msra.mxu0 0.0
    %2302 = vmatprep.subr.mxu0 0.0
    %2303 = vmatpush1.msra.mxu0 0.0
    %2304 = vmatprep.subr.mxu0 0.0
    %2305 = vmatpush1.msra.mxu0 0.0
    %2306 = vmatprep.subr.mxu0 0.0
    %2307 = vmatpush1.msra.mxu0 0.0
    %2308 = vmatprep.subr.mxu0 0.0
    %2309 = vmatpush1.msra.mxu0 0.0
    %2310 = vmatprep.subr.mxu0 0.0
    %2311 = vmatpush1.msra.mxu0 0.0
    %2312 = vmatprep.subr.mxu0 0.0
    %2313 = vmatpush1.msra.mxu0 0.0
    %2314 = vmatprep.subr.mxu0 0.0
    %2315 = vmatpush1.msra.mxu0 0.0
    %2316 = vmatprep.subr.mxu0 0.0
    %2317 = vmatpush1.msra.mxu0 0.0
    %2318 = vmatprep.subr.mxu0 0.0
    %2319 = vmatpush1.msra.mxu0 0.0
    %2320 = vmatprep.subr.mxu0 0.0
    %2321 = vmatpush1.msra.mxu0 0.0
    %2322 = vmatprep.subr.mxu0 0.0
    %2323 = vmatpush1.msra.mxu0 0.0
    %2324 = vmatprep.subr.mxu0 0.0
    %2325 = vmatpush1.msra.mxu0 0.0
    %2326 = vmatprep.subr.mxu0 0.0
    %2327 = vmatpush1.msra.mxu0 0.0
    %2328 = vmatprep.subr.mxu0 0.0
    %2329 = vmatpush1.msra.mxu0 0.0
    %2330 = vmatprep.subr.mxu0 0.0
    %2331 = vmatpush1.msra.mxu0 0.0
    %2332 = vmatprep.subr.mxu0 0.0
    %2333 = vmatpush1.msra.mxu0 0.0
    %2334 = vmatprep.subr.mxu0 0.0
    %2335 = vmatpush1.msra.mxu0 0.0
    %2336 = vmatprep.subr.mxu0 0.0
    %2337 = vmatpush1.msra.mxu0 0.0
    %2338 = vmatprep.subr.mxu0 0.0
    %2339 = vmatpush1.msra.mxu0 0.0
    %2340 = vmatprep.subr.mxu0 0.0
    %2341 = vmatpush1.msra.mxu0 0.0
    %2342 = vmatprep.subr.mxu0 0.0
    %2343 = vmatpush1.msra.mxu0 0.0
    %2344 = vmatprep.subr.mxu0 0.0
    %2345 = vmatpush1.msra.mxu0 0.0
    %2346 = vmatprep.subr.mxu0 0.0
    %2347 = vmatpush1.msra.mxu0 0.0
    %2348 = vmatprep.subr.mxu0 0.0
    %2349 = vmatpush1.msra.mxu0 0.0
    %2350 = vmatprep.subr.mxu0 0.0
    %2351 = vmatpush1.msra.mxu0 0.0
    %2352 = vmatprep.subr.mxu0 0.0
    %2353 = vmatpush1.msra.mxu0 0.0
    %2354 = vmatprep.subr.mxu0 0.0
    %2355 = vmatpush1.msra.mxu0 0.0
    %2356 = vmatprep.subr.mxu0 0.0
    %2357 = vmatpush1.msra.mxu0 0.0
    %2358 = vmatprep.subr.mxu0 0.0
    %2359 = vmatpush1.msra.mxu0 0.0
    %2360 = vmatprep.subr.mxu0 0.0
    %2361 = vmatpush1.msra.mxu0 0.0
    %2362 = vmatprep.mubr.f32.mxu0 0.0
    %2363 = vmatmul.mubr.f32.gmra.mrb[0].mxu0 %v2293
    %v2364 = vpop.f32.mrb[0].mxu0
    %v2365 = vadd.f32 0.0, %v2364
    %v2366 = vpop.f32.mrb[0].mxu0
    %2367 = vmatprep.mubr.f32.mxu0 0.0
    %2368 = vmatmul.mubr.f32.gmra.mrb[0].mxu0 %v2296
    %v2369 = vpop.f32.mrb[0].mxu0
    %v2370 = vadd.f32 0.0, %v2369
    %v2371 = vpop.f32.mrb[0].mxu0
    %2372 = vdwg.mxu0
    %v2373 = vadd.f32 %v1960, %v2365
    %v2374 = vadd.f32 %v1961, %v2370
    %v2375 = vlaneseq
    %v2376 = vshrl.u32 %v2375, 7
    %v2377 = vsub.s32 0, %v2376
    %v2378 = vrot.slane %v637, %v2377
    %v2379 = vadd.f32 %v2373, %v2378
    %v2380 = vadd.f32 %v2374, %v2378
    %v2381 = vadd.f32 %v613, %v2379
    %v2382 = vadd.f32 %v614, %v2380
    %v2383 = vsel %vm525, %v2381, 0.0
    %2384 = vadd.xlane.f32.xlu0 %v2383
    %v2385 = vpop.xlane.xlu0 %2384
    %v2386 = vsel %vm525, %v2382, 0.0
    %2387 = vadd.xlane.f32.xlu0 %v2386
    %v2388 = vpop.xlane.xlu0 %2387
    %v2389 = vrcp.pop 32.0
    %v2390 = vmul.f32 %v2385, %v2389
    %v2391 = vmul.f32 %v2388, %v2389
    %v2392 = vsub.f32 %v2381, %v2390
    %v2393 = vsub.f32 %v2382, %v2391
    %v2394 = vmul.f32 %v2392, %v2392
    %v2395 = vmul.f32 %v2393, %v2393
    %v2396 = vsel %vm525, %v2394, 0.0
    %2397 = vadd.xlane.f32.xlu0 %v2396
    %v2398 = vpop.xlane.xlu0 %2397
    %v2399 = vsel %vm525, %v2395, 0.0
    %2400 = vadd.xlane.f32.xlu0 %v2399
    %v2401 = vpop.xlane.xlu0 %2400
    %v2402 = vmul.f32 %v2398, %v2389
    %v2403 = vmul.f32 %v2401, %v2389
    %v2404 = vadd.f32 %v2402, 1e-05
    %v2405 = vadd.f32 %v2403, 1e-05
    %v2406 = vrsqrt.pop %v2404
    %v2407 = vrsqrt.pop %v2405
    %v2408 = vmul.f32 %v2392, %v2406
    %v2409 = vmul.f32 %v2393, %v2407
    %v2410 = vlaneseq
    %v2411 = vshrl.u32 %v2410, 7
    %v2412 = vsub.s32 1, %v2411
    %v2413 = vrot.slane %v637, %v2412
    %v2414 = vmul.f32 %v2408, %v2413
    %v2415 = vmul.f32 %v2409, %v2413
    %v2416 = vlaneseq
    %v2417 = vshrl.u32 %v2416, 7
    %v2418 = vsub.s32 2, %v2417
    %v2419 = vrot.slane %v637, %v2418
    %v2420 = vadd.f32 %v2414, %v2419
    %v2421 = vadd.f32 %v2415, %v2419
    %v2423 = vlaneseq
    %v2424 = vshrl.u32 %v2423, 7
    %v2425 = vsub.s32 0, %v2424
    %v2426 = vrot.slane %v628, %v2425
    %v2429 = vsel %vm525, %v2420, 0
    %v2432 = vsel %vm525, %v2421, 0
    %2434 = vmatprep.subr.mxu0 0.0
    %2435 = vmatpush1.msra.mxu0 %v624
    %2436 = vmatprep.subr.mxu0 0.0
    %2437 = vmatpush1.msra.mxu0 %v625
    %2438 = vmatprep.subr.mxu0 0.0
    %2439 = vmatpush1.msra.mxu0 %v626
    %2440 = vmatprep.subr.mxu0 0.0
    %2441 = vmatpush1.msra.mxu0 %v627
    %2442 = vmatprep.subr.mxu0 0.0
    %2443 = vmatpush1.msra.mxu0 0.0
    %2444 = vmatprep.subr.mxu0 0.0
    %2445 = vmatpush1.msra.mxu0 0.0
    %2446 = vmatprep.subr.mxu0 0.0
    %2447 = vmatpush1.msra.mxu0 0.0
    %2448 = vmatprep.subr.mxu0 0.0
    %2449 = vmatpush1.msra.mxu0 0.0
    %2450 = vmatprep.subr.mxu0 0.0
    %2451 = vmatpush1.msra.mxu0 0.0
    %2452 = vmatprep.subr.mxu0 0.0
    %2453 = vmatpush1.msra.mxu0 0.0
    %2454 = vmatprep.subr.mxu0 0.0
    %2455 = vmatpush1.msra.mxu0 0.0
    %2456 = vmatprep.subr.mxu0 0.0
    %2457 = vmatpush1.msra.mxu0 0.0
    %2458 = vmatprep.subr.mxu0 0.0
    %2459 = vmatpush1.msra.mxu0 0.0
    %2460 = vmatprep.subr.mxu0 0.0
    %2461 = vmatpush1.msra.mxu0 0.0
    %2462 = vmatprep.subr.mxu0 0.0
    %2463 = vmatpush1.msra.mxu0 0.0
    %2464 = vmatprep.subr.mxu0 0.0
    %2465 = vmatpush1.msra.mxu0 0.0
    %2466 = vmatprep.subr.mxu0 0.0
    %2467 = vmatpush1.msra.mxu0 0.0
    %2468 = vmatprep.subr.mxu0 0.0
    %2469 = vmatpush1.msra.mxu0 0.0
    %2470 = vmatprep.subr.mxu0 0.0
    %2471 = vmatpush1.msra.mxu0 0.0
    %2472 = vmatprep.subr.mxu0 0.0
    %2473 = vmatpush1.msra.mxu0 0.0
    %2474 = vmatprep.subr.mxu0 0.0
    %2475 = vmatpush1.msra.mxu0 0.0
    %2476 = vmatprep.subr.mxu0 0.0
    %2477 = vmatpush1.msra.mxu0 0.0
    %2478 = vmatprep.subr.mxu0 0.0
    %2479 = vmatpush1.msra.mxu0 0.0
    %2480 = vmatprep.subr.mxu0 0.0
    %2481 = vmatpush1.msra.mxu0 0.0
    %2482 = vmatprep.subr.mxu0 0.0
    %2483 = vmatpush1.msra.mxu0 0.0
    %2484 = vmatprep.subr.mxu0 0.0
    %2485 = vmatpush1.msra.mxu0 0.0
    %2486 = vmatprep.subr.mxu0 0.0
    %2487 = vmatpush1.msra.mxu0 0.0
    %2488 = vmatprep.subr.mxu0 0.0
    %2489 = vmatpush1.msra.mxu0 0.0
    %2490 = vmatprep.subr.mxu0 0.0
    %2491 = vmatpush1.msra.mxu0 0.0
    %2492 = vmatprep.subr.mxu0 0.0
    %2493 = vmatpush1.msra.mxu0 0.0
    %2494 = vmatprep.subr.mxu0 0.0
    %2495 = vmatpush1.msra.mxu0 0.0
    %2496 = vmatprep.subr.mxu0 0.0
    %2497 = vmatpush1.msra.mxu0 0.0
    %2498 = vmatprep.mubr.f32.mxu0 0.0
    %2499 = vmatmul.mubr.f32.gmra.mrb[0].mxu0 %v2429
    %v2500 = vpop.f32.mrb[0].mxu0
    %v2501 = vadd.f32 %v2426, %v2500
    %v2502 = vpop.f32.mrb[0].mxu0
    %2503 = vmatprep.mubr.f32.mxu0 0.0
    %2504 = vmatmul.mubr.f32.gmra.mrb[0].mxu0 %v2432
    %v2505 = vpop.f32.mrb[0].mxu0
    %v2506 = vadd.f32 %v2426, %v2505
    %v2507 = vpop.f32.mrb[0].mxu0
    %2508 = vdwg.mxu0
    %v2509 = vmax.f32 %v2501, 0.0
    %v2510 = vmax.f32 %v2506, 0.0
    %v2511 = vlaneseq
    %v2512 = vshrl.u32 %v2511, 7
    %v2513 = vsub.s32 3, %v2512
    %v2514 = vrot.slane %v637, %v2513
    %vm2515 = vcmask 523264
    %v2517 = vsel %vm2515, %v2509, 0
    %v2520 = vsel %vm2515, %v2510, 0
    %2522 = vmatprep.subr.mxu0 0.0
    %2523 = vmatpush1.msra.mxu0 %v629
    %2524 = vmatprep.subr.mxu0 0.0
    %2525 = vmatpush1.msra.mxu0 %v630
    %2526 = vmatprep.subr.mxu0 0.0
    %2527 = vmatpush1.msra.mxu0 %v631
    %2528 = vmatprep.subr.mxu0 0.0
    %2529 = vmatpush1.msra.mxu0 %v632
    %2530 = vmatprep.subr.mxu0 0.0
    %2531 = vmatpush1.msra.mxu0 %v633
    %2532 = vmatprep.subr.mxu0 0.0
    %2533 = vmatpush1.msra.mxu0 %v634
    %2534 = vmatprep.subr.mxu0 0.0
    %2535 = vmatpush1.msra.mxu0 %v635
    %2536 = vmatprep.subr.mxu0 0.0
    %2537 = vmatpush1.msra.mxu0 %v636
    %2538 = vmatprep.subr.mxu0 0.0
    %2539 = vmatpush1.msra.mxu0 0.0
    %2540 = vmatprep.subr.mxu0 0.0
    %2541 = vmatpush1.msra.mxu0 0.0
    %2542 = vmatprep.subr.mxu0 0.0
    %2543 = vmatpush1.msra.mxu0 0.0
    %2544 = vmatprep.subr.mxu0 0.0
    %2545 = vmatpush1.msra.mxu0 0.0
    %2546 = vmatprep.subr.mxu0 0.0
    %2547 = vmatpush1.msra.mxu0 0.0
    %2548 = vmatprep.subr.mxu0 0.0
    %2549 = vmatpush1.msra.mxu0 0.0
    %2550 = vmatprep.subr.mxu0 0.0
    %2551 = vmatpush1.msra.mxu0 0.0
    %2552 = vmatprep.subr.mxu0 0.0
    %2553 = vmatpush1.msra.mxu0 0.0
    %2554 = vmatprep.subr.mxu0 0.0
    %2555 = vmatpush1.msra.mxu0 0.0
    %2556 = vmatprep.subr.mxu0 0.0
    %2557 = vmatpush1.msra.mxu0 0.0
    %2558 = vmatprep.subr.mxu0 0.0
    %2559 = vmatpush1.msra.mxu0 0.0
    %2560 = vmatprep.subr.mxu0 0.0
    %2561 = vmatpush1.msra.mxu0 0.0
    %2562 = vmatprep.subr.mxu0 0.0
    %2563 = vmatpush1.msra.mxu0 0.0
    %2564 = vmatprep.subr.mxu0 0.0
    %2565 = vmatpush1.msra.mxu0 0.0
    %2566 = vmatprep.subr.mxu0 0.0
    %2567 = vmatpush1.msra.mxu0 0.0
    %2568 = vmatprep.subr.mxu0 0.0
    %2569 = vmatpush1.msra.mxu0 0.0
    %2570 = vmatprep.subr.mxu0 0.0
    %2571 = vmatpush1.msra.mxu0 0.0
    %2572 = vmatprep.subr.mxu0 0.0
    %2573 = vmatpush1.msra.mxu0 0.0
    %2574 = vmatprep.subr.mxu0 0.0
    %2575 = vmatpush1.msra.mxu0 0.0
    %2576 = vmatprep.subr.mxu0 0.0
    %2577 = vmatpush1.msra.mxu0 0.0
    %2578 = vmatprep.subr.mxu0 0.0
    %2579 = vmatpush1.msra.mxu0 0.0
    %2580 = vmatprep.subr.mxu0 0.0
    %2581 = vmatpush1.msra.mxu0 0.0
    %2582 = vmatprep.subr.mxu0 0.0
    %2583 = vmatpush1.msra.mxu0 0.0
    %2584 = vmatprep.subr.mxu0 0.0
    %2585 = vmatpush1.msra.mxu0 0.0
    %2586 = vmatprep.mubr.f32.mxu0 0.0
    %2587 = vmatmul.mubr.f32.gmra.mrb[0].mxu0 %v2517
    %v2588 = vpop.f32.mrb[0].mxu0
    %v2589 = vadd.f32 %v2514, %v2588
    %v2590 = vpop.f32.mrb[0].mxu0
    %2591 = vmatprep.mubr.f32.mxu0 0.0
    %2592 = vmatmul.mubr.f32.gmra.mrb[0].mxu0 %v2520
    %v2593 = vpop.f32.mrb[0].mxu0
    %v2594 = vadd.f32 %v2514, %v2593
    %v2595 = vpop.f32.mrb[0].mxu0
    %2596 = vdwg.mxu0
    %v2597 = vadd.f32 %v2420, %v2589
    %v2598 = vadd.f32 %v2421, %v2594
    %v2599 = vsel %vm525, %v2597, 0.0
    %2600 = vadd.xlane.f32.xlu0 %v2599
    %v2601 = vpop.xlane.xlu0 %2600
    %v2602 = vsel %vm525, %v2598, 0.0
    %2603 = vadd.xlane.f32.xlu0 %v2602
    %v2604 = vpop.xlane.xlu0 %2603
    %v2605 = vmul.f32 %v2601, %v2389
    %v2606 = vmul.f32 %v2604, %v2389
    %v2607 = vsub.f32 %v2597, %v2605
    %v2608 = vsub.f32 %v2598, %v2606
    %v2609 = vmul.f32 %v2607, %v2607
    %v2610 = vmul.f32 %v2608, %v2608
    %v2611 = vsel %vm525, %v2609, 0.0
    %2612 = vadd.xlane.f32.xlu0 %v2611
    %v2613 = vpop.xlane.xlu0 %2612
    %v2614 = vsel %vm525, %v2610, 0.0
    %2615 = vadd.xlane.f32.xlu0 %v2614
    %v2616 = vpop.xlane.xlu0 %2615
    %v2617 = vmul.f32 %v2613, %v2389
    %v2618 = vmul.f32 %v2616, %v2389
    %v2619 = vadd.f32 %v2617, 1e-05
    %v2620 = vadd.f32 %v2618, 1e-05
    %v2621 = vrsqrt.pop %v2619
    %v2622 = vrsqrt.pop %v2620
    %v2623 = vmul.f32 %v2607, %v2621
    %v2624 = vmul.f32 %v2608, %v2622
    %v2625 = vlaneseq
    %v2626 = vshrl.u32 %v2625, 7
    %v2627 = vsub.s32 4, %v2626
    %v2628 = vrot.slane %v637, %v2627
    %v2629 = vmul.f32 %v2623, %v2628
    %v2630 = vmul.f32 %v2624, %v2628
    %v2631 = vlaneseq
    %v2632 = vshrl.u32 %v2631, 7
    %v2633 = vsub.s32 5, %v2632
    %v2634 = vrot.slane %v637, %v2633
    %v2635 = vadd.f32 %v2629, %v2634
    %v2636 = vadd.f32 %v2630, %v2634
    %s2637 = scalar_lea.vmem %s8, 32
    %v2638 = vld [vmem:[%s2637] sm:$0xff]
    %v2639 = vld [vmem:[%s2637 + $0x8] sm:$0xff]
    %v2640 = vld [vmem:[%s2637 + $0x10] sm:$0xff]
    %v2641 = vld [vmem:[%s2637 + $0x18] sm:$0xff]
    %s2642 = scalar_lea.vmem %s9, 1
    %v2643 = vld [vmem:[%s2642] sm:$0x1]
    %s2644 = scalar_lea.vmem %s10, 32
    %v2645 = vld [vmem:[%s2644] sm:$0xff]
    %v2646 = vld [vmem:[%s2644 + $0x8] sm:$0xff]
    %v2647 = vld [vmem:[%s2644 + $0x10] sm:$0xff]
    %v2648 = vld [vmem:[%s2644 + $0x18] sm:$0xff]
    %s2649 = scalar_lea.vmem %s11, 32
    %v2650 = vld [vmem:[%s2649] sm:$0xff]
    %v2651 = vld [vmem:[%s2649 + $0x8] sm:$0xff]
    %v2652 = vld [vmem:[%s2649 + $0x10] sm:$0xff]
    %v2653 = vld [vmem:[%s2649 + $0x18] sm:$0xff]
    %s2654 = scalar_lea.vmem %s12, 1
    %v2655 = vld [vmem:[%s2654] sm:$0x1]
    %s2656 = scalar_lea.vmem %s13, 64
    %v2657 = vld [vmem:[%s2656] sm:$0xff]
    %v2658 = vld [vmem:[%s2656 + $0x8] sm:$0xff]
    %v2659 = vld [vmem:[%s2656 + $0x10] sm:$0xff]
    %v2660 = vld [vmem:[%s2656 + $0x18] sm:$0xff]
    %v2661 = vld [vmem:[%s2656 + $0x20] sm:$0xff]
    %v2662 = vld [vmem:[%s2656 + $0x28] sm:$0xff]
    %v2663 = vld [vmem:[%s2656 + $0x30] sm:$0xff]
    %v2664 = vld [vmem:[%s2656 + $0x38] sm:$0xff]
    %s2665 = scalar_lea.vmem %s14, 8
    %v2666 = vld [vmem:[%s2665] sm:$0x3f]
    %v2668 = vlaneseq
    %v2669 = vshrl.u32 %v2668, 7
    %v2670 = vsub.s32 0, %v2669
    %v2671 = vrot.slane %v2643, %v2670
    %v2674 = vsel %vm525, %v2635, 0
    %v2677 = vsel %vm525, %v2636, 0
    %2679 = vmatprep.subr.mxu0 0.0
    %2680 = vmatpush1.msra.mxu0 %v2638
    %2681 = vmatprep.subr.mxu0 0.0
    %2682 = vmatpush1.msra.mxu0 %v2639
    %2683 = vmatprep.subr.mxu0 0.0
    %2684 = vmatpush1.msra.mxu0 %v2640
    %2685 = vmatprep.subr.mxu0 0.0
    %2686 = vmatpush1.msra.mxu0 %v2641
    %2687 = vmatprep.subr.mxu0 0.0
    %2688 = vmatpush1.msra.mxu0 0.0
    %2689 = vmatprep.subr.mxu0 0.0
    %2690 = vmatpush1.msra.mxu0 0.0
    %2691 = vmatprep.subr.mxu0 0.0
    %2692 = vmatpush1.msra.mxu0 0.0
    %2693 = vmatprep.subr.mxu0 0.0
    %2694 = vmatpush1.msra.mxu0 0.0
    %2695 = vmatprep.subr.mxu0 0.0
    %2696 = vmatpush1.msra.mxu0 0.0
    %2697 = vmatprep.subr.mxu0 0.0
    %2698 = vmatpush1.msra.mxu0 0.0
    %2699 = vmatprep.subr.mxu0 0.0
    %2700 = vmatpush1.msra.mxu0 0.0
    %2701 = vmatprep.subr.mxu0 0.0
    %2702 = vmatpush1.msra.mxu0 0.0
    %2703 = vmatprep.subr.mxu0 0.0
    %2704 = vmatpush1.msra.mxu0 0.0
    %2705 = vmatprep.subr.mxu0 0.0
    %2706 = vmatpush1.msra.mxu0 0.0
    %2707 = vmatprep.subr.mxu0 0.0
    %2708 = vmatpush1.msra.mxu0 0.0
    %2709 = vmatprep.subr.mxu0 0.0
    %2710 = vmatpush1.msra.mxu0 0.0
    %2711 = vmatprep.subr.mxu0 0.0
    %2712 = vmatpush1.msra.mxu0 0.0
    %2713 = vmatprep.subr.mxu0 0.0
    %2714 = vmatpush1.msra.mxu0 0.0
    %2715 = vmatprep.subr.mxu0 0.0
    %2716 = vmatpush1.msra.mxu0 0.0
    %2717 = vmatprep.subr.mxu0 0.0
    %2718 = vmatpush1.msra.mxu0 0.0
    %2719 = vmatprep.subr.mxu0 0.0
    %2720 = vmatpush1.msra.mxu0 0.0
    %2721 = vmatprep.subr.mxu0 0.0
    %2722 = vmatpush1.msra.mxu0 0.0
    %2723 = vmatprep.subr.mxu0 0.0
    %2724 = vmatpush1.msra.mxu0 0.0
    %2725 = vmatprep.subr.mxu0 0.0
    %2726 = vmatpush1.msra.mxu0 0.0
    %2727 = vmatprep.subr.mxu0 0.0
    %2728 = vmatpush1.msra.mxu0 0.0
    %2729 = vmatprep.subr.mxu0 0.0
    %2730 = vmatpush1.msra.mxu0 0.0
    %2731 = vmatprep.subr.mxu0 0.0
    %2732 = vmatpush1.msra.mxu0 0.0
    %2733 = vmatprep.subr.mxu0 0.0
    %2734 = vmatpush1.msra.mxu0 0.0
    %2735 = vmatprep.subr.mxu0 0.0
    %2736 = vmatpush1.msra.mxu0 0.0
    %2737 = vmatprep.subr.mxu0 0.0
    %2738 = vmatpush1.msra.mxu0 0.0
    %2739 = vmatprep.subr.mxu0 0.0
    %2740 = vmatpush1.msra.mxu0 0.0
    %2741 = vmatprep.subr.mxu0 0.0
    %2742 = vmatpush1.msra.mxu0 0.0
    %2743 = vmatprep.mubr.f32.mxu0 0.0
    %2744 = vmatmul.mubr.f32.gmra.mrb[0].mxu0 %v2674
    %v2745 = vpop.f32.mrb[0].mxu0
    %v2746 = vadd.f32 %v2671, %v2745
    %v2747 = vpop.f32.mrb[0].mxu0
    %2748 = vmatprep.mubr.f32.mxu0 0.0
    %2749 = vmatmul.mubr.f32.gmra.mrb[0].mxu0 %v2677
    %v2750 = vpop.f32.mrb[0].mxu0
    %v2751 = vadd.f32 %v2671, %v2750
    %v2752 = vpop.f32.mrb[0].mxu0
    %2753 = vdwg.mxu0
    %v2754 = vmul.f32 %v2746, 0.35355338
    %v2755 = vmul.f32 %v2751, 0.35355338
    %2757 = vrot.lane.b32.xlu0 %v2746, 96
    %v2758 = vpop.permute.xlu0 %2757
    %v2760 = vsel %vm163, %v2754, 0
    %v2762 = vsel %vm163, %v2758, 0
    %2764 = vmatprep.subr.mxu0 0.0
    %2765 = vmatpush1.xpose.msra.mxu0 %v2762
    %2766 = vmatprep.subr.mxu0 0.0
    %2767 = vmatpush1.xpose.msra.mxu0 0.0
    %2768 = vmatprep.subr.mxu0 0.0
    %2769 = vmatpush1.xpose.msra.mxu0 0.0
    %2770 = vmatprep.subr.mxu0 0.0
    %2771 = vmatpush1.xpose.msra.mxu0 0.0
    %2772 = vmatprep.subr.mxu0 0.0
    %2773 = vmatpush1.xpose.msra.mxu0 0.0
    %2774 = vmatprep.subr.mxu0 0.0
    %2775 = vmatpush1.xpose.msra.mxu0 0.0
    %2776 = vmatprep.subr.mxu0 0.0
    %2777 = vmatpush1.xpose.msra.mxu0 0.0
    %2778 = vmatprep.subr.mxu0 0.0
    %2779 = vmatpush1.xpose.msra.mxu0 0.0
    %2780 = vmatprep.subr.mxu0 0.0
    %2781 = vmatpush1.xpose.msra.mxu0 0.0
    %2782 = vmatprep.subr.mxu0 0.0
    %2783 = vmatpush1.xpose.msra.mxu0 0.0
    %2784 = vmatprep.subr.mxu0 0.0
    %2785 = vmatpush1.xpose.msra.mxu0 0.0
    %2786 = vmatprep.subr.mxu0 0.0
    %2787 = vmatpush1.xpose.msra.mxu0 0.0
    %2788 = vmatprep.subr.mxu0 0.0
    %2789 = vmatpush1.xpose.msra.mxu0 0.0
    %2790 = vmatprep.subr.mxu0 0.0
    %2791 = vmatpush1.xpose.msra.mxu0 0.0
    %2792 = vmatprep.subr.mxu0 0.0
    %2793 = vmatpush1.xpose.msra.mxu0 0.0
    %2794 = vmatprep.subr.mxu0 0.0
    %2795 = vmatpush1.xpose.msra.mxu0 0.0
    %2796 = vmatprep.subr.mxu0 0.0
    %2797 = vmatpush1.xpose.msra.mxu0 0.0
    %2798 = vmatprep.subr.mxu0 0.0
    %2799 = vmatpush1.xpose.msra.mxu0 0.0
    %2800 = vmatprep.subr.mxu0 0.0
    %2801 = vmatpush1.xpose.msra.mxu0 0.0
    %2802 = vmatprep.subr.mxu0 0.0
    %2803 = vmatpush1.xpose.msra.mxu0 0.0
    %2804 = vmatprep.subr.mxu0 0.0
    %2805 = vmatpush1.xpose.msra.mxu0 0.0
    %2806 = vmatprep.subr.mxu0 0.0
    %2807 = vmatpush1.xpose.msra.mxu0 0.0
    %2808 = vmatprep.subr.mxu0 0.0
    %2809 = vmatpush1.xpose.msra.mxu0 0.0
    %2810 = vmatprep.subr.mxu0 0.0
    %2811 = vmatpush1.xpose.msra.mxu0 0.0
    %2812 = vmatprep.subr.mxu0 0.0
    %2813 = vmatpush1.xpose.msra.mxu0 0.0
    %2814 = vmatprep.subr.mxu0 0.0
    %2815 = vmatpush1.xpose.msra.mxu0 0.0
    %2816 = vmatprep.subr.mxu0 0.0
    %2817 = vmatpush1.xpose.msra.mxu0 0.0
    %2818 = vmatprep.subr.mxu0 0.0
    %2819 = vmatpush1.xpose.msra.mxu0 0.0
    %2820 = vmatprep.subr.mxu0 0.0
    %2821 = vmatpush1.xpose.msra.mxu0 0.0
    %2822 = vmatprep.subr.mxu0 0.0
    %2823 = vmatpush1.xpose.msra.mxu0 0.0
    %2824 = vmatprep.subr.mxu0 0.0
    %2825 = vmatpush1.xpose.msra.mxu0 0.0
    %2826 = vmatprep.subr.mxu0 0.0
    %2827 = vmatpush1.xpose.msra.mxu0 0.0
    %2828 = vmatprep.mubr.f32.mxu0 0.0
    %2829 = vmatmul.mubr.f32.gmra.mrb[0].mxu0 %v2760
    %v2830 = vpop.f32.mrb[0].mxu0
    %v2831 = vadd.f32 0.0, %v2830
    %v2832 = vpop.f32.mrb[0].mxu0
    %2833 = vdwg.mxu0
    %v2834 = vsel %vm163, %v2831, -inf
    %2835 = vmax.xlane.f32.xlu0 %v2834
    %v2836 = vpop.xlane.xlu0 %2835
    %v2837 = vsub.f32 %v2831, %v2836
    %v2838 = vmul.f32 %v2837, 1.442695
    %v2839 = vpow.pop %v2838
    %v2840 = vsel %vm163, %v2839, 0.0
    %2841 = vadd.xlane.f32.xlu0 %v2840
    %v2842 = vpop.xlane.xlu0 %2841
    %v2843 = vrcp.pop %v2842
    %v2844 = vmul.f32 %v2839, %v2843
    %2845 = vrot.lane.b32.xlu0 %v2746, 64
    %v2846 = vpop.permute.xlu0 %2845
    %v2849 = vsel %vm163, %v2844, 0
    %2851 = vmatprep.subr.mxu0 0.0
    %2852 = vmatpush1.msra.mxu0 %v2846
    %2853 = vmatprep.subr.mxu0 0.0
    %2854 = vmatpush1.msra.mxu0 0.0
    %2855 = vmatprep.subr.mxu0 0.0
    %2856 = vmatpush1.msra.mxu0 0.0
    %2857 = vmatprep.subr.mxu0 0.0
    %2858 = vmatpush1.msra.mxu0 0.0
    %2859 = vmatprep.subr.mxu0 0.0
    %2860 = vmatpush1.msra.mxu0 0.0
    %2861 = vmatprep.subr.mxu0 0.0
    %2862 = vmatpush1.msra.mxu0 0.0
    %2863 = vmatprep.subr.mxu0 0.0
    %2864 = vmatpush1.msra.mxu0 0.0
    %2865 = vmatprep.subr.mxu0 0.0
    %2866 = vmatpush1.msra.mxu0 0.0
    %2867 = vmatprep.subr.mxu0 0.0
    %2868 = vmatpush1.msra.mxu0 0.0
    %2869 = vmatprep.subr.mxu0 0.0
    %2870 = vmatpush1.msra.mxu0 0.0
    %2871 = vmatprep.subr.mxu0 0.0
    %2872 = vmatpush1.msra.mxu0 0.0
    %2873 = vmatprep.subr.mxu0 0.0
    %2874 = vmatpush1.msra.mxu0 0.0
    %2875 = vmatprep.subr.mxu0 0.0
    %2876 = vmatpush1.msra.mxu0 0.0
    %2877 = vmatprep.subr.mxu0 0.0
    %2878 = vmatpush1.msra.mxu0 0.0
    %2879 = vmatprep.subr.mxu0 0.0
    %2880 = vmatpush1.msra.mxu0 0.0
    %2881 = vmatprep.subr.mxu0 0.0
    %2882 = vmatpush1.msra.mxu0 0.0
    %2883 = vmatprep.subr.mxu0 0.0
    %2884 = vmatpush1.msra.mxu0 0.0
    %2885 = vmatprep.subr.mxu0 0.0
    %2886 = vmatpush1.msra.mxu0 0.0
    %2887 = vmatprep.subr.mxu0 0.0
    %2888 = vmatpush1.msra.mxu0 0.0
    %2889 = vmatprep.subr.mxu0 0.0
    %2890 = vmatpush1.msra.mxu0 0.0
    %2891 = vmatprep.subr.mxu0 0.0
    %2892 = vmatpush1.msra.mxu0 0.0
    %2893 = vmatprep.subr.mxu0 0.0
    %2894 = vmatpush1.msra.mxu0 0.0
    %2895 = vmatprep.subr.mxu0 0.0
    %2896 = vmatpush1.msra.mxu0 0.0
    %2897 = vmatprep.subr.mxu0 0.0
    %2898 = vmatpush1.msra.mxu0 0.0
    %2899 = vmatprep.subr.mxu0 0.0
    %2900 = vmatpush1.msra.mxu0 0.0
    %2901 = vmatprep.subr.mxu0 0.0
    %2902 = vmatpush1.msra.mxu0 0.0
    %2903 = vmatprep.subr.mxu0 0.0
    %2904 = vmatpush1.msra.mxu0 0.0
    %2905 = vmatprep.subr.mxu0 0.0
    %2906 = vmatpush1.msra.mxu0 0.0
    %2907 = vmatprep.subr.mxu0 0.0
    %2908 = vmatpush1.msra.mxu0 0.0
    %2909 = vmatprep.subr.mxu0 0.0
    %2910 = vmatpush1.msra.mxu0 0.0
    %2911 = vmatprep.subr.mxu0 0.0
    %2912 = vmatpush1.msra.mxu0 0.0
    %2913 = vmatprep.subr.mxu0 0.0
    %2914 = vmatpush1.msra.mxu0 0.0
    %2915 = vmatprep.mubr.f32.mxu0 0.0
    %2916 = vmatmul.mubr.f32.gmra.mrb[0].mxu0 %v2849
    %v2917 = vpop.f32.mrb[0].mxu0
    %v2918 = vadd.f32 0.0, %v2917
    %v2919 = vpop.f32.mrb[0].mxu0
    %2920 = vdwg.mxu0
    %2922 = vrot.lane.b32.xlu0 %v2751, 96
    %v2923 = vpop.permute.xlu0 %2922
    %v2925 = vsel %vm163, %v2755, 0
    %v2927 = vsel %vm163, %v2923, 0
    %2929 = vmatprep.subr.mxu0 0.0
    %2930 = vmatpush1.xpose.msra.mxu0 %v2927
    %2931 = vmatprep.subr.mxu0 0.0
    %2932 = vmatpush1.xpose.msra.mxu0 0.0
    %2933 = vmatprep.subr.mxu0 0.0
    %2934 = vmatpush1.xpose.msra.mxu0 0.0
    %2935 = vmatprep.subr.mxu0 0.0
    %2936 = vmatpush1.xpose.msra.mxu0 0.0
    %2937 = vmatprep.subr.mxu0 0.0
    %2938 = vmatpush1.xpose.msra.mxu0 0.0
    %2939 = vmatprep.subr.mxu0 0.0
    %2940 = vmatpush1.xpose.msra.mxu0 0.0
    %2941 = vmatprep.subr.mxu0 0.0
    %2942 = vmatpush1.xpose.msra.mxu0 0.0
    %2943 = vmatprep.subr.mxu0 0.0
    %2944 = vmatpush1.xpose.msra.mxu0 0.0
    %2945 = vmatprep.subr.mxu0 0.0
    %2946 = vmatpush1.xpose.msra.mxu0 0.0
    %2947 = vmatprep.subr.mxu0 0.0
    %2948 = vmatpush1.xpose.msra.mxu0 0.0
    %2949 = vmatprep.subr.mxu0 0.0
    %2950 = vmatpush1.xpose.msra.mxu0 0.0
    %2951 = vmatprep.subr.mxu0 0.0
    %2952 = vmatpush1.xpose.msra.mxu0 0.0
    %2953 = vmatprep.subr.mxu0 0.0
    %2954 = vmatpush1.xpose.msra.mxu0 0.0
    %2955 = vmatprep.subr.mxu0 0.0
    %2956 = vmatpush1.xpose.msra.mxu0 0.0
    %2957 = vmatprep.subr.mxu0 0.0
    %2958 = vmatpush1.xpose.msra.mxu0 0.0
    %2959 = vmatprep.subr.mxu0 0.0
    %2960 = vmatpush1.xpose.msra.mxu0 0.0
    %2961 = vmatprep.subr.mxu0 0.0
    %2962 = vmatpush1.xpose.msra.mxu0 0.0
    %2963 = vmatprep.subr.mxu0 0.0
    %2964 = vmatpush1.xpose.msra.mxu0 0.0
    %2965 = vmatprep.subr.mxu0 0.0
    %2966 = vmatpush1.xpose.msra.mxu0 0.0
    %2967 = vmatprep.subr.mxu0 0.0
    %2968 = vmatpush1.xpose.msra.mxu0 0.0
    %2969 = vmatprep.subr.mxu0 0.0
    %2970 = vmatpush1.xpose.msra.mxu0 0.0
    %2971 = vmatprep.subr.mxu0 0.0
    %2972 = vmatpush1.xpose.msra.mxu0 0.0
    %2973 = vmatprep.subr.mxu0 0.0
    %2974 = vmatpush1.xpose.msra.mxu0 0.0
    %2975 = vmatprep.subr.mxu0 0.0
    %2976 = vmatpush1.xpose.msra.mxu0 0.0
    %2977 = vmatprep.subr.mxu0 0.0
    %2978 = vmatpush1.xpose.msra.mxu0 0.0
    %2979 = vmatprep.subr.mxu0 0.0
    %2980 = vmatpush1.xpose.msra.mxu0 0.0
    %2981 = vmatprep.subr.mxu0 0.0
    %2982 = vmatpush1.xpose.msra.mxu0 0.0
    %2983 = vmatprep.subr.mxu0 0.0
    %2984 = vmatpush1.xpose.msra.mxu0 0.0
    %2985 = vmatprep.subr.mxu0 0.0
    %2986 = vmatpush1.xpose.msra.mxu0 0.0
    %2987 = vmatprep.subr.mxu0 0.0
    %2988 = vmatpush1.xpose.msra.mxu0 0.0
    %2989 = vmatprep.subr.mxu0 0.0
    %2990 = vmatpush1.xpose.msra.mxu0 0.0
    %2991 = vmatprep.subr.mxu0 0.0
    %2992 = vmatpush1.xpose.msra.mxu0 0.0
    %2993 = vmatprep.mubr.f32.mxu0 0.0
    %2994 = vmatmul.mubr.f32.gmra.mrb[0].mxu0 %v2925
    %v2995 = vpop.f32.mrb[0].mxu0
    %v2996 = vadd.f32 0.0, %v2995
    %v2997 = vpop.f32.mrb[0].mxu0
    %2998 = vdwg.mxu0
    %v2999 = vsel %vm163, %v2996, -inf
    %3000 = vmax.xlane.f32.xlu0 %v2999
    %v3001 = vpop.xlane.xlu0 %3000
    %v3002 = vsub.f32 %v2996, %v3001
    %v3003 = vmul.f32 %v3002, 1.442695
    %v3004 = vpow.pop %v3003
    %v3005 = vsel %vm163, %v3004, 0.0
    %3006 = vadd.xlane.f32.xlu0 %v3005
    %v3007 = vpop.xlane.xlu0 %3006
    %v3008 = vrcp.pop %v3007
    %v3009 = vmul.f32 %v3004, %v3008
    %3010 = vrot.lane.b32.xlu0 %v2751, 64
    %v3011 = vpop.permute.xlu0 %3010
    %v3014 = vsel %vm163, %v3009, 0
    %3016 = vmatprep.subr.mxu0 0.0
    %3017 = vmatpush1.msra.mxu0 %v3011
    %3018 = vmatprep.subr.mxu0 0.0
    %3019 = vmatpush1.msra.mxu0 0.0
    %3020 = vmatprep.subr.mxu0 0.0
    %3021 = vmatpush1.msra.mxu0 0.0
    %3022 = vmatprep.subr.mxu0 0.0
    %3023 = vmatpush1.msra.mxu0 0.0
    %3024 = vmatprep.subr.mxu0 0.0
    %3025 = vmatpush1.msra.mxu0 0.0
    %3026 = vmatprep.subr.mxu0 0.0
    %3027 = vmatpush1.msra.mxu0 0.0
    %3028 = vmatprep.subr.mxu0 0.0
    %3029 = vmatpush1.msra.mxu0 0.0
    %3030 = vmatprep.subr.mxu0 0.0
    %3031 = vmatpush1.msra.mxu0 0.0
    %3032 = vmatprep.subr.mxu0 0.0
    %3033 = vmatpush1.msra.mxu0 0.0
    %3034 = vmatprep.subr.mxu0 0.0
    %3035 = vmatpush1.msra.mxu0 0.0
    %3036 = vmatprep.subr.mxu0 0.0
    %3037 = vmatpush1.msra.mxu0 0.0
    %3038 = vmatprep.subr.mxu0 0.0
    %3039 = vmatpush1.msra.mxu0 0.0
    %3040 = vmatprep.subr.mxu0 0.0
    %3041 = vmatpush1.msra.mxu0 0.0
    %3042 = vmatprep.subr.mxu0 0.0
    %3043 = vmatpush1.msra.mxu0 0.0
    %3044 = vmatprep.subr.mxu0 0.0
    %3045 = vmatpush1.msra.mxu0 0.0
    %3046 = vmatprep.subr.mxu0 0.0
    %3047 = vmatpush1.msra.mxu0 0.0
    %3048 = vmatprep.subr.mxu0 0.0
    %3049 = vmatpush1.msra.mxu0 0.0
    %3050 = vmatprep.subr.mxu0 0.0
    %3051 = vmatpush1.msra.mxu0 0.0
    %3052 = vmatprep.subr.mxu0 0.0
    %3053 = vmatpush1.msra.mxu0 0.0
    %3054 = vmatprep.subr.mxu0 0.0
    %3055 = vmatpush1.msra.mxu0 0.0
    %3056 = vmatprep.subr.mxu0 0.0
    %3057 = vmatpush1.msra.mxu0 0.0
    %3058 = vmatprep.subr.mxu0 0.0
    %3059 = vmatpush1.msra.mxu0 0.0
    %3060 = vmatprep.subr.mxu0 0.0
    %3061 = vmatpush1.msra.mxu0 0.0
    %3062 = vmatprep.subr.mxu0 0.0
    %3063 = vmatpush1.msra.mxu0 0.0
    %3064 = vmatprep.subr.mxu0 0.0
    %3065 = vmatpush1.msra.mxu0 0.0
    %3066 = vmatprep.subr.mxu0 0.0
    %3067 = vmatpush1.msra.mxu0 0.0
    %3068 = vmatprep.subr.mxu0 0.0
    %3069 = vmatpush1.msra.mxu0 0.0
    %3070 = vmatprep.subr.mxu0 0.0
    %3071 = vmatpush1.msra.mxu0 0.0
    %3072 = vmatprep.subr.mxu0 0.0
    %3073 = vmatpush1.msra.mxu0 0.0
    %3074 = vmatprep.subr.mxu0 0.0
    %3075 = vmatpush1.msra.mxu0 0.0
    %3076 = vmatprep.subr.mxu0 0.0
    %3077 = vmatpush1.msra.mxu0 0.0
    %3078 = vmatprep.subr.mxu0 0.0
    %3079 = vmatpush1.msra.mxu0 0.0
    %3080 = vmatprep.mubr.f32.mxu0 0.0
    %3081 = vmatmul.mubr.f32.gmra.mrb[0].mxu0 %v3014
    %v3082 = vpop.f32.mrb[0].mxu0
    %v3083 = vadd.f32 0.0, %v3082
    %v3084 = vpop.f32.mrb[0].mxu0
    %3085 = vdwg.mxu0
    %3086 = vrot.lane.b32.xlu0 %v2754, 120
    %v3087 = vpop.permute.xlu0 %3086
    %3088 = vrot.lane.b32.xlu0 %v2746, 88
    %v3089 = vpop.permute.xlu0 %3088
    %v3090 = vsel %vm163, %v3087, 0
    %v3092 = vsel %vm163, %v3089, 0
    %3094 = vmatprep.subr.mxu0 0.0
    %3095 = vmatpush1.xpose.msra.mxu0 %v3092
    %3096 = vmatprep.subr.mxu0 0.0
    %3097 = vmatpush1.xpose.msra.mxu0 0.0
    %3098 = vmatprep.subr.mxu0 0.0
    %3099 = vmatpush1.xpose.msra.mxu0 0.0
    %3100 = vmatprep.subr.mxu0 0.0
    %3101 = vmatpush1.xpose.msra.mxu0 0.0
    %3102 = vmatprep.subr.mxu0 0.0
    %3103 = vmatpush1.xpose.msra.mxu0 0.0
    %3104 = vmatprep.subr.mxu0 0.0
    %3105 = vmatpush1.xpose.msra.mxu0 0.0
    %3106 = vmatprep.subr.mxu0 0.0
    %3107 = vmatpush1.xpose.msra.mxu0 0.0
    %3108 = vmatprep.subr.mxu0 0.0
    %3109 = vmatpush1.xpose.msra.mxu0 0.0
    %3110 = vmatprep.subr.mxu0 0.0
    %3111 = vmatpush1.xpose.msra.mxu0 0.0
    %3112 = vmatprep.subr.mxu0 0.0
    %3113 = vmatpush1.xpose.msra.mxu0 0.0
    %3114 = vmatprep.subr.mxu0 0.0
    %3115 = vmatpush1.xpose.msra.mxu0 0.0
    %3116 = vmatprep.subr.mxu0 0.0
    %3117 = vmatpush1.xpose.msra.mxu0 0.0
    %3118 = vmatprep.subr.mxu0 0.0
    %3119 = vmatpush1.xpose.msra.mxu0 0.0
    %3120 = vmatprep.subr.mxu0 0.0
    %3121 = vmatpush1.xpose.msra.mxu0 0.0
    %3122 = vmatprep.subr.mxu0 0.0
    %3123 = vmatpush1.xpose.msra.mxu0 0.0
    %3124 = vmatprep.subr.mxu0 0.0
    %3125 = vmatpush1.xpose.msra.mxu0 0.0
    %3126 = vmatprep.subr.mxu0 0.0
    %3127 = vmatpush1.xpose.msra.mxu0 0.0
    %3128 = vmatprep.subr.mxu0 0.0
    %3129 = vmatpush1.xpose.msra.mxu0 0.0
    %3130 = vmatprep.subr.mxu0 0.0
    %3131 = vmatpush1.xpose.msra.mxu0 0.0
    %3132 = vmatprep.subr.mxu0 0.0
    %3133 = vmatpush1.xpose.msra.mxu0 0.0
    %3134 = vmatprep.subr.mxu0 0.0
    %3135 = vmatpush1.xpose.msra.mxu0 0.0
    %3136 = vmatprep.subr.mxu0 0.0
    %3137 = vmatpush1.xpose.msra.mxu0 0.0
    %3138 = vmatprep.subr.mxu0 0.0
    %3139 = vmatpush1.xpose.msra.mxu0 0.0
    %3140 = vmatprep.subr.mxu0 0.0
    %3141 = vmatpush1.xpose.msra.mxu0 0.0
    %3142 = vmatprep.subr.mxu0 0.0
    %3143 = vmatpush1.xpose.msra.mxu0 0.0
    %3144 = vmatprep.subr.mxu0 0.0
    %3145 = vmatpush1.xpose.msra.mxu0 0.0
    %3146 = vmatprep.subr.mxu0 0.0
    %3147 = vmatpush1.xpose.msra.mxu0 0.0
    %3148 = vmatprep.subr.mxu0 0.0
    %3149 = vmatpush1.xpose.msra.mxu0 0.0
    %3150 = vmatprep.subr.mxu0 0.0
    %3151 = vmatpush1.xpose.msra.mxu0 0.0
    %3152 = vmatprep.subr.mxu0 0.0
    %3153 = vmatpush1.xpose.msra.mxu0 0.0
    %3154 = vmatprep.subr.mxu0 0.0
    %3155 = vmatpush1.xpose.msra.mxu0 0.0
    %3156 = vmatprep.subr.mxu0 0.0
    %3157 = vmatpush1.xpose.msra.mxu0 0.0
    %3158 = vmatprep.mubr.f32.mxu0 0.0
    %3159 = vmatmul.mubr.f32.gmra.mrb[0].mxu0 %v3090
    %v3160 = vpop.f32.mrb[0].mxu0
    %v3161 = vadd.f32 0.0, %v3160
    %v3162 = vpop.f32.mrb[0].mxu0
    %3163 = vdwg.mxu0
    %v3164 = vsel %vm163, %v3161, -inf
    %3165 = vmax.xlane.f32.xlu0 %v3164
    %v3166 = vpop.xlane.xlu0 %3165
    %v3167 = vsub.f32 %v3161, %v3166
    %v3168 = vmul.f32 %v3167, 1.442695
    %v3169 = vpow.pop %v3168
    %v3170 = vsel %vm163, %v3169, 0.0
    %3171 = vadd.xlane.f32.xlu0 %v3170
    %v3172 = vpop.xlane.xlu0 %3171
    %v3173 = vrcp.pop %v3172
    %v3174 = vmul.f32 %v3169, %v3173
    %3175 = vrot.lane.b32.xlu0 %v2746, 56
    %v3176 = vpop.permute.xlu0 %3175
    %v3179 = vsel %vm163, %v3174, 0
    %3181 = vmatprep.subr.mxu0 0.0
    %3182 = vmatpush1.msra.mxu0 %v3176
    %3183 = vmatprep.subr.mxu0 0.0
    %3184 = vmatpush1.msra.mxu0 0.0
    %3185 = vmatprep.subr.mxu0 0.0
    %3186 = vmatpush1.msra.mxu0 0.0
    %3187 = vmatprep.subr.mxu0 0.0
    %3188 = vmatpush1.msra.mxu0 0.0
    %3189 = vmatprep.subr.mxu0 0.0
    %3190 = vmatpush1.msra.mxu0 0.0
    %3191 = vmatprep.subr.mxu0 0.0
    %3192 = vmatpush1.msra.mxu0 0.0
    %3193 = vmatprep.subr.mxu0 0.0
    %3194 = vmatpush1.msra.mxu0 0.0
    %3195 = vmatprep.subr.mxu0 0.0
    %3196 = vmatpush1.msra.mxu0 0.0
    %3197 = vmatprep.subr.mxu0 0.0
    %3198 = vmatpush1.msra.mxu0 0.0
    %3199 = vmatprep.subr.mxu0 0.0
    %3200 = vmatpush1.msra.mxu0 0.0
    %3201 = vmatprep.subr.mxu0 0.0
    %3202 = vmatpush1.msra.mxu0 0.0
    %3203 = vmatprep.subr.mxu0 0.0
    %3204 = vmatpush1.msra.mxu0 0.0
    %3205 = vmatprep.subr.mxu0 0.0
    %3206 = vmatpush1.msra.mxu0 0.0
    %3207 = vmatprep.subr.mxu0 0.0
    %3208 = vmatpush1.msra.mxu0 0.0
    %3209 = vmatprep.subr.mxu0 0.0
    %3210 = vmatpush1.msra.mxu0 0.0
    %3211 = vmatprep.subr.mxu0 0.0
    %3212 = vmatpush1.msra.mxu0 0.0
    %3213 = vmatprep.subr.mxu0 0.0
    %3214 = vmatpush1.msra.mxu0 0.0
    %3215 = vmatprep.subr.mxu0 0.0
    %3216 = vmatpush1.msra.mxu0 0.0
    %3217 = vmatprep.subr.mxu0 0.0
    %3218 = vmatpush1.msra.mxu0 0.0
    %3219 = vmatprep.subr.mxu0 0.0
    %3220 = vmatpush1.msra.mxu0 0.0
    %3221 = vmatprep.subr.mxu0 0.0
    %3222 = vmatpush1.msra.mxu0 0.0
    %3223 = vmatprep.subr.mxu0 0.0
    %3224 = vmatpush1.msra.mxu0 0.0
    %3225 = vmatprep.subr.mxu0 0.0
    %3226 = vmatpush1.msra.mxu0 0.0
    %3227 = vmatprep.subr.mxu0 0.0
    %3228 = vmatpush1.msra.mxu0 0.0
    %3229 = vmatprep.subr.mxu0 0.0
    %3230 = vmatpush1.msra.mxu0 0.0
    %3231 = vmatprep.subr.mxu0 0.0
    %3232 = vmatpush1.msra.mxu0 0.0
    %3233 = vmatprep.subr.mxu0 0.0
    %3234 = vmatpush1.msra.mxu0 0.0
    %3235 = vmatprep.subr.mxu0 0.0
    %3236 = vmatpush1.msra.mxu0 0.0
    %3237 = vmatprep.subr.mxu0 0.0
    %3238 = vmatpush1.msra.mxu0 0.0
    %3239 = vmatprep.subr.mxu0 0.0
    %3240 = vmatpush1.msra.mxu0 0.0
    %3241 = vmatprep.subr.mxu0 0.0
    %3242 = vmatpush1.msra.mxu0 0.0
    %3243 = vmatprep.subr.mxu0 0.0
    %3244 = vmatpush1.msra.mxu0 0.0
    %3245 = vmatprep.mubr.f32.mxu0 0.0
    %3246 = vmatmul.mubr.f32.gmra.mrb[0].mxu0 %v3179
    %v3247 = vpop.f32.mrb[0].mxu0
    %v3248 = vadd.f32 0.0, %v3247
    %v3249 = vpop.f32.mrb[0].mxu0
    %3250 = vdwg.mxu0
    %3251 = vrot.lane.b32.xlu0 %v2755, 120
    %v3252 = vpop.permute.xlu0 %3251
    %3253 = vrot.lane.b32.xlu0 %v2751, 88
    %v3254 = vpop.permute.xlu0 %3253
    %v3255 = vsel %vm163, %v3252, 0
    %v3257 = vsel %vm163, %v3254, 0
    %3259 = vmatprep.subr.mxu0 0.0
    %3260 = vmatpush1.xpose.msra.mxu0 %v3257
    %3261 = vmatprep.subr.mxu0 0.0
    %3262 = vmatpush1.xpose.msra.mxu0 0.0
    %3263 = vmatprep.subr.mxu0 0.0
    %3264 = vmatpush1.xpose.msra.mxu0 0.0
    %3265 = vmatprep.subr.mxu0 0.0
    %3266 = vmatpush1.xpose.msra.mxu0 0.0
    %3267 = vmatprep.subr.mxu0 0.0
    %3268 = vmatpush1.xpose.msra.mxu0 0.0
    %3269 = vmatprep.subr.mxu0 0.0
    %3270 = vmatpush1.xpose.msra.mxu0 0.0
    %3271 = vmatprep.subr.mxu0 0.0
    %3272 = vmatpush1.xpose.msra.mxu0 0.0
    %3273 = vmatprep.subr.mxu0 0.0
    %3274 = vmatpush1.xpose.msra.mxu0 0.0
    %3275 = vmatprep.subr.mxu0 0.0
    %3276 = vmatpush1.xpose.msra.mxu0 0.0
    %3277 = vmatprep.subr.mxu0 0.0
    %3278 = vmatpush1.xpose.msra.mxu0 0.0
    %3279 = vmatprep.subr.mxu0 0.0
    %3280 = vmatpush1.xpose.msra.mxu0 0.0
    %3281 = vmatprep.subr.mxu0 0.0
    %3282 = vmatpush1.xpose.msra.mxu0 0.0
    %3283 = vmatprep.subr.mxu0 0.0
    %3284 = vmatpush1.xpose.msra.mxu0 0.0
    %3285 = vmatprep.subr.mxu0 0.0
    %3286 = vmatpush1.xpose.msra.mxu0 0.0
    %3287 = vmatprep.subr.mxu0 0.0
    %3288 = vmatpush1.xpose.msra.mxu0 0.0
    %3289 = vmatprep.subr.mxu0 0.0
    %3290 = vmatpush1.xpose.msra.mxu0 0.0
    %3291 = vmatprep.subr.mxu0 0.0
    %3292 = vmatpush1.xpose.msra.mxu0 0.0
    %3293 = vmatprep.subr.mxu0 0.0
    %3294 = vmatpush1.xpose.msra.mxu0 0.0
    %3295 = vmatprep.subr.mxu0 0.0
    %3296 = vmatpush1.xpose.msra.mxu0 0.0
    %3297 = vmatprep.subr.mxu0 0.0
    %3298 = vmatpush1.xpose.msra.mxu0 0.0
    %3299 = vmatprep.subr.mxu0 0.0
    %3300 = vmatpush1.xpose.msra.mxu0 0.0
    %3301 = vmatprep.subr.mxu0 0.0
    %3302 = vmatpush1.xpose.msra.mxu0 0.0
    %3303 = vmatprep.subr.mxu0 0.0
    %3304 = vmatpush1.xpose.msra.mxu0 0.0
    %3305 = vmatprep.subr.mxu0 0.0
    %3306 = vmatpush1.xpose.msra.mxu0 0.0
    %3307 = vmatprep.subr.mxu0 0.0
    %3308 = vmatpush1.xpose.msra.mxu0 0.0
    %3309 = vmatprep.subr.mxu0 0.0
    %3310 = vmatpush1.xpose.msra.mxu0 0.0
    %3311 = vmatprep.subr.mxu0 0.0
    %3312 = vmatpush1.xpose.msra.mxu0 0.0
    %3313 = vmatprep.subr.mxu0 0.0
    %3314 = vmatpush1.xpose.msra.mxu0 0.0
    %3315 = vmatprep.subr.mxu0 0.0
    %3316 = vmatpush1.xpose.msra.mxu0 0.0
    %3317 = vmatprep.subr.mxu0 0.0
    %3318 = vmatpush1.xpose.msra.mxu0 0.0
    %3319 = vmatprep.subr.mxu0 0.0
    %3320 = vmatpush1.xpose.msra.mxu0 0.0
    %3321 = vmatprep.subr.mxu0 0.0
    %3322 = vmatpush1.xpose.msra.mxu0 0.0
    %3323 = vmatprep.mubr.f32.mxu0 0.0
    %3324 = vmatmul.mubr.f32.gmra.mrb[0].mxu0 %v3255
    %v3325 = vpop.f32.mrb[0].mxu0
    %v3326 = vadd.f32 0.0, %v3325
    %v3327 = vpop.f32.mrb[0].mxu0
    %3328 = vdwg.mxu0
    %v3329 = vsel %vm163, %v3326, -inf
    %3330 = vmax.xlane.f32.xlu0 %v3329
    %v3331 = vpop.xlane.xlu0 %3330
    %v3332 = vsub.f32 %v3326, %v3331
    %v3333 = vmul.f32 %v3332, 1.442695
    %v3334 = vpow.pop %v3333
    %v3335 = vsel %vm163, %v3334, 0.0
    %3336 = vadd.xlane.f32.xlu0 %v3335
    %v3337 = vpop.xlane.xlu0 %3336
    %v3338 = vrcp.pop %v3337
    %v3339 = vmul.f32 %v3334, %v3338
    %3340 = vrot.lane.b32.xlu0 %v2751, 56
    %v3341 = vpop.permute.xlu0 %3340
    %v3344 = vsel %vm163, %v3339, 0
    %3346 = vmatprep.subr.mxu0 0.0
    %3347 = vmatpush1.msra.mxu0 %v3341
    %3348 = vmatprep.subr.mxu0 0.0
    %3349 = vmatpush1.msra.mxu0 0.0
    %3350 = vmatprep.subr.mxu0 0.0
    %3351 = vmatpush1.msra.mxu0 0.0
    %3352 = vmatprep.subr.mxu0 0.0
    %3353 = vmatpush1.msra.mxu0 0.0
    %3354 = vmatprep.subr.mxu0 0.0
    %3355 = vmatpush1.msra.mxu0 0.0
    %3356 = vmatprep.subr.mxu0 0.0
    %3357 = vmatpush1.msra.mxu0 0.0
    %3358 = vmatprep.subr.mxu0 0.0
    %3359 = vmatpush1.msra.mxu0 0.0
    %3360 = vmatprep.subr.mxu0 0.0
    %3361 = vmatpush1.msra.mxu0 0.0
    %3362 = vmatprep.subr.mxu0 0.0
    %3363 = vmatpush1.msra.mxu0 0.0
    %3364 = vmatprep.subr.mxu0 0.0
    %3365 = vmatpush1.msra.mxu0 0.0
    %3366 = vmatprep.subr.mxu0 0.0
    %3367 = vmatpush1.msra.mxu0 0.0
    %3368 = vmatprep.subr.mxu0 0.0
    %3369 = vmatpush1.msra.mxu0 0.0
    %3370 = vmatprep.subr.mxu0 0.0
    %3371 = vmatpush1.msra.mxu0 0.0
    %3372 = vmatprep.subr.mxu0 0.0
    %3373 = vmatpush1.msra.mxu0 0.0
    %3374 = vmatprep.subr.mxu0 0.0
    %3375 = vmatpush1.msra.mxu0 0.0
    %3376 = vmatprep.subr.mxu0 0.0
    %3377 = vmatpush1.msra.mxu0 0.0
    %3378 = vmatprep.subr.mxu0 0.0
    %3379 = vmatpush1.msra.mxu0 0.0
    %3380 = vmatprep.subr.mxu0 0.0
    %3381 = vmatpush1.msra.mxu0 0.0
    %3382 = vmatprep.subr.mxu0 0.0
    %3383 = vmatpush1.msra.mxu0 0.0
    %3384 = vmatprep.subr.mxu0 0.0
    %3385 = vmatpush1.msra.mxu0 0.0
    %3386 = vmatprep.subr.mxu0 0.0
    %3387 = vmatpush1.msra.mxu0 0.0
    %3388 = vmatprep.subr.mxu0 0.0
    %3389 = vmatpush1.msra.mxu0 0.0
    %3390 = vmatprep.subr.mxu0 0.0
    %3391 = vmatpush1.msra.mxu0 0.0
    %3392 = vmatprep.subr.mxu0 0.0
    %3393 = vmatpush1.msra.mxu0 0.0
    %3394 = vmatprep.subr.mxu0 0.0
    %3395 = vmatpush1.msra.mxu0 0.0
    %3396 = vmatprep.subr.mxu0 0.0
    %3397 = vmatpush1.msra.mxu0 0.0
    %3398 = vmatprep.subr.mxu0 0.0
    %3399 = vmatpush1.msra.mxu0 0.0
    %3400 = vmatprep.subr.mxu0 0.0
    %3401 = vmatpush1.msra.mxu0 0.0
    %3402 = vmatprep.subr.mxu0 0.0
    %3403 = vmatpush1.msra.mxu0 0.0
    %3404 = vmatprep.subr.mxu0 0.0
    %3405 = vmatpush1.msra.mxu0 0.0
    %3406 = vmatprep.subr.mxu0 0.0
    %3407 = vmatpush1.msra.mxu0 0.0
    %3408 = vmatprep.subr.mxu0 0.0
    %3409 = vmatpush1.msra.mxu0 0.0
    %3410 = vmatprep.mubr.f32.mxu0 0.0
    %3411 = vmatmul.mubr.f32.gmra.mrb[0].mxu0 %v3344
    %v3412 = vpop.f32.mrb[0].mxu0
    %v3413 = vadd.f32 0.0, %v3412
    %v3414 = vpop.f32.mrb[0].mxu0
    %3415 = vdwg.mxu0
    %v3417 = vsel %vm163, %v3248, 0
    %v3420 = vsel %vm163, %v3413, 0
    %3422 = vmatprep.subr.mxu0 0.0
    %3423 = vmatpush1.msra.mxu0 %v2646
    %3424 = vmatprep.subr.mxu0 0.0
    %3425 = vmatpush1.msra.mxu0 0.0
    %3426 = vmatprep.subr.mxu0 0.0
    %3427 = vmatpush1.msra.mxu0 0.0
    %3428 = vmatprep.subr.mxu0 0.0
    %3429 = vmatpush1.msra.mxu0 0.0
    %3430 = vmatprep.subr.mxu0 0.0
    %3431 = vmatpush1.msra.mxu0 0.0
    %3432 = vmatprep.subr.mxu0 0.0
    %3433 = vmatpush1.msra.mxu0 0.0
    %3434 = vmatprep.subr.mxu0 0.0
    %3435 = vmatpush1.msra.mxu0 0.0
    %3436 = vmatprep.subr.mxu0 0.0
    %3437 = vmatpush1.msra.mxu0 0.0
    %3438 = vmatprep.subr.mxu0 0.0
    %3439 = vmatpush1.msra.mxu0 0.0
    %3440 = vmatprep.subr.mxu0 0.0
    %3441 = vmatpush1.msra.mxu0 0.0
    %3442 = vmatprep.subr.mxu0 0.0
    %3443 = vmatpush1.msra.mxu0 0.0
    %3444 = vmatprep.subr.mxu0 0.0
    %3445 = vmatpush1.msra.mxu0 0.0
    %3446 = vmatprep.subr.mxu0 0.0
    %3447 = vmatpush1.msra.mxu0 0.0
    %3448 = vmatprep.subr.mxu0 0.0
    %3449 = vmatpush1.msra.mxu0 0.0
    %3450 = vmatprep.subr.mxu0 0.0
    %3451 = vmatpush1.msra.mxu0 0.0
    %3452 = vmatprep.subr.mxu0 0.0
    %3453 = vmatpush1.msra.mxu0 0.0
    %3454 = vmatprep.subr.mxu0 0.0
    %3455 = vmatpush1.msra.mxu0 0.0
    %3456 = vmatprep.subr.mxu0 0.0
    %3457 = vmatpush1.msra.mxu0 0.0
    %3458 = vmatprep.subr.mxu0 0.0
    %3459 = vmatpush1.msra.mxu0 0.0
    %3460 = vmatprep.subr.mxu0 0.0
    %3461 = vmatpush1.msra.mxu0 0.0
    %3462 = vmatprep.subr.mxu0 0.0
    %3463 = vmatpush1.msra.mxu0 0.0
    %3464 = vmatprep.subr.mxu0 0.0
    %3465 = vmatpush1.msra.mxu0 0.0
    %3466 = vmatprep.subr.mxu0 0.0
    %3467 = vmatpush1.msra.mxu0 0.0
    %3468 = vmatprep.subr.mxu0 0.0
    %3469 = vmatpush1.msra.mxu0 0.0
    %3470 = vmatprep.subr.mxu0 0.0
    %3471 = vmatpush1.msra.mxu0 0.0
    %3472 = vmatprep.subr.mxu0 0.0
    %3473 = vmatpush1.msra.mxu0 0.0
    %3474 = vmatprep.subr.mxu0 0.0
    %3475 = vmatpush1.msra.mxu0 0.0
    %3476 = vmatprep.subr.mxu0 0.0
    %3477 = vmatpush1.msra.mxu0 0.0
    %3478 = vmatprep.subr.mxu0 0.0
    %3479 = vmatpush1.msra.mxu0 0.0
    %3480 = vmatprep.subr.mxu0 0.0
    %3481 = vmatpush1.msra.mxu0 0.0
    %3482 = vmatprep.subr.mxu0 0.0
    %3483 = vmatpush1.msra.mxu0 0.0
    %3484 = vmatprep.subr.mxu0 0.0
    %3485 = vmatpush1.msra.mxu0 0.0
    %3486 = vmatprep.mubr.f32.mxu0 0.0
    %3487 = vmatmul.mubr.f32.gmra.mrb[0].mxu0 %v3417
    %v3488 = vpop.f32.mrb[0].mxu0
    %v3489 = vadd.f32 0.0, %v3488
    %v3490 = vpop.f32.mrb[0].mxu0
    %3491 = vmatprep.mubr.f32.mxu0 0.0
    %3492 = vmatmul.mubr.f32.gmra.mrb[0].mxu0 %v3420
    %v3493 = vpop.f32.mrb[0].mxu0
    %v3494 = vadd.f32 0.0, %v3493
    %v3495 = vpop.f32.mrb[0].mxu0
    %3496 = vdwg.mxu0
    %v3498 = vsel %vm163, %v2918, 0
    %v3501 = vsel %vm163, %v3083, 0
    %3503 = vmatprep.subr.mxu0 0.0
    %3504 = vmatpush1.msra.mxu0 %v2645
    %3505 = vmatprep.subr.mxu0 0.0
    %3506 = vmatpush1.msra.mxu0 0.0
    %3507 = vmatprep.subr.mxu0 0.0
    %3508 = vmatpush1.msra.mxu0 0.0
    %3509 = vmatprep.subr.mxu0 0.0
    %3510 = vmatpush1.msra.mxu0 0.0
    %3511 = vmatprep.subr.mxu0 0.0
    %3512 = vmatpush1.msra.mxu0 0.0
    %3513 = vmatprep.subr.mxu0 0.0
    %3514 = vmatpush1.msra.mxu0 0.0
    %3515 = vmatprep.subr.mxu0 0.0
    %3516 = vmatpush1.msra.mxu0 0.0
    %3517 = vmatprep.subr.mxu0 0.0
    %3518 = vmatpush1.msra.mxu0 0.0
    %3519 = vmatprep.subr.mxu0 0.0
    %3520 = vmatpush1.msra.mxu0 0.0
    %3521 = vmatprep.subr.mxu0 0.0
    %3522 = vmatpush1.msra.mxu0 0.0
    %3523 = vmatprep.subr.mxu0 0.0
    %3524 = vmatpush1.msra.mxu0 0.0
    %3525 = vmatprep.subr.mxu0 0.0
    %3526 = vmatpush1.msra.mxu0 0.0
    %3527 = vmatprep.subr.mxu0 0.0
    %3528 = vmatpush1.msra.mxu0 0.0
    %3529 = vmatprep.subr.mxu0 0.0
    %3530 = vmatpush1.msra.mxu0 0.0
    %3531 = vmatprep.subr.mxu0 0.0
    %3532 = vmatpush1.msra.mxu0 0.0
    %3533 = vmatprep.subr.mxu0 0.0
    %3534 = vmatpush1.msra.mxu0 0.0
    %3535 = vmatprep.subr.mxu0 0.0
    %3536 = vmatpush1.msra.mxu0 0.0
    %3537 = vmatprep.subr.mxu0 0.0
    %3538 = vmatpush1.msra.mxu0 0.0
    %3539 = vmatprep.subr.mxu0 0.0
    %3540 = vmatpush1.msra.mxu0 0.0
    %3541 = vmatprep.subr.mxu0 0.0
    %3542 = vmatpush1.msra.mxu0 0.0
    %3543 = vmatprep.subr.mxu0 0.0
    %3544 = vmatpush1.msra.mxu0 0.0
    %3545 = vmatprep.subr.mxu0 0.0
    %3546 = vmatpush1.msra.mxu0 0.0
    %3547 = vmatprep.subr.mxu0 0.0
    %3548 = vmatpush1.msra.mxu0 0.0
    %3549 = vmatprep.subr.mxu0 0.0
    %3550 = vmatpush1.msra.mxu0 0.0
    %3551 = vmatprep.subr.mxu0 0.0
    %3552 = vmatpush1.msra.mxu0 0.0
    %3553 = vmatprep.subr.mxu0 0.0
    %3554 = vmatpush1.msra.mxu0 0.0
    %3555 = vmatprep.subr.mxu0 0.0
    %3556 = vmatpush1.msra.mxu0 0.0
    %3557 = vmatprep.subr.mxu0 0.0
    %3558 = vmatpush1.msra.mxu0 0.0
    %3559 = vmatprep.subr.mxu0 0.0
    %3560 = vmatpush1.msra.mxu0 0.0
    %3561 = vmatprep.subr.mxu0 0.0
    %3562 = vmatpush1.msra.mxu0 0.0
    %3563 = vmatprep.subr.mxu0 0.0
    %3564 = vmatpush1.msra.mxu0 0.0
    %3565 = vmatprep.subr.mxu0 0.0
    %3566 = vmatpush1.msra.mxu0 0.0
    %3567 = vmatprep.mubr.f32.mxu0 0.0
    %3568 = vmatmul.mubr.f32.gmra.mrb[0].mxu0 %v3498
    %v3569 = vpop.f32.mrb[0].mxu0
    %v3570 = vadd.f32 %v3489, %v3569
    %v3571 = vpop.f32.mrb[0].mxu0
    %3572 = vmatprep.mubr.f32.mxu0 0.0
    %3573 = vmatmul.mubr.f32.gmra.mrb[0].mxu0 %v3501
    %v3574 = vpop.f32.mrb[0].mxu0
    %v3575 = vadd.f32 %v3494, %v3574
    %v3576 = vpop.f32.mrb[0].mxu0
    %3577 = vdwg.mxu0
    %3578 = vrot.lane.b32.xlu0 %v2754, 112
    %v3579 = vpop.permute.xlu0 %3578
    %3580 = vrot.lane.b32.xlu0 %v2746, 80
    %v3581 = vpop.permute.xlu0 %3580
    %v3582 = vsel %vm163, %v3579, 0
    %v3584 = vsel %vm163, %v3581, 0
    %3586 = vmatprep.subr.mxu0 0.0
    %3587 = vmatpush1.xpose.msra.mxu0 %v3584
    %3588 = vmatprep.subr.mxu0 0.0
    %3589 = vmatpush1.xpose.msra.mxu0 0.0
    %3590 = vmatprep.subr.mxu0 0.0
    %3591 = vmatpush1.xpose.msra.mxu0 0.0
    %3592 = vmatprep.subr.mxu0 0.0
    %3593 = vmatpush1.xpose.msra.mxu0 0.0
    %3594 = vmatprep.subr.mxu0 0.0
    %3595 = vmatpush1.xpose.msra.mxu0 0.0
    %3596 = vmatprep.subr.mxu0 0.0
    %3597 = vmatpush1.xpose.msra.mxu0 0.0
    %3598 = vmatprep.subr.mxu0 0.0
    %3599 = vmatpush1.xpose.msra.mxu0 0.0
    %3600 = vmatprep.subr.mxu0 0.0
    %3601 = vmatpush1.xpose.msra.mxu0 0.0
    %3602 = vmatprep.subr.mxu0 0.0
    %3603 = vmatpush1.xpose.msra.mxu0 0.0
    %3604 = vmatprep.subr.mxu0 0.0
    %3605 = vmatpush1.xpose.msra.mxu0 0.0
    %3606 = vmatprep.subr.mxu0 0.0
    %3607 = vmatpush1.xpose.msra.mxu0 0.0
    %3608 = vmatprep.subr.mxu0 0.0
    %3609 = vmatpush1.xpose.msra.mxu0 0.0
    %3610 = vmatprep.subr.mxu0 0.0
    %3611 = vmatpush1.xpose.msra.mxu0 0.0
    %3612 = vmatprep.subr.mxu0 0.0
    %3613 = vmatpush1.xpose.msra.mxu0 0.0
    %3614 = vmatprep.subr.mxu0 0.0
    %3615 = vmatpush1.xpose.msra.mxu0 0.0
    %3616 = vmatprep.subr.mxu0 0.0
    %3617 = vmatpush1.xpose.msra.mxu0 0.0
    %3618 = vmatprep.subr.mxu0 0.0
    %3619 = vmatpush1.xpose.msra.mxu0 0.0
    %3620 = vmatprep.subr.mxu0 0.0
    %3621 = vmatpush1.xpose.msra.mxu0 0.0
    %3622 = vmatprep.subr.mxu0 0.0
    %3623 = vmatpush1.xpose.msra.mxu0 0.0
    %3624 = vmatprep.subr.mxu0 0.0
    %3625 = vmatpush1.xpose.msra.mxu0 0.0
    %3626 = vmatprep.subr.mxu0 0.0
    %3627 = vmatpush1.xpose.msra.mxu0 0.0
    %3628 = vmatprep.subr.mxu0 0.0
    %3629 = vmatpush1.xpose.msra.mxu0 0.0
    %3630 = vmatprep.subr.mxu0 0.0
    %3631 = vmatpush1.xpose.msra.mxu0 0.0
    %3632 = vmatprep.subr.mxu0 0.0
    %3633 = vmatpush1.xpose.msra.mxu0 0.0
    %3634 = vmatprep.subr.mxu0 0.0
    %3635 = vmatpush1.xpose.msra.mxu0 0.0
    %3636 = vmatprep.subr.mxu0 0.0
    %3637 = vmatpush1.xpose.msra.mxu0 0.0
    %3638 = vmatprep.subr.mxu0 0.0
    %3639 = vmatpush1.xpose.msra.mxu0 0.0
    %3640 = vmatprep.subr.mxu0 0.0
    %3641 = vmatpush1.xpose.msra.mxu0 0.0
    %3642 = vmatprep.subr.mxu0 0.0
    %3643 = vmatpush1.xpose.msra.mxu0 0.0
    %3644 = vmatprep.subr.mxu0 0.0
    %3645 = vmatpush1.xpose.msra.mxu0 0.0
    %3646 = vmatprep.subr.mxu0 0.0
    %3647 = vmatpush1.xpose.msra.mxu0 0.0
    %3648 = vmatprep.subr.mxu0 0.0
    %3649 = vmatpush1.xpose.msra.mxu0 0.0
    %3650 = vmatprep.mubr.f32.mxu0 0.0
    %3651 = vmatmul.mubr.f32.gmra.mrb[0].mxu0 %v3582
    %v3652 = vpop.f32.mrb[0].mxu0
    %v3653 = vadd.f32 0.0, %v3652
    %v3654 = vpop.f32.mrb[0].mxu0
    %3655 = vdwg.mxu0
    %v3656 = vsel %vm163, %v3653, -inf
    %3657 = vmax.xlane.f32.xlu0 %v3656
    %v3658 = vpop.xlane.xlu0 %3657
    %v3659 = vsub.f32 %v3653, %v3658
    %v3660 = vmul.f32 %v3659, 1.442695
    %v3661 = vpow.pop %v3660
    %v3662 = vsel %vm163, %v3661, 0.0
    %3663 = vadd.xlane.f32.xlu0 %v3662
    %v3664 = vpop.xlane.xlu0 %3663
    %v3665 = vrcp.pop %v3664
    %v3666 = vmul.f32 %v3661, %v3665
    %3667 = vrot.lane.b32.xlu0 %v2746, 48
    %v3668 = vpop.permute.xlu0 %3667
    %v3671 = vsel %vm163, %v3666, 0
    %3673 = vmatprep.subr.mxu0 0.0
    %3674 = vmatpush1.msra.mxu0 %v3668
    %3675 = vmatprep.subr.mxu0 0.0
    %3676 = vmatpush1.msra.mxu0 0.0
    %3677 = vmatprep.subr.mxu0 0.0
    %3678 = vmatpush1.msra.mxu0 0.0
    %3679 = vmatprep.subr.mxu0 0.0
    %3680 = vmatpush1.msra.mxu0 0.0
    %3681 = vmatprep.subr.mxu0 0.0
    %3682 = vmatpush1.msra.mxu0 0.0
    %3683 = vmatprep.subr.mxu0 0.0
    %3684 = vmatpush1.msra.mxu0 0.0
    %3685 = vmatprep.subr.mxu0 0.0
    %3686 = vmatpush1.msra.mxu0 0.0
    %3687 = vmatprep.subr.mxu0 0.0
    %3688 = vmatpush1.msra.mxu0 0.0
    %3689 = vmatprep.subr.mxu0 0.0
    %3690 = vmatpush1.msra.mxu0 0.0
    %3691 = vmatprep.subr.mxu0 0.0
    %3692 = vmatpush1.msra.mxu0 0.0
    %3693 = vmatprep.subr.mxu0 0.0
    %3694 = vmatpush1.msra.mxu0 0.0
    %3695 = vmatprep.subr.mxu0 0.0
    %3696 = vmatpush1.msra.mxu0 0.0
    %3697 = vmatprep.subr.mxu0 0.0
    %3698 = vmatpush1.msra.mxu0 0.0
    %3699 = vmatprep.subr.mxu0 0.0
    %3700 = vmatpush1.msra.mxu0 0.0
    %3701 = vmatprep.subr.mxu0 0.0
    %3702 = vmatpush1.msra.mxu0 0.0
    %3703 = vmatprep.subr.mxu0 0.0
    %3704 = vmatpush1.msra.mxu0 0.0
    %3705 = vmatprep.subr.mxu0 0.0
    %3706 = vmatpush1.msra.mxu0 0.0
    %3707 = vmatprep.subr.mxu0 0.0
    %3708 = vmatpush1.msra.mxu0 0.0
    %3709 = vmatprep.subr.mxu0 0.0
    %3710 = vmatpush1.msra.mxu0 0.0
    %3711 = vmatprep.subr.mxu0 0.0
    %3712 = vmatpush1.msra.mxu0 0.0
    %3713 = vmatprep.subr.mxu0 0.0
    %3714 = vmatpush1.msra.mxu0 0.0
    %3715 = vmatprep.subr.mxu0 0.0
    %3716 = vmatpush1.msra.mxu0 0.0
    %3717 = vmatprep.subr.mxu0 0.0
    %3718 = vmatpush1.msra.mxu0 0.0
    %3719 = vmatprep.subr.mxu0 0.0
    %3720 = vmatpush1.msra.mxu0 0.0
    %3721 = vmatprep.subr.mxu0 0.0
    %3722 = vmatpush1.msra.mxu0 0.0
    %3723 = vmatprep.subr.mxu0 0.0
    %3724 = vmatpush1.msra.mxu0 0.0
    %3725 = vmatprep.subr.mxu0 0.0
    %3726 = vmatpush1.msra.mxu0 0.0
    %3727 = vmatprep.subr.mxu0 0.0
    %3728 = vmatpush1.msra.mxu0 0.0
    %3729 = vmatprep.subr.mxu0 0.0
    %3730 = vmatpush1.msra.mxu0 0.0
    %3731 = vmatprep.subr.mxu0 0.0
    %3732 = vmatpush1.msra.mxu0 0.0
    %3733 = vmatprep.subr.mxu0 0.0
    %3734 = vmatpush1.msra.mxu0 0.0
    %3735 = vmatprep.subr.mxu0 0.0
    %3736 = vmatpush1.msra.mxu0 0.0
    %3737 = vmatprep.mubr.f32.mxu0 0.0
    %3738 = vmatmul.mubr.f32.gmra.mrb[0].mxu0 %v3671
    %v3739 = vpop.f32.mrb[0].mxu0
    %v3740 = vadd.f32 0.0, %v3739
    %v3741 = vpop.f32.mrb[0].mxu0
    %3742 = vdwg.mxu0
    %3743 = vrot.lane.b32.xlu0 %v2755, 112
    %v3744 = vpop.permute.xlu0 %3743
    %3745 = vrot.lane.b32.xlu0 %v2751, 80
    %v3746 = vpop.permute.xlu0 %3745
    %v3747 = vsel %vm163, %v3744, 0
    %v3749 = vsel %vm163, %v3746, 0
    %3751 = vmatprep.subr.mxu0 0.0
    %3752 = vmatpush1.xpose.msra.mxu0 %v3749
    %3753 = vmatprep.subr.mxu0 0.0
    %3754 = vmatpush1.xpose.msra.mxu0 0.0
    %3755 = vmatprep.subr.mxu0 0.0
    %3756 = vmatpush1.xpose.msra.mxu0 0.0
    %3757 = vmatprep.subr.mxu0 0.0
    %3758 = vmatpush1.xpose.msra.mxu0 0.0
    %3759 = vmatprep.subr.mxu0 0.0
    %3760 = vmatpush1.xpose.msra.mxu0 0.0
    %3761 = vmatprep.subr.mxu0 0.0
    %3762 = vmatpush1.xpose.msra.mxu0 0.0
    %3763 = vmatprep.subr.mxu0 0.0
    %3764 = vmatpush1.xpose.msra.mxu0 0.0
    %3765 = vmatprep.subr.mxu0 0.0
    %3766 = vmatpush1.xpose.msra.mxu0 0.0
    %3767 = vmatprep.subr.mxu0 0.0
    %3768 = vmatpush1.xpose.msra.mxu0 0.0
    %3769 = vmatprep.subr.mxu0 0.0
    %3770 = vmatpush1.xpose.msra.mxu0 0.0
    %3771 = vmatprep.subr.mxu0 0.0
    %3772 = vmatpush1.xpose.msra.mxu0 0.0
    %3773 = vmatprep.subr.mxu0 0.0
    %3774 = vmatpush1.xpose.msra.mxu0 0.0
    %3775 = vmatprep.subr.mxu0 0.0
    %3776 = vmatpush1.xpose.msra.mxu0 0.0
    %3777 = vmatprep.subr.mxu0 0.0
    %3778 = vmatpush1.xpose.msra.mxu0 0.0
    %3779 = vmatprep.subr.mxu0 0.0
    %3780 = vmatpush1.xpose.msra.mxu0 0.0
    %3781 = vmatprep.subr.mxu0 0.0
    %3782 = vmatpush1.xpose.msra.mxu0 0.0
    %3783 = vmatprep.subr.mxu0 0.0
    %3784 = vmatpush1.xpose.msra.mxu0 0.0
    %3785 = vmatprep.subr.mxu0 0.0
    %3786 = vmatpush1.xpose.msra.mxu0 0.0
    %3787 = vmatprep.subr.mxu0 0.0
    %3788 = vmatpush1.xpose.msra.mxu0 0.0
    %3789 = vmatprep.subr.mxu0 0.0
    %3790 = vmatpush1.xpose.msra.mxu0 0.0
    %3791 = vmatprep.subr.mxu0 0.0
    %3792 = vmatpush1.xpose.msra.mxu0 0.0
    %3793 = vmatprep.subr.mxu0 0.0
    %3794 = vmatpush1.xpose.msra.mxu0 0.0
    %3795 = vmatprep.subr.mxu0 0.0
    %3796 = vmatpush1.xpose.msra.mxu0 0.0
    %3797 = vmatprep.subr.mxu0 0.0
    %3798 = vmatpush1.xpose.msra.mxu0 0.0
    %3799 = vmatprep.subr.mxu0 0.0
    %3800 = vmatpush1.xpose.msra.mxu0 0.0
    %3801 = vmatprep.subr.mxu0 0.0
    %3802 = vmatpush1.xpose.msra.mxu0 0.0
    %3803 = vmatprep.subr.mxu0 0.0
    %3804 = vmatpush1.xpose.msra.mxu0 0.0
    %3805 = vmatprep.subr.mxu0 0.0
    %3806 = vmatpush1.xpose.msra.mxu0 0.0
    %3807 = vmatprep.subr.mxu0 0.0
    %3808 = vmatpush1.xpose.msra.mxu0 0.0
    %3809 = vmatprep.subr.mxu0 0.0
    %3810 = vmatpush1.xpose.msra.mxu0 0.0
    %3811 = vmatprep.subr.mxu0 0.0
    %3812 = vmatpush1.xpose.msra.mxu0 0.0
    %3813 = vmatprep.subr.mxu0 0.0
    %3814 = vmatpush1.xpose.msra.mxu0 0.0
    %3815 = vmatprep.mubr.f32.mxu0 0.0
    %3816 = vmatmul.mubr.f32.gmra.mrb[0].mxu0 %v3747
    %v3817 = vpop.f32.mrb[0].mxu0
    %v3818 = vadd.f32 0.0, %v3817
    %v3819 = vpop.f32.mrb[0].mxu0
    %3820 = vdwg.mxu0
    %v3821 = vsel %vm163, %v3818, -inf
    %3822 = vmax.xlane.f32.xlu0 %v3821
    %v3823 = vpop.xlane.xlu0 %3822
    %v3824 = vsub.f32 %v3818, %v3823
    %v3825 = vmul.f32 %v3824, 1.442695
    %v3826 = vpow.pop %v3825
    %v3827 = vsel %vm163, %v3826, 0.0
    %3828 = vadd.xlane.f32.xlu0 %v3827
    %v3829 = vpop.xlane.xlu0 %3828
    %v3830 = vrcp.pop %v3829
    %v3831 = vmul.f32 %v3826, %v3830
    %3832 = vrot.lane.b32.xlu0 %v2751, 48
    %v3833 = vpop.permute.xlu0 %3832
    %v3836 = vsel %vm163, %v3831, 0
    %3838 = vmatprep.subr.mxu0 0.0
    %3839 = vmatpush1.msra.mxu0 %v3833
    %3840 = vmatprep.subr.mxu0 0.0
    %3841 = vmatpush1.msra.mxu0 0.0
    %3842 = vmatprep.subr.mxu0 0.0
    %3843 = vmatpush1.msra.mxu0 0.0
    %3844 = vmatprep.subr.mxu0 0.0
    %3845 = vmatpush1.msra.mxu0 0.0
    %3846 = vmatprep.subr.mxu0 0.0
    %3847 = vmatpush1.msra.mxu0 0.0
    %3848 = vmatprep.subr.mxu0 0.0
    %3849 = vmatpush1.msra.mxu0 0.0
    %3850 = vmatprep.subr.mxu0 0.0
    %3851 = vmatpush1.msra.mxu0 0.0
    %3852 = vmatprep.subr.mxu0 0.0
    %3853 = vmatpush1.msra.mxu0 0.0
    %3854 = vmatprep.subr.mxu0 0.0
    %3855 = vmatpush1.msra.mxu0 0.0
    %3856 = vmatprep.subr.mxu0 0.0
    %3857 = vmatpush1.msra.mxu0 0.0
    %3858 = vmatprep.subr.mxu0 0.0
    %3859 = vmatpush1.msra.mxu0 0.0
    %3860 = vmatprep.subr.mxu0 0.0
    %3861 = vmatpush1.msra.mxu0 0.0
    %3862 = vmatprep.subr.mxu0 0.0
    %3863 = vmatpush1.msra.mxu0 0.0
    %3864 = vmatprep.subr.mxu0 0.0
    %3865 = vmatpush1.msra.mxu0 0.0
    %3866 = vmatprep.subr.mxu0 0.0
    %3867 = vmatpush1.msra.mxu0 0.0
    %3868 = vmatprep.subr.mxu0 0.0
    %3869 = vmatpush1.msra.mxu0 0.0
    %3870 = vmatprep.subr.mxu0 0.0
    %3871 = vmatpush1.msra.mxu0 0.0
    %3872 = vmatprep.subr.mxu0 0.0
    %3873 = vmatpush1.msra.mxu0 0.0
    %3874 = vmatprep.subr.mxu0 0.0
    %3875 = vmatpush1.msra.mxu0 0.0
    %3876 = vmatprep.subr.mxu0 0.0
    %3877 = vmatpush1.msra.mxu0 0.0
    %3878 = vmatprep.subr.mxu0 0.0
    %3879 = vmatpush1.msra.mxu0 0.0
    %3880 = vmatprep.subr.mxu0 0.0
    %3881 = vmatpush1.msra.mxu0 0.0
    %3882 = vmatprep.subr.mxu0 0.0
    %3883 = vmatpush1.msra.mxu0 0.0
    %3884 = vmatprep.subr.mxu0 0.0
    %3885 = vmatpush1.msra.mxu0 0.0
    %3886 = vmatprep.subr.mxu0 0.0
    %3887 = vmatpush1.msra.mxu0 0.0
    %3888 = vmatprep.subr.mxu0 0.0
    %3889 = vmatpush1.msra.mxu0 0.0
    %3890 = vmatprep.subr.mxu0 0.0
    %3891 = vmatpush1.msra.mxu0 0.0
    %3892 = vmatprep.subr.mxu0 0.0
    %3893 = vmatpush1.msra.mxu0 0.0
    %3894 = vmatprep.subr.mxu0 0.0
    %3895 = vmatpush1.msra.mxu0 0.0
    %3896 = vmatprep.subr.mxu0 0.0
    %3897 = vmatpush1.msra.mxu0 0.0
    %3898 = vmatprep.subr.mxu0 0.0
    %3899 = vmatpush1.msra.mxu0 0.0
    %3900 = vmatprep.subr.mxu0 0.0
    %3901 = vmatpush1.msra.mxu0 0.0
    %3902 = vmatprep.mubr.f32.mxu0 0.0
    %3903 = vmatmul.mubr.f32.gmra.mrb[0].mxu0 %v3836
    %v3904 = vpop.f32.mrb[0].mxu0
    %v3905 = vadd.f32 0.0, %v3904
    %v3906 = vpop.f32.mrb[0].mxu0
    %3907 = vdwg.mxu0
    %v3909 = vsel %vm163, %v3740, 0
    %v3912 = vsel %vm163, %v3905, 0
    %3914 = vmatprep.subr.mxu0 0.0
    %3915 = vmatpush1.msra.mxu0 %v2647
    %3916 = vmatprep.subr.mxu0 0.0
    %3917 = vmatpush1.msra.mxu0 0.0
    %3918 = vmatprep.subr.mxu0 0.0
    %3919 = vmatpush1.msra.mxu0 0.0
    %3920 = vmatprep.subr.mxu0 0.0
    %3921 = vmatpush1.msra.mxu0 0.0
    %3922 = vmatprep.subr.mxu0 0.0
    %3923 = vmatpush1.msra.mxu0 0.0
    %3924 = vmatprep.subr.mxu0 0.0
    %3925 = vmatpush1.msra.mxu0 0.0
    %3926 = vmatprep.subr.mxu0 0.0
    %3927 = vmatpush1.msra.mxu0 0.0
    %3928 = vmatprep.subr.mxu0 0.0
    %3929 = vmatpush1.msra.mxu0 0.0
    %3930 = vmatprep.subr.mxu0 0.0
    %3931 = vmatpush1.msra.mxu0 0.0
    %3932 = vmatprep.subr.mxu0 0.0
    %3933 = vmatpush1.msra.mxu0 0.0
    %3934 = vmatprep.subr.mxu0 0.0
    %3935 = vmatpush1.msra.mxu0 0.0
    %3936 = vmatprep.subr.mxu0 0.0
    %3937 = vmatpush1.msra.mxu0 0.0
    %3938 = vmatprep.subr.mxu0 0.0
    %3939 = vmatpush1.msra.mxu0 0.0
    %3940 = vmatprep.subr.mxu0 0.0
    %3941 = vmatpush1.msra.mxu0 0.0
    %3942 = vmatprep.subr.mxu0 0.0
    %3943 = vmatpush1.msra.mxu0 0.0
    %3944 = vmatprep.subr.mxu0 0.0
    %3945 = vmatpush1.msra.mxu0 0.0
    %3946 = vmatprep.subr.mxu0 0.0
    %3947 = vmatpush1.msra.mxu0 0.0
    %3948 = vmatprep.subr.mxu0 0.0
    %3949 = vmatpush1.msra.mxu0 0.0
    %3950 = vmatprep.subr.mxu0 0.0
    %3951 = vmatpush1.msra.mxu0 0.0
    %3952 = vmatprep.subr.mxu0 0.0
    %3953 = vmatpush1.msra.mxu0 0.0
    %3954 = vmatprep.subr.mxu0 0.0
    %3955 = vmatpush1.msra.mxu0 0.0
    %3956 = vmatprep.subr.mxu0 0.0
    %3957 = vmatpush1.msra.mxu0 0.0
    %3958 = vmatprep.subr.mxu0 0.0
    %3959 = vmatpush1.msra.mxu0 0.0
    %3960 = vmatprep.subr.mxu0 0.0
    %3961 = vmatpush1.msra.mxu0 0.0
    %3962 = vmatprep.subr.mxu0 0.0
    %3963 = vmatpush1.msra.mxu0 0.0
    %3964 = vmatprep.subr.mxu0 0.0
    %3965 = vmatpush1.msra.mxu0 0.0
    %3966 = vmatprep.subr.mxu0 0.0
    %3967 = vmatpush1.msra.mxu0 0.0
    %3968 = vmatprep.subr.mxu0 0.0
    %3969 = vmatpush1.msra.mxu0 0.0
    %3970 = vmatprep.subr.mxu0 0.0
    %3971 = vmatpush1.msra.mxu0 0.0
    %3972 = vmatprep.subr.mxu0 0.0
    %3973 = vmatpush1.msra.mxu0 0.0
    %3974 = vmatprep.subr.mxu0 0.0
    %3975 = vmatpush1.msra.mxu0 0.0
    %3976 = vmatprep.subr.mxu0 0.0
    %3977 = vmatpush1.msra.mxu0 0.0
    %3978 = vmatprep.mubr.f32.mxu0 0.0
    %3979 = vmatmul.mubr.f32.gmra.mrb[0].mxu0 %v3909
    %v3980 = vpop.f32.mrb[0].mxu0
    %v3981 = vadd.f32 0.0, %v3980
    %v3982 = vpop.f32.mrb[0].mxu0
    %3983 = vmatprep.mubr.f32.mxu0 0.0
    %3984 = vmatmul.mubr.f32.gmra.mrb[0].mxu0 %v3912
    %v3985 = vpop.f32.mrb[0].mxu0
    %v3986 = vadd.f32 0.0, %v3985
    %v3987 = vpop.f32.mrb[0].mxu0
    %3988 = vdwg.mxu0
    %v3989 = vadd.f32 %v3570, %v3981
    %v3990 = vadd.f32 %v3575, %v3986
    %3991 = vrot.lane.b32.xlu0 %v2754, 104
    %v3992 = vpop.permute.xlu0 %3991
    %3993 = vrot.lane.b32.xlu0 %v2746, 72
    %v3994 = vpop.permute.xlu0 %3993
    %v3995 = vsel %vm163, %v3992, 0
    %v3997 = vsel %vm163, %v3994, 0
    %3999 = vmatprep.subr.mxu0 0.0
    %4000 = vmatpush1.xpose.msra.mxu0 %v3997
    %4001 = vmatprep.subr.mxu0 0.0
    %4002 = vmatpush1.xpose.msra.mxu0 0.0
    %4003 = vmatprep.subr.mxu0 0.0
    %4004 = vmatpush1.xpose.msra.mxu0 0.0
    %4005 = vmatprep.subr.mxu0 0.0
    %4006 = vmatpush1.xpose.msra.mxu0 0.0
    %4007 = vmatprep.subr.mxu0 0.0
    %4008 = vmatpush1.xpose.msra.mxu0 0.0
    %4009 = vmatprep.subr.mxu0 0.0
    %4010 = vmatpush1.xpose.msra.mxu0 0.0
    %4011 = vmatprep.subr.mxu0 0.0
    %4012 = vmatpush1.xpose.msra.mxu0 0.0
    %4013 = vmatprep.subr.mxu0 0.0
    %4014 = vmatpush1.xpose.msra.mxu0 0.0
    %4015 = vmatprep.subr.mxu0 0.0
    %4016 = vmatpush1.xpose.msra.mxu0 0.0
    %4017 = vmatprep.subr.mxu0 0.0
    %4018 = vmatpush1.xpose.msra.mxu0 0.0
    %4019 = vmatprep.subr.mxu0 0.0
    %4020 = vmatpush1.xpose.msra.mxu0 0.0
    %4021 = vmatprep.subr.mxu0 0.0
    %4022 = vmatpush1.xpose.msra.mxu0 0.0
    %4023 = vmatprep.subr.mxu0 0.0
    %4024 = vmatpush1.xpose.msra.mxu0 0.0
    %4025 = vmatprep.subr.mxu0 0.0
    %4026 = vmatpush1.xpose.msra.mxu0 0.0
    %4027 = vmatprep.subr.mxu0 0.0
    %4028 = vmatpush1.xpose.msra.mxu0 0.0
    %4029 = vmatprep.subr.mxu0 0.0
    %4030 = vmatpush1.xpose.msra.mxu0 0.0
    %4031 = vmatprep.subr.mxu0 0.0
    %4032 = vmatpush1.xpose.msra.mxu0 0.0
    %4033 = vmatprep.subr.mxu0 0.0
    %4034 = vmatpush1.xpose.msra.mxu0 0.0
    %4035 = vmatprep.subr.mxu0 0.0
    %4036 = vmatpush1.xpose.msra.mxu0 0.0
    %4037 = vmatprep.subr.mxu0 0.0
    %4038 = vmatpush1.xpose.msra.mxu0 0.0
    %4039 = vmatprep.subr.mxu0 0.0
    %4040 = vmatpush1.xpose.msra.mxu0 0.0
    %4041 = vmatprep.subr.mxu0 0.0
    %4042 = vmatpush1.xpose.msra.mxu0 0.0
    %4043 = vmatprep.subr.mxu0 0.0
    %4044 = vmatpush1.xpose.msra.mxu0 0.0
    %4045 = vmatprep.subr.mxu0 0.0
    %4046 = vmatpush1.xpose.msra.mxu0 0.0
    %4047 = vmatprep.subr.mxu0 0.0
    %4048 = vmatpush1.xpose.msra.mxu0 0.0
    %4049 = vmatprep.subr.mxu0 0.0
    %4050 = vmatpush1.xpose.msra.mxu0 0.0
    %4051 = vmatprep.subr.mxu0 0.0
    %4052 = vmatpush1.xpose.msra.mxu0 0.0
    %4053 = vmatprep.subr.mxu0 0.0
    %4054 = vmatpush1.xpose.msra.mxu0 0.0
    %4055 = vmatprep.subr.mxu0 0.0
    %4056 = vmatpush1.xpose.msra.mxu0 0.0
    %4057 = vmatprep.subr.mxu0 0.0
    %4058 = vmatpush1.xpose.msra.mxu0 0.0
    %4059 = vmatprep.subr.mxu0 0.0
    %4060 = vmatpush1.xpose.msra.mxu0 0.0
    %4061 = vmatprep.subr.mxu0 0.0
    %4062 = vmatpush1.xpose.msra.mxu0 0.0
    %4063 = vmatprep.mubr.f32.mxu0 0.0
    %4064 = vmatmul.mubr.f32.gmra.mrb[0].mxu0 %v3995
    %v4065 = vpop.f32.mrb[0].mxu0
    %v4066 = vadd.f32 0.0, %v4065
    %v4067 = vpop.f32.mrb[0].mxu0
    %4068 = vdwg.mxu0
    %v4069 = vsel %vm163, %v4066, -inf
    %4070 = vmax.xlane.f32.xlu0 %v4069
    %v4071 = vpop.xlane.xlu0 %4070
    %v4072 = vsub.f32 %v4066, %v4071
    %v4073 = vmul.f32 %v4072, 1.442695
    %v4074 = vpow.pop %v4073
    %v4075 = vsel %vm163, %v4074, 0.0
    %4076 = vadd.xlane.f32.xlu0 %v4075
    %v4077 = vpop.xlane.xlu0 %4076
    %v4078 = vrcp.pop %v4077
    %v4079 = vmul.f32 %v4074, %v4078
    %4080 = vrot.lane.b32.xlu0 %v2746, 40
    %v4081 = vpop.permute.xlu0 %4080
    %v4084 = vsel %vm163, %v4079, 0
    %4086 = vmatprep.subr.mxu0 0.0
    %4087 = vmatpush1.msra.mxu0 %v4081
    %4088 = vmatprep.subr.mxu0 0.0
    %4089 = vmatpush1.msra.mxu0 0.0
    %4090 = vmatprep.subr.mxu0 0.0
    %4091 = vmatpush1.msra.mxu0 0.0
    %4092 = vmatprep.subr.mxu0 0.0
    %4093 = vmatpush1.msra.mxu0 0.0
    %4094 = vmatprep.subr.mxu0 0.0
    %4095 = vmatpush1.msra.mxu0 0.0
    %4096 = vmatprep.subr.mxu0 0.0
    %4097 = vmatpush1.msra.mxu0 0.0
    %4098 = vmatprep.subr.mxu0 0.0
    %4099 = vmatpush1.msra.mxu0 0.0
    %4100 = vmatprep.subr.mxu0 0.0
    %4101 = vmatpush1.msra.mxu0 0.0
    %4102 = vmatprep.subr.mxu0 0.0
    %4103 = vmatpush1.msra.mxu0 0.0
    %4104 = vmatprep.subr.mxu0 0.0
    %4105 = vmatpush1.msra.mxu0 0.0
    %4106 = vmatprep.subr.mxu0 0.0
    %4107 = vmatpush1.msra.mxu0 0.0
    %4108 = vmatprep.subr.mxu0 0.0
    %4109 = vmatpush1.msra.mxu0 0.0
    %4110 = vmatprep.subr.mxu0 0.0
    %4111 = vmatpush1.msra.mxu0 0.0
    %4112 = vmatprep.subr.mxu0 0.0
    %4113 = vmatpush1.msra.mxu0 0.0
    %4114 = vmatprep.subr.mxu0 0.0
    %4115 = vmatpush1.msra.mxu0 0.0
    %4116 = vmatprep.subr.mxu0 0.0
    %4117 = vmatpush1.msra.mxu0 0.0
    %4118 = vmatprep.subr.mxu0 0.0
    %4119 = vmatpush1.msra.mxu0 0.0
    %4120 = vmatprep.subr.mxu0 0.0
    %4121 = vmatpush1.msra.mxu0 0.0
    %4122 = vmatprep.subr.mxu0 0.0
    %4123 = vmatpush1.msra.mxu0 0.0
    %4124 = vmatprep.subr.mxu0 0.0
    %4125 = vmatpush1.msra.mxu0 0.0
    %4126 = vmatprep.subr.mxu0 0.0
    %4127 = vmatpush1.msra.mxu0 0.0
    %4128 = vmatprep.subr.mxu0 0.0
    %4129 = vmatpush1.msra.mxu0 0.0
    %4130 = vmatprep.subr.mxu0 0.0
    %4131 = vmatpush1.msra.mxu0 0.0
    %4132 = vmatprep.subr.mxu0 0.0
    %4133 = vmatpush1.msra.mxu0 0.0
    %4134 = vmatprep.subr.mxu0 0.0
    %4135 = vmatpush1.msra.mxu0 0.0
    %4136 = vmatprep.subr.mxu0 0.0
    %4137 = vmatpush1.msra.mxu0 0.0
    %4138 = vmatprep.subr.mxu0 0.0
    %4139 = vmatpush1.msra.mxu0 0.0
    %4140 = vmatprep.subr.mxu0 0.0
    %4141 = vmatpush1.msra.mxu0 0.0
    %4142 = vmatprep.subr.mxu0 0.0
    %4143 = vmatpush1.msra.mxu0 0.0
    %4144 = vmatprep.subr.mxu0 0.0
    %4145 = vmatpush1.msra.mxu0 0.0
    %4146 = vmatprep.subr.mxu0 0.0
    %4147 = vmatpush1.msra.mxu0 0.0
    %4148 = vmatprep.subr.mxu0 0.0
    %4149 = vmatpush1.msra.mxu0 0.0
    %4150 = vmatprep.mubr.f32.mxu0 0.0
    %4151 = vmatmul.mubr.f32.gmra.mrb[0].mxu0 %v4084
    %v4152 = vpop.f32.mrb[0].mxu0
    %v4153 = vadd.f32 0.0, %v4152
    %v4154 = vpop.f32.mrb[0].mxu0
    %4155 = vdwg.mxu0
    %4156 = vrot.lane.b32.xlu0 %v2755, 104
    %v4157 = vpop.permute.xlu0 %4156
    %4158 = vrot.lane.b32.xlu0 %v2751, 72
    %v4159 = vpop.permute.xlu0 %4158
    %v4160 = vsel %vm163, %v4157, 0
    %v4162 = vsel %vm163, %v4159, 0
    %4164 = vmatprep.subr.mxu0 0.0
    %4165 = vmatpush1.xpose.msra.mxu0 %v4162
    %4166 = vmatprep.subr.mxu0 0.0
    %4167 = vmatpush1.xpose.msra.mxu0 0.0
    %4168 = vmatprep.subr.mxu0 0.0
    %4169 = vmatpush1.xpose.msra.mxu0 0.0
    %4170 = vmatprep.subr.mxu0 0.0
    %4171 = vmatpush1.xpose.msra.mxu0 0.0
    %4172 = vmatprep.subr.mxu0 0.0
    %4173 = vmatpush1.xpose.msra.mxu0 0.0
    %4174 = vmatprep.subr.mxu0 0.0
    %4175 = vmatpush1.xpose.msra.mxu0 0.0
    %4176 = vmatprep.subr.mxu0 0.0
    %4177 = vmatpush1.xpose.msra.mxu0 0.0
    %4178 = vmatprep.subr.mxu0 0.0
    %4179 = vmatpush1.xpose.msra.mxu0 0.0
    %4180 = vmatprep.subr.mxu0 0.0
    %4181 = vmatpush1.xpose.msra.mxu0 0.0
    %4182 = vmatprep.subr.mxu0 0.0
    %4183 = vmatpush1.xpose.msra.mxu0 0.0
    %4184 = vmatprep.subr.mxu0 0.0
    %4185 = vmatpush1.xpose.msra.mxu0 0.0
    %4186 = vmatprep.subr.mxu0 0.0
    %4187 = vmatpush1.xpose.msra.mxu0 0.0
    %4188 = vmatprep.subr.mxu0 0.0
    %4189 = vmatpush1.xpose.msra.mxu0 0.0
    %4190 = vmatprep.subr.mxu0 0.0
    %4191 = vmatpush1.xpose.msra.mxu0 0.0
    %4192 = vmatprep.subr.mxu0 0.0
    %4193 = vmatpush1.xpose.msra.mxu0 0.0
    %4194 = vmatprep.subr.mxu0 0.0
    %4195 = vmatpush1.xpose.msra.mxu0 0.0
    %4196 = vmatprep.subr.mxu0 0.0
    %4197 = vmatpush1.xpose.msra.mxu0 0.0
    %4198 = vmatprep.subr.mxu0 0.0
    %4199 = vmatpush1.xpose.msra.mxu0 0.0
    %4200 = vmatprep.subr.mxu0 0.0
    %4201 = vmatpush1.xpose.msra.mxu0 0.0
    %4202 = vmatprep.subr.mxu0 0.0
    %4203 = vmatpush1.xpose.msra.mxu0 0.0
    %4204 = vmatprep.subr.mxu0 0.0
    %4205 = vmatpush1.xpose.msra.mxu0 0.0
    %4206 = vmatprep.subr.mxu0 0.0
    %4207 = vmatpush1.xpose.msra.mxu0 0.0
    %4208 = vmatprep.subr.mxu0 0.0
    %4209 = vmatpush1.xpose.msra.mxu0 0.0
    %4210 = vmatprep.subr.mxu0 0.0
    %4211 = vmatpush1.xpose.msra.mxu0 0.0
    %4212 = vmatprep.subr.mxu0 0.0
    %4213 = vmatpush1.xpose.msra.mxu0 0.0
    %4214 = vmatprep.subr.mxu0 0.0
    %4215 = vmatpush1.xpose.msra.mxu0 0.0
    %4216 = vmatprep.subr.mxu0 0.0
    %4217 = vmatpush1.xpose.msra.mxu0 0.0
    %4218 = vmatprep.subr.mxu0 0.0
    %4219 = vmatpush1.xpose.msra.mxu0 0.0
    %4220 = vmatprep.subr.mxu0 0.0
    %4221 = vmatpush1.xpose.msra.mxu0 0.0
    %4222 = vmatprep.subr.mxu0 0.0
    %4223 = vmatpush1.xpose.msra.mxu0 0.0
    %4224 = vmatprep.subr.mxu0 0.0
    %4225 = vmatpush1.xpose.msra.mxu0 0.0
    %4226 = vmatprep.subr.mxu0 0.0
    %4227 = vmatpush1.xpose.msra.mxu0 0.0
    %4228 = vmatprep.mubr.f32.mxu0 0.0
    %4229 = vmatmul.mubr.f32.gmra.mrb[0].mxu0 %v4160
    %v4230 = vpop.f32.mrb[0].mxu0
    %v4231 = vadd.f32 0.0, %v4230
    %v4232 = vpop.f32.mrb[0].mxu0
    %4233 = vdwg.mxu0
    %v4234 = vsel %vm163, %v4231, -inf
    %4235 = vmax.xlane.f32.xlu0 %v4234
    %v4236 = vpop.xlane.xlu0 %4235
    %v4237 = vsub.f32 %v4231, %v4236
    %v4238 = vmul.f32 %v4237, 1.442695
    %v4239 = vpow.pop %v4238
    %v4240 = vsel %vm163, %v4239, 0.0
    %4241 = vadd.xlane.f32.xlu0 %v4240
    %v4242 = vpop.xlane.xlu0 %4241
    %v4243 = vrcp.pop %v4242
    %v4244 = vmul.f32 %v4239, %v4243
    %4245 = vrot.lane.b32.xlu0 %v2751, 40
    %v4246 = vpop.permute.xlu0 %4245
    %v4249 = vsel %vm163, %v4244, 0
    %4251 = vmatprep.subr.mxu0 0.0
    %4252 = vmatpush1.msra.mxu0 %v4246
    %4253 = vmatprep.subr.mxu0 0.0
    %4254 = vmatpush1.msra.mxu0 0.0
    %4255 = vmatprep.subr.mxu0 0.0
    %4256 = vmatpush1.msra.mxu0 0.0
    %4257 = vmatprep.subr.mxu0 0.0
    %4258 = vmatpush1.msra.mxu0 0.0
    %4259 = vmatprep.subr.mxu0 0.0
    %4260 = vmatpush1.msra.mxu0 0.0
    %4261 = vmatprep.subr.mxu0 0.0
    %4262 = vmatpush1.msra.mxu0 0.0
    %4263 = vmatprep.subr.mxu0 0.0
    %4264 = vmatpush1.msra.mxu0 0.0
    %4265 = vmatprep.subr.mxu0 0.0
    %4266 = vmatpush1.msra.mxu0 0.0
    %4267 = vmatprep.subr.mxu0 0.0
    %4268 = vmatpush1.msra.mxu0 0.0
    %4269 = vmatprep.subr.mxu0 0.0
    %4270 = vmatpush1.msra.mxu0 0.0
    %4271 = vmatprep.subr.mxu0 0.0
    %4272 = vmatpush1.msra.mxu0 0.0
    %4273 = vmatprep.subr.mxu0 0.0
    %4274 = vmatpush1.msra.mxu0 0.0
    %4275 = vmatprep.subr.mxu0 0.0
    %4276 = vmatpush1.msra.mxu0 0.0
    %4277 = vmatprep.subr.mxu0 0.0
    %4278 = vmatpush1.msra.mxu0 0.0
    %4279 = vmatprep.subr.mxu0 0.0
    %4280 = vmatpush1.msra.mxu0 0.0
    %4281 = vmatprep.subr.mxu0 0.0
    %4282 = vmatpush1.msra.mxu0 0.0
    %4283 = vmatprep.subr.mxu0 0.0
    %4284 = vmatpush1.msra.mxu0 0.0
    %4285 = vmatprep.subr.mxu0 0.0
    %4286 = vmatpush1.msra.mxu0 0.0
    %4287 = vmatprep.subr.mxu0 0.0
    %4288 = vmatpush1.msra.mxu0 0.0
    %4289 = vmatprep.subr.mxu0 0.0
    %4290 = vmatpush1.msra.mxu0 0.0
    %4291 = vmatprep.subr.mxu0 0.0
    %4292 = vmatpush1.msra.mxu0 0.0
    %4293 = vmatprep.subr.mxu0 0.0
    %4294 = vmatpush1.msra.mxu0 0.0
    %4295 = vmatprep.subr.mxu0 0.0
    %4296 = vmatpush1.msra.mxu0 0.0
    %4297 = vmatprep.subr.mxu0 0.0
    %4298 = vmatpush1.msra.mxu0 0.0
    %4299 = vmatprep.subr.mxu0 0.0
    %4300 = vmatpush1.msra.mxu0 0.0
    %4301 = vmatprep.subr.mxu0 0.0
    %4302 = vmatpush1.msra.mxu0 0.0
    %4303 = vmatprep.subr.mxu0 0.0
    %4304 = vmatpush1.msra.mxu0 0.0
    %4305 = vmatprep.subr.mxu0 0.0
    %4306 = vmatpush1.msra.mxu0 0.0
    %4307 = vmatprep.subr.mxu0 0.0
    %4308 = vmatpush1.msra.mxu0 0.0
    %4309 = vmatprep.subr.mxu0 0.0
    %4310 = vmatpush1.msra.mxu0 0.0
    %4311 = vmatprep.subr.mxu0 0.0
    %4312 = vmatpush1.msra.mxu0 0.0
    %4313 = vmatprep.subr.mxu0 0.0
    %4314 = vmatpush1.msra.mxu0 0.0
    %4315 = vmatprep.mubr.f32.mxu0 0.0
    %4316 = vmatmul.mubr.f32.gmra.mrb[0].mxu0 %v4249
    %v4317 = vpop.f32.mrb[0].mxu0
    %v4318 = vadd.f32 0.0, %v4317
    %v4319 = vpop.f32.mrb[0].mxu0
    %4320 = vdwg.mxu0
    %v4322 = vsel %vm163, %v4153, 0
    %v4325 = vsel %vm163, %v4318, 0
    %4327 = vmatprep.subr.mxu0 0.0
    %4328 = vmatpush1.msra.mxu0 %v2648
    %4329 = vmatprep.subr.mxu0 0.0
    %4330 = vmatpush1.msra.mxu0 0.0
    %4331 = vmatprep.subr.mxu0 0.0
    %4332 = vmatpush1.msra.mxu0 0.0
    %4333 = vmatprep.subr.mxu0 0.0
    %4334 = vmatpush1.msra.mxu0 0.0
    %4335 = vmatprep.subr.mxu0 0.0
    %4336 = vmatpush1.msra.mxu0 0.0
    %4337 = vmatprep.subr.mxu0 0.0
    %4338 = vmatpush1.msra.mxu0 0.0
    %4339 = vmatprep.subr.mxu0 0.0
    %4340 = vmatpush1.msra.mxu0 0.0
    %4341 = vmatprep.subr.mxu0 0.0
    %4342 = vmatpush1.msra.mxu0 0.0
    %4343 = vmatprep.subr.mxu0 0.0
    %4344 = vmatpush1.msra.mxu0 0.0
    %4345 = vmatprep.subr.mxu0 0.0
    %4346 = vmatpush1.msra.mxu0 0.0
    %4347 = vmatprep.subr.mxu0 0.0
    %4348 = vmatpush1.msra.mxu0 0.0
    %4349 = vmatprep.subr.mxu0 0.0
    %4350 = vmatpush1.msra.mxu0 0.0
    %4351 = vmatprep.subr.mxu0 0.0
    %4352 = vmatpush1.msra.mxu0 0.0
    %4353 = vmatprep.subr.mxu0 0.0
    %4354 = vmatpush1.msra.mxu0 0.0
    %4355 = vmatprep.subr.mxu0 0.0
    %4356 = vmatpush1.msra.mxu0 0.0
    %4357 = vmatprep.subr.mxu0 0.0
    %4358 = vmatpush1.msra.mxu0 0.0
    %4359 = vmatprep.subr.mxu0 0.0
    %4360 = vmatpush1.msra.mxu0 0.0
    %4361 = vmatprep.subr.mxu0 0.0
    %4362 = vmatpush1.msra.mxu0 0.0
    %4363 = vmatprep.subr.mxu0 0.0
    %4364 = vmatpush1.msra.mxu0 0.0
    %4365 = vmatprep.subr.mxu0 0.0
    %4366 = vmatpush1.msra.mxu0 0.0
    %4367 = vmatprep.subr.mxu0 0.0
    %4368 = vmatpush1.msra.mxu0 0.0
    %4369 = vmatprep.subr.mxu0 0.0
    %4370 = vmatpush1.msra.mxu0 0.0
    %4371 = vmatprep.subr.mxu0 0.0
    %4372 = vmatpush1.msra.mxu0 0.0
    %4373 = vmatprep.subr.mxu0 0.0
    %4374 = vmatpush1.msra.mxu0 0.0
    %4375 = vmatprep.subr.mxu0 0.0
    %4376 = vmatpush1.msra.mxu0 0.0
    %4377 = vmatprep.subr.mxu0 0.0
    %4378 = vmatpush1.msra.mxu0 0.0
    %4379 = vmatprep.subr.mxu0 0.0
    %4380 = vmatpush1.msra.mxu0 0.0
    %4381 = vmatprep.subr.mxu0 0.0
    %4382 = vmatpush1.msra.mxu0 0.0
    %4383 = vmatprep.subr.mxu0 0.0
    %4384 = vmatpush1.msra.mxu0 0.0
    %4385 = vmatprep.subr.mxu0 0.0
    %4386 = vmatpush1.msra.mxu0 0.0
    %4387 = vmatprep.subr.mxu0 0.0
    %4388 = vmatpush1.msra.mxu0 0.0
    %4389 = vmatprep.subr.mxu0 0.0
    %4390 = vmatpush1.msra.mxu0 0.0
    %4391 = vmatprep.mubr.f32.mxu0 0.0
    %4392 = vmatmul.mubr.f32.gmra.mrb[0].mxu0 %v4322
    %v4393 = vpop.f32.mrb[0].mxu0
    %v4394 = vadd.f32 0.0, %v4393
    %v4395 = vpop.f32.mrb[0].mxu0
    %4396 = vmatprep.mubr.f32.mxu0 0.0
    %4397 = vmatmul.mubr.f32.gmra.mrb[0].mxu0 %v4325
    %v4398 = vpop.f32.mrb[0].mxu0
    %v4399 = vadd.f32 0.0, %v4398
    %v4400 = vpop.f32.mrb[0].mxu0
    %4401 = vdwg.mxu0
    %v4402 = vadd.f32 %v3989, %v4394
    %v4403 = vadd.f32 %v3990, %v4399
    %v4404 = vlaneseq
    %v4405 = vshrl.u32 %v4404, 7
    %v4406 = vsub.s32 0, %v4405
    %v4407 = vrot.slane %v2666, %v4406
    %v4408 = vadd.f32 %v4402, %v4407
    %v4409 = vadd.f32 %v4403, %v4407
    %v4410 = vadd.f32 %v2635, %v4408
    %v4411 = vadd.f32 %v2636, %v4409
    %v4412 = vsel %vm525, %v4410, 0.0
    %4413 = vadd.xlane.f32.xlu0 %v4412
    %v4414 = vpop.xlane.xlu0 %4413
    %v4415 = vsel %vm525, %v4411, 0.0
    %4416 = vadd.xlane.f32.xlu0 %v4415
    %v4417 = vpop.xlane.xlu0 %4416
    %v4418 = vmul.f32 %v4414, %v2389
    %v4419 = vmul.f32 %v4417, %v2389
    %v4420 = vsub.f32 %v4410, %v4418
    %v4421 = vsub.f32 %v4411, %v4419
    %v4422 = vmul.f32 %v4420, %v4420
    %v4423 = vmul.f32 %v4421, %v4421
    %v4424 = vsel %vm525, %v4422, 0.0
    %4425 = vadd.xlane.f32.xlu0 %v4424
    %v4426 = vpop.xlane.xlu0 %4425
    %v4427 = vsel %vm525, %v4423, 0.0
    %4428 = vadd.xlane.f32.xlu0 %v4427
    %v4429 = vpop.xlane.xlu0 %4428
    %v4430 = vmul.f32 %v4426, %v2389
    %v4431 = vmul.f32 %v4429, %v2389
    %v4432 = vadd.f32 %v4430, 1e-05
    %v4433 = vadd.f32 %v4431, 1e-05
    %v4434 = vrsqrt.pop %v4432
    %v4435 = vrsqrt.pop %v4433
    %v4436 = vmul.f32 %v4420, %v4434
    %v4437 = vmul.f32 %v4421, %v4435
    %v4438 = vlaneseq
    %v4439 = vshrl.u32 %v4438, 7
    %v4440 = vsub.s32 1, %v4439
    %v4441 = vrot.slane %v2666, %v4440
    %v4442 = vmul.f32 %v4436, %v4441
    %v4443 = vmul.f32 %v4437, %v4441
    %v4444 = vlaneseq
    %v4445 = vshrl.u32 %v4444, 7
    %v4446 = vsub.s32 2, %v4445
    %v4447 = vrot.slane %v2666, %v4446
    %v4448 = vadd.f32 %v4442, %v4447
    %v4449 = vadd.f32 %v4443, %v4447
    %v4451 = vlaneseq
    %v4452 = vshrl.u32 %v4451, 7
    %v4453 = vsub.s32 0, %v4452
    %v4454 = vrot.slane %v2655, %v4453
    %v4457 = vsel %vm525, %v4448, 0
    %v4460 = vsel %vm525, %v4449, 0
    %4462 = vmatprep.subr.mxu0 0.0
    %4463 = vmatpush1.msra.mxu0 %v2650
    %4464 = vmatprep.subr.mxu0 0.0
    %4465 = vmatpush1.msra.mxu0 %v2651
    %4466 = vmatprep.subr.mxu0 0.0
    %4467 = vmatpush1.msra.mxu0 %v2652
    %4468 = vmatprep.subr.mxu0 0.0
    %4469 = vmatpush1.msra.mxu0 %v2653
    %4470 = vmatprep.subr.mxu0 0.0
    %4471 = vmatpush1.msra.mxu0 0.0
    %4472 = vmatprep.subr.mxu0 0.0
    %4473 = vmatpush1.msra.mxu0 0.0
    %4474 = vmatprep.subr.mxu0 0.0
    %4475 = vmatpush1.msra.mxu0 0.0
    %4476 = vmatprep.subr.mxu0 0.0
    %4477 = vmatpush1.msra.mxu0 0.0
    %4478 = vmatprep.subr.mxu0 0.0
    %4479 = vmatpush1.msra.mxu0 0.0
    %4480 = vmatprep.subr.mxu0 0.0
    %4481 = vmatpush1.msra.mxu0 0.0
    %4482 = vmatprep.subr.mxu0 0.0
    %4483 = vmatpush1.msra.mxu0 0.0
    %4484 = vmatprep.subr.mxu0 0.0
    %4485 = vmatpush1.msra.mxu0 0.0
    %4486 = vmatprep.subr.mxu0 0.0
    %4487 = vmatpush1.msra.mxu0 0.0
    %4488 = vmatprep.subr.mxu0 0.0
    %4489 = vmatpush1.msra.mxu0 0.0
    %4490 = vmatprep.subr.mxu0 0.0
    %4491 = vmatpush1.msra.mxu0 0.0
    %4492 = vmatprep.subr.mxu0 0.0
    %4493 = vmatpush1.msra.mxu0 0.0
    %4494 = vmatprep.subr.mxu0 0.0
    %4495 = vmatpush1.msra.mxu0 0.0
    %4496 = vmatprep.subr.mxu0 0.0
    %4497 = vmatpush1.msra.mxu0 0.0
    %4498 = vmatprep.subr.mxu0 0.0
    %4499 = vmatpush1.msra.mxu0 0.0
    %4500 = vmatprep.subr.mxu0 0.0
    %4501 = vmatpush1.msra.mxu0 0.0
    %4502 = vmatprep.subr.mxu0 0.0
    %4503 = vmatpush1.msra.mxu0 0.0
    %4504 = vmatprep.subr.mxu0 0.0
    %4505 = vmatpush1.msra.mxu0 0.0
    %4506 = vmatprep.subr.mxu0 0.0
    %4507 = vmatpush1.msra.mxu0 0.0
    %4508 = vmatprep.subr.mxu0 0.0
    %4509 = vmatpush1.msra.mxu0 0.0
    %4510 = vmatprep.subr.mxu0 0.0
    %4511 = vmatpush1.msra.mxu0 0.0
    %4512 = vmatprep.subr.mxu0 0.0
    %4513 = vmatpush1.msra.mxu0 0.0
    %4514 = vmatprep.subr.mxu0 0.0
    %4515 = vmatpush1.msra.mxu0 0.0
    %4516 = vmatprep.subr.mxu0 0.0
    %4517 = vmatpush1.msra.mxu0 0.0
    %4518 = vmatprep.subr.mxu0 0.0
    %4519 = vmatpush1.msra.mxu0 0.0
    %4520 = vmatprep.subr.mxu0 0.0
    %4521 = vmatpush1.msra.mxu0 0.0
    %4522 = vmatprep.subr.mxu0 0.0
    %4523 = vmatpush1.msra.mxu0 0.0
    %4524 = vmatprep.subr.mxu0 0.0
    %4525 = vmatpush1.msra.mxu0 0.0
    %4526 = vmatprep.mubr.f32.mxu0 0.0
    %4527 = vmatmul.mubr.f32.gmra.mrb[0].mxu0 %v4457
    %v4528 = vpop.f32.mrb[0].mxu0
    %v4529 = vadd.f32 %v4454, %v4528
    %v4530 = vpop.f32.mrb[0].mxu0
    %4531 = vmatprep.mubr.f32.mxu0 0.0
    %4532 = vmatmul.mubr.f32.gmra.mrb[0].mxu0 %v4460
    %v4533 = vpop.f32.mrb[0].mxu0
    %v4534 = vadd.f32 %v4454, %v4533
    %v4535 = vpop.f32.mrb[0].mxu0
    %4536 = vdwg.mxu0
    %v4537 = vmax.f32 %v4529, 0.0
    %v4538 = vmax.f32 %v4534, 0.0
    %v4539 = vlaneseq
    %v4540 = vshrl.u32 %v4539, 7
    %v4541 = vsub.s32 3, %v4540
    %v4542 = vrot.slane %v2666, %v4541
    %v4544 = vsel %vm2515, %v4537, 0
    %v4547 = vsel %vm2515, %v4538, 0
    %4549 = vmatprep.subr.mxu0 0.0
    %4550 = vmatpush1.msra.mxu0 %v2657
    %4551 = vmatprep.subr.mxu0 0.0
    %4552 = vmatpush1.msra.mxu0 %v2658
    %4553 = vmatprep.subr.mxu0 0.0
    %4554 = vmatpush1.msra.mxu0 %v2659
    %4555 = vmatprep.subr.mxu0 0.0
    %4556 = vmatpush1.msra.mxu0 %v2660
    %4557 = vmatprep.subr.mxu0 0.0
    %4558 = vmatpush1.msra.mxu0 %v2661
    %4559 = vmatprep.subr.mxu0 0.0
    %4560 = vmatpush1.msra.mxu0 %v2662
    %4561 = vmatprep.subr.mxu0 0.0
    %4562 = vmatpush1.msra.mxu0 %v2663
    %4563 = vmatprep.subr.mxu0 0.0
    %4564 = vmatpush1.msra.mxu0 %v2664
    %4565 = vmatprep.subr.mxu0 0.0
    %4566 = vmatpush1.msra.mxu0 0.0
    %4567 = vmatprep.subr.mxu0 0.0
    %4568 = vmatpush1.msra.mxu0 0.0
    %4569 = vmatprep.subr.mxu0 0.0
    %4570 = vmatpush1.msra.mxu0 0.0
    %4571 = vmatprep.subr.mxu0 0.0
    %4572 = vmatpush1.msra.mxu0 0.0
    %4573 = vmatprep.subr.mxu0 0.0
    %4574 = vmatpush1.msra.mxu0 0.0
    %4575 = vmatprep.subr.mxu0 0.0
    %4576 = vmatpush1.msra.mxu0 0.0
    %4577 = vmatprep.subr.mxu0 0.0
    %4578 = vmatpush1.msra.mxu0 0.0
    %4579 = vmatprep.subr.mxu0 0.0
    %4580 = vmatpush1.msra.mxu0 0.0
    %4581 = vmatprep.subr.mxu0 0.0
    %4582 = vmatpush1.msra.mxu0 0.0
    %4583 = vmatprep.subr.mxu0 0.0
    %4584 = vmatpush1.msra.mxu0 0.0
    %4585 = vmatprep.subr.mxu0 0.0
    %4586 = vmatpush1.msra.mxu0 0.0
    %4587 = vmatprep.subr.mxu0 0.0
    %4588 = vmatpush1.msra.mxu0 0.0
    %4589 = vmatprep.subr.mxu0 0.0
    %4590 = vmatpush1.msra.mxu0 0.0
    %4591 = vmatprep.subr.mxu0 0.0
    %4592 = vmatpush1.msra.mxu0 0.0
    %4593 = vmatprep.subr.mxu0 0.0
    %4594 = vmatpush1.msra.mxu0 0.0
    %4595 = vmatprep.subr.mxu0 0.0
    %4596 = vmatpush1.msra.mxu0 0.0
    %4597 = vmatprep.subr.mxu0 0.0
    %4598 = vmatpush1.msra.mxu0 0.0
    %4599 = vmatprep.subr.mxu0 0.0
    %4600 = vmatpush1.msra.mxu0 0.0
    %4601 = vmatprep.subr.mxu0 0.0
    %4602 = vmatpush1.msra.mxu0 0.0
    %4603 = vmatprep.subr.mxu0 0.0
    %4604 = vmatpush1.msra.mxu0 0.0
    %4605 = vmatprep.subr.mxu0 0.0
    %4606 = vmatpush1.msra.mxu0 0.0
    %4607 = vmatprep.subr.mxu0 0.0
    %4608 = vmatpush1.msra.mxu0 0.0
    %4609 = vmatprep.subr.mxu0 0.0
    %4610 = vmatpush1.msra.mxu0 0.0
    %4611 = vmatprep.subr.mxu0 0.0
    %4612 = vmatpush1.msra.mxu0 0.0
    %4613 = vmatprep.mubr.f32.mxu0 0.0
    %4614 = vmatmul.mubr.f32.gmra.mrb[0].mxu0 %v4544
    %v4615 = vpop.f32.mrb[0].mxu0
    %v4616 = vadd.f32 %v4542, %v4615
    %v4617 = vpop.f32.mrb[0].mxu0
    %4618 = vmatprep.mubr.f32.mxu0 0.0
    %4619 = vmatmul.mubr.f32.gmra.mrb[0].mxu0 %v4547
    %v4620 = vpop.f32.mrb[0].mxu0
    %v4621 = vadd.f32 %v4542, %v4620
    %v4622 = vpop.f32.mrb[0].mxu0
    %4623 = vdwg.mxu0
    %v4624 = vadd.f32 %v4448, %v4616
    %v4625 = vadd.f32 %v4449, %v4621
    %v4626 = vsel %vm525, %v4624, 0.0
    %4627 = vadd.xlane.f32.xlu0 %v4626
    %v4628 = vpop.xlane.xlu0 %4627
    %v4629 = vsel %vm525, %v4625, 0.0
    %4630 = vadd.xlane.f32.xlu0 %v4629
    %v4631 = vpop.xlane.xlu0 %4630
    %v4632 = vmul.f32 %v4628, %v2389
    %v4633 = vmul.f32 %v4631, %v2389
    %v4634 = vsub.f32 %v4624, %v4632
    %v4635 = vsub.f32 %v4625, %v4633
    %v4636 = vmul.f32 %v4634, %v4634
    %v4637 = vmul.f32 %v4635, %v4635
    %v4638 = vsel %vm525, %v4636, 0.0
    %4639 = vadd.xlane.f32.xlu0 %v4638
    %v4640 = vpop.xlane.xlu0 %4639
    %v4641 = vsel %vm525, %v4637, 0.0
    %4642 = vadd.xlane.f32.xlu0 %v4641
    %v4643 = vpop.xlane.xlu0 %4642
    %v4644 = vmul.f32 %v4640, %v2389
    %v4645 = vmul.f32 %v4643, %v2389
    %v4646 = vadd.f32 %v4644, 1e-05
    %v4647 = vadd.f32 %v4645, 1e-05
    %v4648 = vrsqrt.pop %v4646
    %v4649 = vrsqrt.pop %v4647
    %v4650 = vmul.f32 %v4634, %v4648
    %v4651 = vmul.f32 %v4635, %v4649
    %v4652 = vlaneseq
    %v4653 = vshrl.u32 %v4652, 7
    %v4654 = vsub.s32 4, %v4653
    %v4655 = vrot.slane %v2666, %v4654
    %v4656 = vmul.f32 %v4650, %v4655
    %v4657 = vmul.f32 %v4651, %v4655
    %v4658 = vlaneseq
    %v4659 = vshrl.u32 %v4658, 7
    %v4660 = vsub.s32 5, %v4659
    %v4661 = vrot.slane %v2666, %v4660
    %v4662 = vadd.f32 %v4656, %v4661
    %v4663 = vadd.f32 %v4657, %v4661
    %v4664 = vld [vmem:[%s15] sm:$0x1]
    %v4665 = vld [vmem:[%s15 + $0x1] sm:$0x1]
    %v4666 = vsel %vm525, %v4662, 0.0
    %4667 = vadd.xlane.f32.xlu0 %v4666
    %v4668 = vpop.xlane.xlu0 %4667
    %v4669 = vsel %vm525, %v4663, 0.0
    %4670 = vadd.xlane.f32.xlu0 %v4669
    %v4671 = vpop.xlane.xlu0 %4670
    %v4672 = vmul.f32 %v4668, %v2389
    %v4673 = vmul.f32 %v4671, %v2389
    %v4674 = vsub.f32 %v4662, %v4672
    %v4675 = vsub.f32 %v4663, %v4673
    %v4676 = vmul.f32 %v4674, %v4674
    %v4677 = vmul.f32 %v4675, %v4675
    %v4678 = vsel %vm525, %v4676, 0.0
    %4679 = vadd.xlane.f32.xlu0 %v4678
    %v4680 = vpop.xlane.xlu0 %4679
    %v4681 = vsel %vm525, %v4677, 0.0
    %4682 = vadd.xlane.f32.xlu0 %v4681
    %v4683 = vpop.xlane.xlu0 %4682
    %v4684 = vmul.f32 %v4680, %v2389
    %v4685 = vmul.f32 %v4683, %v2389
    %v4686 = vadd.f32 %v4684, 1e-05
    %v4687 = vadd.f32 %v4685, 1e-05
    %v4688 = vrsqrt.pop %v4686
    %v4689 = vrsqrt.pop %v4687
    %v4690 = vmul.f32 %v4674, %v4688
    %v4691 = vmul.f32 %v4675, %v4689
    %v4692 = vlaneseq
    %v4693 = vshrl.u32 %v4692, 7
    %v4694 = vsub.s32 0, %v4693
    %v4695 = vrot.slane %v4664, %v4694
    %v4696 = vmul.f32 %v4690, %v4695
    %v4697 = vmul.f32 %v4691, %v4695
    %v4698 = vlaneseq
    %v4699 = vshrl.u32 %v4698, 7
    %v4700 = vsub.s32 0, %v4699
    %v4701 = vrot.slane %v4665, %v4700
    %v4702 = vadd.f32 %v4696, %v4701
    %v4703 = vadd.f32 %v4697, %v4701
    %v4704 = vld [vmem:[%s16] sm:$0xff]
    %v4705 = vld [vmem:[%s17] sm:$0xff]
    %4707 = vset.pattern.permute.xlu0 0
    %4708 = vperm.xlu0 %4707, %v4705
    %v4709 = vpop.permute.xlu0 %4708
    %v4712 = vsel %vm525, %v4704, 0
    %v4715 = vsel %vm525, %v4702, 0
    %4717 = vmatprep.subr.mxu0 0.0
    %4718 = vmatpush1.xpose.msra.mxu0 %v4715
    %4719 = vmatprep.subr.mxu0 0.0
    %4720 = vmatpush1.xpose.msra.mxu0 0.0
    %4721 = vmatprep.subr.mxu0 0.0
    %4722 = vmatpush1.xpose.msra.mxu0 0.0
    %4723 = vmatprep.subr.mxu0 0.0
    %4724 = vmatpush1.xpose.msra.mxu0 0.0
    %4725 = vmatprep.subr.mxu0 0.0
    %4726 = vmatpush1.xpose.msra.mxu0 0.0
    %4727 = vmatprep.subr.mxu0 0.0
    %4728 = vmatpush1.xpose.msra.mxu0 0.0
    %4729 = vmatprep.subr.mxu0 0.0
    %4730 = vmatpush1.xpose.msra.mxu0 0.0
    %4731 = vmatprep.subr.mxu0 0.0
    %4732 = vmatpush1.xpose.msra.mxu0 0.0
    %4733 = vmatprep.subr.mxu0 0.0
    %4734 = vmatpush1.xpose.msra.mxu0 0.0
    %4735 = vmatprep.subr.mxu0 0.0
    %4736 = vmatpush1.xpose.msra.mxu0 0.0
    %4737 = vmatprep.subr.mxu0 0.0
    %4738 = vmatpush1.xpose.msra.mxu0 0.0
    %4739 = vmatprep.subr.mxu0 0.0
    %4740 = vmatpush1.xpose.msra.mxu0 0.0
    %4741 = vmatprep.subr.mxu0 0.0
    %4742 = vmatpush1.xpose.msra.mxu0 0.0
    %4743 = vmatprep.subr.mxu0 0.0
    %4744 = vmatpush1.xpose.msra.mxu0 0.0
    %4745 = vmatprep.subr.mxu0 0.0
    %4746 = vmatpush1.xpose.msra.mxu0 0.0
    %4747 = vmatprep.subr.mxu0 0.0
    %4748 = vmatpush1.xpose.msra.mxu0 0.0
    %4749 = vmatprep.subr.mxu0 0.0
    %4750 = vmatpush1.xpose.msra.mxu0 0.0
    %4751 = vmatprep.subr.mxu0 0.0
    %4752 = vmatpush1.xpose.msra.mxu0 0.0
    %4753 = vmatprep.subr.mxu0 0.0
    %4754 = vmatpush1.xpose.msra.mxu0 0.0
    %4755 = vmatprep.subr.mxu0 0.0
    %4756 = vmatpush1.xpose.msra.mxu0 0.0
    %4757 = vmatprep.subr.mxu0 0.0
    %4758 = vmatpush1.xpose.msra.mxu0 0.0
    %4759 = vmatprep.subr.mxu0 0.0
    %4760 = vmatpush1.xpose.msra.mxu0 0.0
    %4761 = vmatprep.subr.mxu0 0.0
    %4762 = vmatpush1.xpose.msra.mxu0 0.0
    %4763 = vmatprep.subr.mxu0 0.0
    %4764 = vmatpush1.xpose.msra.mxu0 0.0
    %4765 = vmatprep.subr.mxu0 0.0
    %4766 = vmatpush1.xpose.msra.mxu0 0.0
    %4767 = vmatprep.subr.mxu0 0.0
    %4768 = vmatpush1.xpose.msra.mxu0 0.0
    %4769 = vmatprep.subr.mxu0 0.0
    %4770 = vmatpush1.xpose.msra.mxu0 0.0
    %4771 = vmatprep.subr.mxu0 0.0
    %4772 = vmatpush1.xpose.msra.mxu0 0.0
    %4773 = vmatprep.subr.mxu0 0.0
    %4774 = vmatpush1.xpose.msra.mxu0 0.0
    %4775 = vmatprep.subr.mxu0 0.0
    %4776 = vmatpush1.xpose.msra.mxu0 0.0
    %4777 = vmatprep.subr.mxu0 0.0
    %4778 = vmatpush1.xpose.msra.mxu0 0.0
    %4779 = vmatprep.subr.mxu0 0.0
    %4780 = vmatpush1.xpose.msra.mxu0 0.0
    %4781 = vmatprep.mubr.f32.mxu0 0.0
    %4782 = vmatmul.mubr.f32.gmra.mrb[0].mxu0 %v4712
    %v4783 = vpop.f32.mrb[0].mxu0
    %v4784 = vadd.f32 %v4709, %v4783
    %v4785 = vpop.f32.mrb[0].mxu0
    %4786 = vdwg.mxu0
    %v4787 = vmul.f32 %v4784, %v207
    %v4788 = vadd.f32 %v4787, %v173
    %4789 = vst.msk [vmem:[#allocation2] sm:$0xff] %vm163, %v4788
    %v4791 = vsel %vm525, %v4703, 0
    %4793 = vmatprep.subr.mxu0 0.0
    %4794 = vmatpush1.xpose.msra.mxu0 %v4791
    %4795 = vmatprep.subr.mxu0 0.0
    %4796 = vmatpush1.xpose.msra.mxu0 0.0
    %4797 = vmatprep.subr.mxu0 0.0
    %4798 = vmatpush1.xpose.msra.mxu0 0.0
    %4799 = vmatprep.subr.mxu0 0.0
    %4800 = vmatpush1.xpose.msra.mxu0 0.0
    %4801 = vmatprep.subr.mxu0 0.0
    %4802 = vmatpush1.xpose.msra.mxu0 0.0
    %4803 = vmatprep.subr.mxu0 0.0
    %4804 = vmatpush1.xpose.msra.mxu0 0.0
    %4805 = vmatprep.subr.mxu0 0.0
    %4806 = vmatpush1.xpose.msra.mxu0 0.0
    %4807 = vmatprep.subr.mxu0 0.0
    %4808 = vmatpush1.xpose.msra.mxu0 0.0
    %4809 = vmatprep.subr.mxu0 0.0
    %4810 = vmatpush1.xpose.msra.mxu0 0.0
    %4811 = vmatprep.subr.mxu0 0.0
    %4812 = vmatpush1.xpose.msra.mxu0 0.0
    %4813 = vmatprep.subr.mxu0 0.0
    %4814 = vmatpush1.xpose.msra.mxu0 0.0
    %4815 = vmatprep.subr.mxu0 0.0
    %4816 = vmatpush1.xpose.msra.mxu0 0.0
    %4817 = vmatprep.subr.mxu0 0.0
    %4818 = vmatpush1.xpose.msra.mxu0 0.0
    %4819 = vmatprep.subr.mxu0 0.0
    %4820 = vmatpush1.xpose.msra.mxu0 0.0
    %4821 = vmatprep.subr.mxu0 0.0
    %4822 = vmatpush1.xpose.msra.mxu0 0.0
    %4823 = vmatprep.subr.mxu0 0.0
    %4824 = vmatpush1.xpose.msra.mxu0 0.0
    %4825 = vmatprep.subr.mxu0 0.0
    %4826 = vmatpush1.xpose.msra.mxu0 0.0
    %4827 = vmatprep.subr.mxu0 0.0
    %4828 = vmatpush1.xpose.msra.mxu0 0.0
    %4829 = vmatprep.subr.mxu0 0.0
    %4830 = vmatpush1.xpose.msra.mxu0 0.0
    %4831 = vmatprep.subr.mxu0 0.0
    %4832 = vmatpush1.xpose.msra.mxu0 0.0
    %4833 = vmatprep.subr.mxu0 0.0
    %4834 = vmatpush1.xpose.msra.mxu0 0.0
    %4835 = vmatprep.subr.mxu0 0.0
    %4836 = vmatpush1.xpose.msra.mxu0 0.0
    %4837 = vmatprep.subr.mxu0 0.0
    %4838 = vmatpush1.xpose.msra.mxu0 0.0
    %4839 = vmatprep.subr.mxu0 0.0
    %4840 = vmatpush1.xpose.msra.mxu0 0.0
    %4841 = vmatprep.subr.mxu0 0.0
    %4842 = vmatpush1.xpose.msra.mxu0 0.0
    %4843 = vmatprep.subr.mxu0 0.0
    %4844 = vmatpush1.xpose.msra.mxu0 0.0
    %4845 = vmatprep.subr.mxu0 0.0
    %4846 = vmatpush1.xpose.msra.mxu0 0.0
    %4847 = vmatprep.subr.mxu0 0.0
    %4848 = vmatpush1.xpose.msra.mxu0 0.0
    %4849 = vmatprep.subr.mxu0 0.0
    %4850 = vmatpush1.xpose.msra.mxu0 0.0
    %4851 = vmatprep.subr.mxu0 0.0
    %4852 = vmatpush1.xpose.msra.mxu0 0.0
    %4853 = vmatprep.subr.mxu0 0.0
    %4854 = vmatpush1.xpose.msra.mxu0 0.0
    %4855 = vmatprep.subr.mxu0 0.0
    %4856 = vmatpush1.xpose.msra.mxu0 0.0
    %4857 = vmatprep.mubr.f32.mxu0 0.0
    %4858 = vmatmul.mubr.f32.gmra.mrb[0].mxu0 %v4712
    %v4859 = vpop.f32.mrb[0].mxu0
    %v4860 = vadd.f32 %v4709, %v4859
    %v4861 = vpop.f32.mrb[0].mxu0
    %4862 = vdwg.mxu0
    %v4863 = vmul.f32 %v4860, %v281
    %v4864 = vadd.f32 %v4863, %v247
    %s4865 = scalar_lea.vmem [#allocation2], 8
    %4866 = vst.msk [vmem:[%s4865] sm:$0xff] %vm163, %v4864
    // Predicated region
    $region74: #{model_forward.1} parent=1 // pred_check
      _
    $region75: #{model_forward.1} parent=1 // pred_check_branch
      %4868 = sbr.rel (0) target = $region77
    $region76: #{model_forward.1} parent=1 // pred_region
      %s4870 = ssub.s32 256, 256
      %4871 = vsyncadd [#allocation3], %s4870
      %s4872 = sshll.u32 [#allocation2], 4
      %s4873 = int_to_ptr.vmem [resolvable:$true] %s4872
      %4878 = dma.vmem_to_hbm [thread:$0]  %s4873, 256, %s18, [#allocation3], 128, 128, 8
    $region77: #{model_forward.1} parent=1 // pred_fallthru
      _
    // Predicated region
    $region78: #{model_forward.1} parent=1 // pred_check
      _
    $region79: #{model_forward.1} parent=1 // pred_check_branch
      %4880 = sbr.rel (0) target = $region81
    $region80: #{model_forward.1} parent=1 // pred_region
      %4881 = dma.done [#allocation3], 256
    $region81: #{model_forward.1} parent=1 // pred_fallthru
      _
    %4882 = vsyncpa [#allocation3], 1

</llo_original>
